<compile_context>
chip_gen: v5e
topology: v5e:2x2
jax: 0.10.0
libtpu: 0.0.40
codegen_flags: <defaults>
</compile_context>

<pallas_src>
import jax
import jax.numpy as jnp
from jax import lax
from jax.experimental import pallas as pl
from jax.experimental.pallas import tpu as pltpu


# --------------------------------------------------------------------------- #
# Hardware-dispatched budgets / tiling helpers
# --------------------------------------------------------------------------- #
def _hw_budgets():
    try:
        cap = int(pltpu.get_tpu_info().vmem_capacity_bytes)
    except Exception:
        cap = 64 * 1024 * 1024                 # conservative (v7x-sized) fallback
    # (per-grid-step double-buffered slab budget, scoped VMEM limit handed to Mosaic)
    return cap // 6, cap // 2


def _round_up(v, m):
    return ((v + m - 1) // m) * m


def _spatial_tile(s_pad, row_channels, tile_budget):
    """Largest 128-multiple divisor of s_pad whose double-buffered slab fits the budget."""
    # f32, 2 pipeline buffers per tiled operand, channels padded to the 8-row sublane
    # tile; ~1 MiB reserved for the constant weight / scale-bias / partial-stat blocks.
    bytes_per_lane = 2 * 4 * sum(_round_up(int(c), 8) for c in row_channels)
    budget = max(tile_budget - (1 << 20), 128 * bytes_per_lane)
    max_ts = max(128, budget // bytes_per_lane)
    if s_pad >= 256:
        max_ts = min(max_ts, s_pad // 2)       # >= 2 spatial steps (v7x has 2 TCs)
    max_ts = min(max_ts, s_pad)
    best, t = 128, 128
    while t <= max_ts:
        if s_pad % t == 0:
            best = t
        t += 128
    return best


def _tile_counts(s_true, s_pad, ts):
    num_tiles = s_pad // ts
    counts = [ts] * (num_tiles - 1) + [s_true - (num_tiles - 1) * ts]
    return counts, num_tiles


def _compiler_params(vmem_limit):
    return pltpu.CompilerParams(
        dimension_semantics=("parallel", "parallel"),
        vmem_limit_bytes=int(vmem_limit))


def _act_spec(c, ts):
    # (1, C, ts) channel-major activation tile, spatial on the lane axis (lane-dense).
    return pl.BlockSpec((1, c, ts), lambda n, s: (n, 0, s))


def _const_spec(shape):
    # Small constant operand (weights / fused scale-bias), same block for every step.
    return pl.BlockSpec(shape, lambda n, s: (0,) * len(shape))


def _part_spec(c):
    # Per-tile [sum, sumsq] partial-statistics output.
    return pl.BlockSpec((1, 1, c, 2), lambda n, s: (n, s, 0, 0))


# --------------------------------------------------------------------------- #
# Pallas kernels — channel-major blocks (1, C, ts)
# --------------------------------------------------------------------------- #
def _lane_mask(ts, num_tiles, valid_last, dtype):
    # 1.0 for valid lanes, 0.0 for zero-padded lanes of the last spatial tile.
    lane = lax.broadcasted_iota(jnp.int32, (1, ts), 1)
    limit = jnp.where(pl.program_id(1) == num_tiles - 1, valid_last, ts)
    return (lane < limit).astype(dtype)


def _partial_moments(y, ts, num_tiles, valid_last):
    # Per-tile [sum, sum-of-squares] of y (C, ts) over the lane axis, excluding padding.
    if valid_last != ts:
        y = y * _lane_mask(ts, num_tiles, valid_last, y.dtype)
    return jnp.concatenate([jnp.sum(y, axis=1, keepdims=True),
                            jnp.sum(y * y, axis=1, keepdims=True)], axis=1)   # (C, 2)


def _make_in1_shortcut_kernel(ts, num_tiles, valid_last):
    # Stage A: BN(x)+ReLU -> {1x1 conv_in1, 1x1 shortcut}; emits partial stats of x1.
    def kernel(x_ref, sb_ref, w1_ref, wsc_ref, x1_ref, sc_ref, p_ref):
        x = x_ref[0]                                                   # (C_in, ts)
        h1 = jnp.maximum(x * sb_ref[:, 0:1] + sb_ref[:, 1:2], 0.0)     # BN+ReLU (in1)
        hs = jnp.maximum(x * sb_ref[:, 2:3] + sb_ref[:, 3:4], 0.0)     # BN+ReLU (shortcut)
        y1 = jnp.dot(w1_ref[...], h1, preferred_element_type=jnp.float32,
                     precision=lax.Precision.HIGHEST)                  # (C1, ts)
        ys = jnp.dot(wsc_ref[...], hs, preferred_element_type=jnp.float32,
                     precision=lax.Precision.HIGHEST)                  # (C_out, ts)
        x1_ref[0] = y1.astype(x1_ref.dtype)
        sc_ref[0] = ys.astype(sc_ref.dtype)
        p_ref[0, 0] = _partial_moments(y1, ts, num_tiles, valid_last)
    return kernel


def _make_bn_relu_conv_kernel(ts, num_tiles, valid_last):
    # Stage B: BN+ReLU -> 1x1 conv; emits partial stats of the conv output.
    def kernel(x_ref, sb_ref, w_ref, o_ref, p_ref):
        x = x_ref[0]
        h = jnp.maximum(x * sb_ref[:, 0:1] + sb_ref[:, 1:2], 0.0)
        y = jnp.dot(w_ref[...], h, preferred_element_type=jnp.float32,
                    precision=lax.Precision.HIGHEST)
        o_ref[0] = y.astype(o_ref.dtype)
        p_ref[0, 0] = _partial_moments(y, ts, num_tiles, valid_last)
    return kernel


def _bn_relu3_kernel(x_ref, sb_ref, h0_ref, h1_ref, h2_ref):
    # Stage C: one read of x2, three BN+ReLU outputs (one per dilation branch).
    x = x_ref[0]
    h0_ref[0] = jnp.maximum(x * sb_ref[:, 0:1] + sb_ref[:, 1:2], 0.0).astype(h0_ref.dtype)
    h1_ref[0] = jnp.maximum(x * sb_ref[:, 2:3] + sb_ref[:, 3:4], 0.0).astype(h1_ref.dtype)
    h2_ref[0] = jnp.maximum(x * sb_ref[:, 4:5] + sb_ref[:, 5:6], 0.0).astype(h2_ref.dtype)


def _make_wsum_kernel(ts, num_tiles, valid_last):
    # Stage D: x3 = w1*y0 + w2*y1 + w3*y2; emits partial stats of x3.
    def kernel(y0_ref, y1_ref, y2_ref, wc_ref, o_ref, p_ref):
        y = (y0_ref[0] * wc_ref[:, 0:1] + y1_ref[0] * wc_ref[:, 1:2]
             + y2_ref[0] * wc_ref[:, 2:3])
        o_ref[0] = y.astype(o_ref.dtype)
        p_ref[0, 0] = _partial_moments(y, ts, num_tiles, valid_last)
    return kernel


def _bn_relu_kernel(x_ref, sb_ref, o_ref):
    # Stage E: BN(x3)+ReLU prologue of the 3x3x1 block.
    x = x_ref[0]
    o_ref[0] = jnp.maximum(x * sb_ref[:, 0:1] + sb_ref[:, 1:2], 0.0).astype(o_ref.dtype)


# --------------------------------------------------------------------------- #
# Batch-norm statistics helpers
# --------------------------------------------------------------------------- #
def _batch_stats_direct(x_ncs):
    # Two-pass stats for the network input (robust; only the input pays this extra read).
    mean = jnp.mean(x_ncs, axis=(0, 2))
    var = jnp.mean(jnp.square(x_ncs - mean[None, :, None]), axis=(0, 2))
    return mean, var


def _batch_stats_from_partials(partials, counts, total):
    # Parallel-Welford combine of per-tile [sum, sumsq] partials -> (mean, biased var).
    s, ss = partials[..., 0], partials[..., 1]                 # (N, T, C)
    cnt = counts[None, :, None]
    mean_t = s / cnt
    m2_t = ss - s * mean_t
    mean = jnp.sum(s, axis=(0, 1)) / total
    m2 = (jnp.sum(m2_t, axis=(0, 1))
          + jnp.sum(cnt * jnp.square(mean_t - mean), axis=(0, 1)))
    var = jnp.maximum(m2 / total, 0.0)
    return mean, var


def _affine(mean, var, gamma, beta, eps):
    scale = gamma * lax.rsqrt(var + eps)
    return scale, beta - mean * scale


# --------------------------------------------------------------------------- #
# XLA dilated spatial convolution (shared by kernel path and reference)
# --------------------------------------------------------------------------- #
def _dilated_conv3d(x, w, *, dilation, stride=(1, 1, 1)):
    kd, kh, kw = w.shape[2:]
    pad = tuple(((k - 1) // 2) * d for k, d in zip((kd, kh, kw), dilation))
    # TODO(synk): default (single-pass MXU) precision; a channel-major Pallas version
    # (27 shifted matmuls fused with the BN+ReLU prologue) would use the MXU far better.
    return lax.conv_general_dilated(
        x, w, window_strides=stride,
        padding=[(p, p) for p in pad],
        rhs_dilation=dilation,
        dimension_numbers=('NCDHW', 'OIDHW', 'NCDHW'),
        feature_group_count=1)


# --------------------------------------------------------------------------- #
# DMFUnit forward
# --------------------------------------------------------------------------- #
def dmf_unit_forward(x, params, *, dilations=(1, 2, 3), eps=1e-5):
    p = params
    N, C_in, D, H, W = x.shape
    C1 = p['w_in1'].shape[0]
    C_mid = p['w_in2'].shape[0]
    C_out = p['w_sc'].shape[0]
    S = D * H * W
    s_pad = _round_up(S, 128)
    total = float(N * S)
    f32 = jnp.float32
    tile_budget, vmem_limit = _hw_budgets()
    cparams = _compiler_params(vmem_limit)

    def pad_lanes(t_ncs):
        return t_ncs if s_pad == S else jnp.pad(t_ncs, ((0, 0), (0, 0), (0, s_pad - S)))

    def to_5d(t_p, c):
        return t_p[:, :, :S].reshape(N, c, D, H, W)

    x_ncs = x.reshape(N, C_in, S)          # channel-major view, spatial flattened (free)
    x_p = pad_lanes(x_ncs)

    # ---- stage A: BN(x)+ReLU -> {1x1 conv_in1, 1x1 shortcut} (x read once) ----
    mean_x, var_x = _batch_stats_direct(x_ncs)
    s1, b1 = _affine(mean_x, var_x, p['bn_in1_g'], p['bn_in1_b'], eps)
    ssc, bsc = _affine(mean_x, var_x, p['bn_sc_g'], p['bn_sc_b'], eps)
    sb_a = jnp.stack([s1, b1, ssc, bsc], axis=1)                       # (C_in, 4)
    ts_a = _spatial_tile(s_pad, (C_in, C1, C_out), tile_budget)
    counts_a, T_a = _tile_counts(S, s_pad, ts_a)
    x1_p, sc_p, part_x1 = pl.pallas_call(
        _make_in1_shortcut_kernel(ts_a, T_a, counts_a[-1]),
        out_shape=(jax.ShapeDtypeStruct((N, C1, s_pad), x.dtype),
                   jax.ShapeDtypeStruct((N, C_out, s_pad), x.dtype),
                   jax.ShapeDtypeStruct((N, T_a, C1, 2), f32)),
        grid_spec=pltpu.PrefetchScalarGridSpec(
            num_scalar_prefetch=0, grid=(N, T_a),
            in_specs=[_act_spec(C_in, ts_a), _const_spec((C_in, 4)),
                      _const_spec((C1, C_in)), _const_spec((C_out, C_in))],
            out_specs=(_act_spec(C1, ts_a), _act_spec(C_out, ts_a), _part_spec(C1))),
        compiler_params=cparams,
    )(x_p, sb_a, p['w_in1'], p['w_sc'])

    # ---- stage B: BN(x1)+ReLU -> 1x1 conv_in2 (x1 stats come from stage-A partials) ----
    mean1, var1 = _batch_stats_from_partials(part_x1, jnp.asarray(counts_a, f32), total)
    s2, b2 = _affine(mean1, var1, p['bn_in2_g'], p['bn_in2_b'], eps)
    sb_b = jnp.stack([s2, b2], axis=1)                                 # (C1, 2)
    ts_b = _spatial_tile(s_pad, (C1, C_mid), tile_budget)
    counts_b, T_b = _tile_counts(S, s_pad, ts_b)
    x2_p, part_x2 = pl.pallas_call(
        _make_bn_relu_conv_kernel(ts_b, T_b, counts_b[-1]),
        out_shape=(jax.ShapeDtypeStruct((N, C_mid, s_pad), x.dtype),
                   jax.ShapeDtypeStruct((N, T_b, C_mid, 2), f32)),
        grid_spec=pltpu.PrefetchScalarGridSpec(
            num_scalar_prefetch=0, grid=(N, T_b),
            in_specs=[_act_spec(C1, ts_b), _const_spec((C1, 2)),
                      _const_spec((C_mid, C1))],
            out_specs=(_act_spec(C_mid, ts_b), _part_spec(C_mid))),
        compiler_params=cparams,
    )(x1_p, sb_b, p['w_in2'])

    # ---- stage C: fused three-branch BN(x2)+ReLU prologue (x2 read once, not 3x) ----
    mean2, var2 = _batch_stats_from_partials(part_x2, jnp.asarray(counts_b, f32), total)
    cols = []
    for i in range(3):
        si, bi = _affine(mean2, var2, p['bn_m1_g'][i], p['bn_m1_b'][i], eps)
        cols += [si, bi]
    sb_c = jnp.stack(cols, axis=1)                                     # (C_mid, 6)
    ts_c = _spatial_tile(s_pad, (C_mid,) * 4, tile_budget)
    T_c = s_pad // ts_c
    h_ps = pl.pallas_call(
        _bn_relu3_kernel,
        out_shape=tuple(jax.ShapeDtypeStruct((N, C_mid, s_pad), x.dtype)
                        for _ in range(3)),
        grid_spec=pltpu.PrefetchScalarGridSpec(
            num_scalar_prefetch=0, grid=(N, T_c),
            in_specs=[_act_spec(C_mid, ts_c), _const_spec((C_mid, 6))],
            out_specs=tuple(_act_spec(C_mid, ts_c) for _ in range(3))),
        compiler_params=cparams,
    )(x2_p, sb_c)

    # ---- dilated 3x3x3 convolutions (XLA) ----
    ys = [_dilated_conv3d(to_5d(h_ps[i], C_mid), p['w_m1'][i], dilation=(d, d, d))
          for i, d in enumerate(dilations)]

    # ---- stage D: weighted branch sum x3 = sum_i w_i * y_i (+ partial stats of x3) ----
    wvec = jnp.stack([p['weight1'].reshape(()), p['weight2'].reshape(()),
                      p['weight3'].reshape(())])
    wc = jnp.tile(wvec[None, :], (C_out, 1))                           # (C_out, 3)
    y_ps = [pad_lanes(y.reshape(N, C_out, S)) for y in ys]
    ts_d = _spatial_tile(s_pad, (C_out,) * 4, tile_budget)
    counts_d, T_d = _tile_counts(S, s_pad, ts_d)
    x3_p, part_x3 = pl.pallas_call(
        _make_wsum_kernel(ts_d, T_d, counts_d[-1]),
        out_shape=(jax.ShapeDtypeStruct((N, C_out, s_pad), x.dtype),
                   jax.ShapeDtypeStruct((N, T_d, C_out, 2), f32)),
        grid_spec=pltpu.PrefetchScalarGridSpec(
            num_scalar_prefetch=0, grid=(N, T_d),
            in_specs=[_act_spec(C_out, ts_d)] * 3 + [_const_spec((C_out, 3))],
            out_specs=(_act_spec(C_out, ts_d), _part_spec(C_out))),
        compiler_params=cparams,
    )(y_ps[0], y_ps[1], y_ps[2], wc)

    # ---- stage E: BN(x3)+ReLU prologue of the 3x3x1 block ----
    mean3, var3 = _batch_stats_from_partials(part_x3, jnp.asarray(counts_d, f32), total)
    s4, b4 = _affine(mean3, var3, p['bn_m2_g'], p['bn_m2_b'], eps)
    sb_e = jnp.stack([s4, b4], axis=1)                                 # (C_out, 2)
    ts_e = _spatial_tile(s_pad, (C_out,) * 2, tile_budget)
    T_e = s_pad // ts_e
    h4_p = pl.pallas_call(
        _bn_relu_kernel,
        out_shape=jax.ShapeDtypeStruct((N, C_out, s_pad), x.dtype),
        grid_spec=pltpu.PrefetchScalarGridSpec(
            num_scalar_prefetch=0, grid=(N, T_e),
            in_specs=[_act_spec(C_out, ts_e), _const_spec((C_out, 2))],
            out_specs=_act_spec(C_out, ts_e)),
        compiler_params=cparams,
    )(x3_p, sb_e)

    x4 = _dilated_conv3d(to_5d(h4_p, C_out), p['w_m2'], dilation=(1, 1, 1))
    return x4 + to_5d(sc_p, C_out)


# --------------------------------------------------------------------------- #
# Pure-JAX reference (standard two-pass BN, einsum / conv)
# --------------------------------------------------------------------------- #
def _ref_bn_relu(x, gamma, beta, eps=1e-5):
    mean = jnp.mean(x, axis=(0, 2, 3, 4), keepdims=True)
    var = jnp.mean(jnp.square(x - mean), axis=(0, 2, 3, 4), keepdims=True)
    h = (x - mean) * lax.rsqrt(var + eps)
    h = h * gamma[None, :, None, None, None] + beta[None, :, None, None, None]
    return jnp.maximum(h, 0.0)


def _ref_conv1x1(x, w):
    return jnp.einsum('ncdhw,oc->nodhw', x, w, precision=lax.Precision.HIGHEST)


def reference_dmf_unit(x, p, *, dilations=(1, 2, 3)):
    x1 = _ref_conv1x1(_ref_bn_relu(x, p['bn_in1_g'], p['bn_in1_b']), p['w_in1'])
    x2 = _ref_conv1x1(_ref_bn_relu(x1, p['bn_in2_g'], p['bn_in2_b']), p['w_in2'])
    ys = []
    for i, d in enumerate(dilations):
        h = _ref_bn_relu(x2, p['bn_m1_g'][i], p['bn_m1_b'][i])
        ys.append(_dilated_conv3d(h, p['w_m1'][i], dilation=(d, d, d)))
    x3 = p['weight1'] * ys[0] + p['weight2'] * ys[1] + p['weight3'] * ys[2]
    x4 = _dilated_conv3d(_ref_bn_relu(x3, p['bn_m2_g'], p['bn_m2_b']), p['w_m2'],
                         dilation=(1, 1, 1))
    sc = _ref_conv1x1(_ref_bn_relu(x, p['bn_sc_g'], p['bn_sc_b']), p['w_sc'])
    return x4 + sc


if __name__ == "__main__":
    N, num_in, num_out = 2, 8, 16
    D = H = W = 8
    num_mid = num_in if num_in <= num_out else num_out   # 8
    c1 = num_in // 4                                      # 2

    key = jax.random.PRNGKey(0)
    kx, k0, k1, k2, k3, k4, k5, k6 = jax.random.split(key, 8)
    x = jax.random.normal(kx, (N, num_in, D, H, W), dtype=jnp.float32)

    def w_init(k, shape, fan_in):
        bound = 1.0 / (fan_in ** 0.5)
        return jax.random.uniform(k, shape, jnp.float32, -bound, bound)

    params = dict(
        # conv1x1x1_in1: BN(num_in) -> ReLU -> conv num_in -> num_in//4
        w_in1=w_init(k0, (c1, num_in), num_in),
        bn_in1_g=jnp.ones((num_in,), jnp.float32),
        bn_in1_b=jnp.zeros((num_in,), jnp.float32),
        # conv1x1x1_in2: BN(num_in//4) -> ReLU -> conv num_in//4 -> num_mid
        w_in2=w_init(k1, (num_mid, c1), c1),
        bn_in2_g=jnp.ones((c1,), jnp.float32),
        bn_in2_b=jnp.zeros((c1,), jnp.float32),
        # three dilated 3x3x3 blocks: BN(num_mid) -> ReLU -> conv num_mid -> num_out
        w_m1=[w_init(k, (num_out, num_mid, 3, 3, 3), num_mid * 27) for k in (k2, k3, k4)],
        bn_m1_g=[jnp.ones((num_mid,), jnp.float32) for _ in range(3)],
        bn_m1_b=[jnp.zeros((num_mid,), jnp.float32) for _ in range(3)],
        # 3x3x1 block: BN(num_out) -> ReLU -> conv num_out -> num_out
        w_m2=w_init(k5, (num_out, num_out, 3, 3, 1), num_out * 9),
        bn_m2_g=jnp.ones((num_out,), jnp.float32),
        bn_m2_b=jnp.zeros((num_out,), jnp.float32),
        # 1x1x1 shortcut (num_in != num_out, stride == 1)
        w_sc=w_init(k6, (num_out, num_in), num_in),
        bn_sc_g=jnp.ones((num_in,), jnp.float32),
        bn_sc_b=jnp.zeros((num_in,), jnp.float32),
        # DMFUnit branch weights (PyTorch init: torch.ones(1))
        weight1=jnp.ones((), jnp.float32),
        weight2=jnp.ones((), jnp.float32),
        weight3=jnp.ones((), jnp.float32),
    )

    fwd = jax.jit(dmf_unit_forward, static_argnames=("dilations",))
    out = jax.block_until_ready(fwd(x, params, dilations=(1, 2, 3)))

    ref = reference_dmf_unit(x, params, dilations=(1, 2, 3))
    assert out.shape == (N, num_out, D, H, W)
    assert jnp.allclose(out, ref, atol=1e-2, rtol=1e-2), "mismatch vs reference"

    print("KERNEL_OK")
</pallas_src>

<mosaic_0001>
module attributes {stable_mosaic.version = 11 : i64} {
  func.func @kernel(%arg0: i32, %arg1: i32, %arg2: memref<1x8x256xf32, #tpu.memory_space<vmem>>, %arg3: memref<8x4xf32, #tpu.memory_space<vmem>>, %arg4: memref<2x8xf32, #tpu.memory_space<vmem>>, %arg5: memref<16x8xf32, #tpu.memory_space<vmem>>, %arg6: memref<1x2x256xf32, #tpu.memory_space<vmem>>, %arg7: memref<1x16x256xf32, #tpu.memory_space<vmem>>, %arg8: memref<1x1x2x2xf32, #tpu.memory_space<vmem>>) attributes {dimension_semantics = [#tpu.dimension_semantics<parallel>, #tpu.dimension_semantics<parallel>], iteration_bounds = array<i64: 2, 2>, scalar_prefetch = 0 : i64, scratch_operands = 0 : i64, tpu.core_type = #tpu.core_type<tc>, window_params = [{transform_indices = @transform_0, window_bounds = array<i64: 1, 8, 256>}, {pipeline_mode = #tpu.pipeline_mode<synchronous>, transform_indices = @transform_1, window_bounds = array<i64: 8, 4>}, {pipeline_mode = #tpu.pipeline_mode<synchronous>, transform_indices = @transform_2, window_bounds = array<i64: 2, 8>}, {pipeline_mode = #tpu.pipeline_mode<synchronous>, transform_indices = @transform_3, window_bounds = array<i64: 16, 8>}, {transform_indices = @transform_4, window_bounds = array<i64: 1, 2, 256>}, {transform_indices = @transform_5, window_bounds = array<i64: 1, 16, 256>}, {transform_indices = @transform_6, window_bounds = array<i64: 1, 1, 2, 2>}]} {
    %c0 = arith.constant 0 : index
    %c0_0 = arith.constant 0 : index
    %c0_1 = arith.constant 0 : index
    %0 = vector.load %arg2[%c0, %c0_0, %c0_1] : memref<1x8x256xf32, #tpu.memory_space<vmem>>, vector<1x8x256xf32>
    %1 = vector.shape_cast %0 : vector<1x8x256xf32> to vector<8x256xf32>
    %c0_2 = arith.constant 0 : index
    %c0_3 = arith.constant 0 : index
    %2 = vector.load %arg3[%c0_2, %c0_3] : memref<8x4xf32, #tpu.memory_space<vmem>>, vector<8x1xf32>
    %3 = vector.broadcast %2 : vector<8x1xf32> to vector<8x256xf32>
    %4 = arith.mulf %1, %3 : vector<8x256xf32>
    %c0_4 = arith.constant 0 : index
    %c1 = arith.constant 1 : index
    %5 = vector.load %arg3[%c0_4, %c1] : memref<8x4xf32, #tpu.memory_space<vmem>>, vector<8x1xf32>
    %6 = vector.broadcast %5 : vector<8x1xf32> to vector<8x256xf32>
    %7 = arith.addf %4, %6 : vector<8x256xf32>
    %cst = arith.constant 0.000000e+00 : f32
    %8 = vector.broadcast %cst : f32 to vector<8x256xf32>
    %9 = arith.maximumf %7, %8 : vector<8x256xf32>
    %c0_5 = arith.constant 0 : index
    %c2 = arith.constant 2 : index
    %10 = vector.load %arg3[%c0_5, %c2] : memref<8x4xf32, #tpu.memory_space<vmem>>, vector<8x1xf32>
    %11 = vector.broadcast %10 : vector<8x1xf32> to vector<8x256xf32>
    %12 = arith.mulf %1, %11 : vector<8x256xf32>
    %c0_6 = arith.constant 0 : index
    %c3 = arith.constant 3 : index
    %13 = vector.load %arg3[%c0_6, %c3] : memref<8x4xf32, #tpu.memory_space<vmem>>, vector<8x1xf32>
    %14 = vector.broadcast %13 : vector<8x1xf32> to vector<8x256xf32>
    %15 = arith.addf %12, %14 : vector<8x256xf32>
    %cst_7 = arith.constant 0.000000e+00 : f32
    %16 = vector.broadcast %cst_7 : f32 to vector<8x256xf32>
    %17 = arith.maximumf %15, %16 : vector<8x256xf32>
    %c0_8 = arith.constant 0 : index
    %c0_9 = arith.constant 0 : index
    %18 = vector.load %arg4[%c0_8, %c0_9] : memref<2x8xf32, #tpu.memory_space<vmem>>, vector<2x8xf32>
    %cst_10 = arith.constant dense<0.000000e+00> : vector<2x256xf32>
    %19 = tpu.matmul %18, %9, %cst_10 {dimension_numbers = #tpu.dot_dimension_numbers<[1], [0], [0], [1], [0, 0, 1, 1], [], []>, precision = #tpu.contract_precision<fp32>} : vector<2x8xf32>, vector<8x256xf32>, vector<2x256xf32> -> vector<2x256xf32>
    %c0_11 = arith.constant 0 : index
    %c0_12 = arith.constant 0 : index
    %20 = vector.load %arg5[%c0_11, %c0_12] : memref<16x8xf32, #tpu.memory_space<vmem>>, vector<16x8xf32>
    %cst_13 = arith.constant dense<0.000000e+00> : vector<16x256xf32>
    %21 = tpu.matmul %20, %17, %cst_13 {dimension_numbers = #tpu.dot_dimension_numbers<[1], [0], [0], [1], [0, 0, 1, 1], [], []>, precision = #tpu.contract_precision<fp32>} : vector<16x8xf32>, vector<8x256xf32>, vector<16x256xf32> -> vector<16x256xf32>
    %c0_14 = arith.constant 0 : index
    %c0_15 = arith.constant 0 : index
    %c0_16 = arith.constant 0 : index
    %22 = vector.load %arg6[%c0_14, %c0_15, %c0_16] : memref<1x2x256xf32, #tpu.memory_space<vmem>>, vector<1x2x256xf32>
    %23 = vector.shape_cast %22 : vector<1x2x256xf32> to vector<2x256xf32>
    %24 = vector.shape_cast %19 : vector<2x256xf32> to vector<1x2x256xf32>
    tpu.vector_store %arg6[%c0_14, %c0_15, %c0_16], %24 {strides = array<i32>} : memref<1x2x256xf32, #tpu.memory_space<vmem>>, vector<1x2x256xf32>,
    %c0_17 = arith.constant 0 : index
    %c0_18 = arith.constant 0 : index
    %c0_19 = arith.constant 0 : index
    %25 = vector.load %arg7[%c0_17, %c0_18, %c0_19] : memref<1x16x256xf32, #tpu.memory_space<vmem>>, vector<1x16x256xf32>
    %26 = vector.shape_cast %25 : vector<1x16x256xf32> to vector<16x256xf32>
    %27 = vector.shape_cast %21 : vector<16x256xf32> to vector<1x16x256xf32>
    tpu.vector_store %arg7[%c0_17, %c0_18, %c0_19], %27 {strides = array<i32>} : memref<1x16x256xf32, #tpu.memory_space<vmem>>, vector<1x16x256xf32>,
    %cst_20 = arith.constant dense<0.000000e+00> : vector<2xf32>
    %28 = vector.multi_reduction <add>, %19, %cst_20 [1] : vector<2x256xf32> to vector<2xf32>
    %29 = vector.shape_cast %28 : vector<2xf32> to vector<2x1xf32>
    %30 = arith.mulf %19, %19 : vector<2x256xf32>
    %cst_21 = arith.constant dense<0.000000e+00> : vector<2xf32>
    %31 = vector.multi_reduction <add>, %30, %cst_21 [1] : vector<2x256xf32> to vector<2xf32>
    %32 = vector.shape_cast %31 : vector<2xf32> to vector<2x1xf32>
    %33 = tpu.concatenate %29, %32 in 1 : vector<2x1xf32>, vector<2x1xf32> -> vector<2x2xf32>
    %c0_22 = arith.constant 0 : index
    %c0_23 = arith.constant 0 : index
    %c0_24 = arith.constant 0 : index
    %c0_25 = arith.constant 0 : index
    %34 = vector.load %arg8[%c0_22, %c0_23, %c0_24, %c0_25] : memref<1x1x2x2xf32, #tpu.memory_space<vmem>>, vector<1x1x2x2xf32>
    %35 = vector.shape_cast %34 : vector<1x1x2x2xf32> to vector<2x2xf32>
    %36 = vector.shape_cast %33 : vector<2x2xf32> to vector<1x1x2x2xf32>
    tpu.vector_store %arg8[%c0_22, %c0_23, %c0_24, %c0_25], %36 {strides = array<i32>} : memref<1x1x2x2xf32, #tpu.memory_space<vmem>>, vector<1x1x2x2xf32>,
    return
  }
  func.func @transform_0(%arg0: i32, %arg1: i32) -> (i32, i32, i32) {
    %c0_i32 = arith.constant 0 : i32
    %c0_i32_0 = arith.constant 0 : i32
    return %arg0, %c0_i32, %arg1 : i32, i32, i32
  }
  func.func @transform_1(%arg0: i32, %arg1: i32) -> (i32, i32) {
    %c0_i32 = arith.constant 0 : i32
    %c0_i32_0 = arith.constant 0 : i32
    %c0_i32_1 = arith.constant 0 : i32
    return %c0_i32, %c0_i32_0 : i32, i32
  }
  func.func @transform_2(%arg0: i32, %arg1: i32) -> (i32, i32) {
    %c0_i32 = arith.constant 0 : i32
    %c0_i32_0 = arith.constant 0 : i32
    %c0_i32_1 = arith.constant 0 : i32
    return %c0_i32, %c0_i32_0 : i32, i32
  }
  func.func @transform_3(%arg0: i32, %arg1: i32) -> (i32, i32) {
    %c0_i32 = arith.constant 0 : i32
    %c0_i32_0 = arith.constant 0 : i32
    %c0_i32_1 = arith.constant 0 : i32
    return %c0_i32, %c0_i32_0 : i32, i32
  }
  func.func @transform_4(%arg0: i32, %arg1: i32) -> (i32, i32, i32) {
    %c0_i32 = arith.constant 0 : i32
    %c0_i32_0 = arith.constant 0 : i32
    return %arg0, %c0_i32, %arg1 : i32, i32, i32
  }
  func.func @transform_5(%arg0: i32, %arg1: i32) -> (i32, i32, i32) {
    %c0_i32 = arith.constant 0 : i32
    %c0_i32_0 = arith.constant 0 : i32
    return %arg0, %c0_i32, %arg1 : i32, i32, i32
  }
  func.func @transform_6(%arg0: i32, %arg1: i32) -> (i32, i32, i32, i32) {
    %c0_i32 = arith.constant 0 : i32
    %c0_i32_0 = arith.constant 0 : i32
    %c0_i32_1 = arith.constant 0 : i32
    return %arg0, %arg1, %c0_i32, %c0_i32_0 : i32, i32, i32, i32
  }
}

module attributes {stable_mosaic.version = 11 : i64} {
  func.func @kernel(%arg0: i32, %arg1: i32, %arg2: memref<1x2x256xf32, #tpu.memory_space<vmem>>, %arg3: memref<2x2xf32, #tpu.memory_space<vmem>>, %arg4: memref<8x2xf32, #tpu.memory_space<vmem>>, %arg5: memref<1x8x256xf32, #tpu.memory_space<vmem>>, %arg6: memref<1x1x8x2xf32, #tpu.memory_space<vmem>>) attributes {dimension_semantics = [#tpu.dimension_semantics<parallel>, #tpu.dimension_semantics<parallel>], iteration_bounds = array<i64: 2, 2>, scalar_prefetch = 0 : i64, scratch_operands = 0 : i64, tpu.core_type = #tpu.core_type<tc>, window_params = [{transform_indices = @transform_0, window_bounds = array<i64: 1, 2, 256>}, {pipeline_mode = #tpu.pipeline_mode<synchronous>, transform_indices = @transform_1, window_bounds = array<i64: 2, 2>}, {pipeline_mode = #tpu.pipeline_mode<synchronous>, transform_indices = @transform_2, window_bounds = array<i64: 8, 2>}, {transform_indices = @transform_3, window_bounds = array<i64: 1, 8, 256>}, {transform_indices = @transform_4, window_bounds = array<i64: 1, 1, 8, 2>}]} {
    %c0 = arith.constant 0 : index
    %c0_0 = arith.constant 0 : index
    %c0_1 = arith.constant 0 : index
    %0 = vector.load %arg2[%c0, %c0_0, %c0_1] : memref<1x2x256xf32, #tpu.memory_space<vmem>>, vector<1x2x256xf32>
    %1 = vector.shape_cast %0 : vector<1x2x256xf32> to vector<2x256xf32>
    %c0_2 = arith.constant 0 : index
    %c0_3 = arith.constant 0 : index
    %2 = vector.load %arg3[%c0_2, %c0_3] : memref<2x2xf32, #tpu.memory_space<vmem>>, vector<2x1xf32>
    %3 = vector.broadcast %2 : vector<2x1xf32> to vector<2x256xf32>
    %4 = arith.mulf %1, %3 : vector<2x256xf32>
    %c0_4 = arith.constant 0 : index
    %c1 = arith.constant 1 : index
    %5 = vector.load %arg3[%c0_4, %c1] : memref<2x2xf32, #tpu.memory_space<vmem>>, vector<2x1xf32>
    %6 = vector.broadcast %5 : vector<2x1xf32> to vector<2x256xf32>
    %7 = arith.addf %4, %6 : vector<2x256xf32>
    %cst = arith.constant 0.000000e+00 : f32
    %8 = vector.broadcast %cst : f32 to vector<2x256xf32>
    %9 = arith.maximumf %7, %8 : vector<2x256xf32>
    %c0_5 = arith.constant 0 : index
    %c0_6 = arith.constant 0 : index
    %10 = vector.load %arg4[%c0_5, %c0_6] : memref<8x2xf32, #tpu.memory_space<vmem>>, vector<8x2xf32>
    %cst_7 = arith.constant dense<0.000000e+00> : vector<8x256xf32>
    %11 = tpu.matmul %10, %9, %cst_7 {dimension_numbers = #tpu.dot_dimension_numbers<[1], [0], [0], [1], [0, 0, 1, 1], [], []>, precision = #tpu.contract_precision<fp32>} : vector<8x2xf32>, vector<2x256xf32>, vector<8x256xf32> -> vector<8x256xf32>
    %c0_8 = arith.constant 0 : index
    %c0_9 = arith.constant 0 : index
    %c0_10 = arith.constant 0 : index
    %12 = vector.load %arg5[%c0_8, %c0_9, %c0_10] : memref<1x8x256xf32, #tpu.memory_space<vmem>>, vector<1x8x256xf32>
    %13 = vector.shape_cast %12 : vector<1x8x256xf32> to vector<8x256xf32>
    %14 = vector.shape_cast %11 : vector<8x256xf32> to vector<1x8x256xf32>
    tpu.vector_store %arg5[%c0_8, %c0_9, %c0_10], %14 {strides = array<i32>} : memref<1x8x256xf32, #tpu.memory_space<vmem>>, vector<1x8x256xf32>,
    %cst_11 = arith.constant dense<0.000000e+00> : vector<8xf32>
    %15 = vector.multi_reduction <add>, %11, %cst_11 [1] : vector<8x256xf32> to vector<8xf32>
    %16 = vector.shape_cast %15 : vector<8xf32> to vector<8x1xf32>
    %17 = arith.mulf %11, %11 : vector<8x256xf32>
    %cst_12 = arith.constant dense<0.000000e+00> : vector<8xf32>
    %18 = vector.multi_reduction <add>, %17, %cst_12 [1] : vector<8x256xf32> to vector<8xf32>
    %19 = vector.shape_cast %18 : vector<8xf32> to vector<8x1xf32>
    %20 = tpu.concatenate %16, %19 in 1 : vector<8x1xf32>, vector<8x1xf32> -> vector<8x2xf32>
    %c0_13 = arith.constant 0 : index
    %c0_14 = arith.constant 0 : index
    %c0_15 = arith.constant 0 : index
    %c0_16 = arith.constant 0 : index
    %21 = vector.load %arg6[%c0_13, %c0_14, %c0_15, %c0_16] : memref<1x1x8x2xf32, #tpu.memory_space<vmem>>, vector<1x1x8x2xf32>
    %22 = vector.shape_cast %21 : vector<1x1x8x2xf32> to vector<8x2xf32>
    %23 = vector.shape_cast %20 : vector<8x2xf32> to vector<1x1x8x2xf32>
    tpu.vector_store %arg6[%c0_13, %c0_14, %c0_15, %c0_16], %23 {strides = array<i32>} : memref<1x1x8x2xf32, #tpu.memory_space<vmem>>, vector<1x1x8x2xf32>,
    return
  }
  func.func @transform_0(%arg0: i32, %arg1: i32) -> (i32, i32, i32) {
    %c0_i32 = arith.constant 0 : i32
    %c0_i32_0 = arith.constant 0 : i32
    return %arg0, %c0_i32, %arg1 : i32, i32, i32
  }
  func.func @transform_1(%arg0: i32, %arg1: i32) -> (i32, i32) {
    %c0_i32 = arith.constant 0 : i32
    %c0_i32_0 = arith.constant 0 : i32
    %c0_i32_1 = arith.constant 0 : i32
    return %c0_i32, %c0_i32_0 : i32, i32
  }
  func.func @transform_2(%arg0: i32, %arg1: i32) -> (i32, i32) {
    %c0_i32 = arith.constant 0 : i32
    %c0_i32_0 = arith.constant 0 : i32
    %c0_i32_1 = arith.constant 0 : i32
    return %c0_i32, %c0_i32_0 : i32, i32
  }
  func.func @transform_3(%arg0: i32, %arg1: i32) -> (i32, i32, i32) {
    %c0_i32 = arith.constant 0 : i32
    %c0_i32_0 = arith.constant 0 : i32
    return %arg0, %c0_i32, %arg1 : i32, i32, i32
  }
  func.func @transform_4(%arg0: i32, %arg1: i32) -> (i32, i32, i32, i32) {
    %c0_i32 = arith.constant 0 : i32
    %c0_i32_0 = arith.constant 0 : i32
    %c0_i32_1 = arith.constant 0 : i32
    return %arg0, %arg1, %c0_i32, %c0_i32_0 : i32, i32, i32, i32
  }
}

module attributes {stable_mosaic.version = 11 : i64} {
  func.func @_bn_relu3_kernel(%arg0: i32, %arg1: i32, %arg2: memref<1x8x256xf32, #tpu.memory_space<vmem>>, %arg3: memref<8x6xf32, #tpu.memory_space<vmem>>, %arg4: memref<1x8x256xf32, #tpu.memory_space<vmem>>, %arg5: memref<1x8x256xf32, #tpu.memory_space<vmem>>, %arg6: memref<1x8x256xf32, #tpu.memory_space<vmem>>) attributes {dimension_semantics = [#tpu.dimension_semantics<parallel>, #tpu.dimension_semantics<parallel>], iteration_bounds = array<i64: 2, 2>, scalar_prefetch = 0 : i64, scratch_operands = 0 : i64, tpu.core_type = #tpu.core_type<tc>, window_params = [{transform_indices = @transform_0, window_bounds = array<i64: 1, 8, 256>}, {pipeline_mode = #tpu.pipeline_mode<synchronous>, transform_indices = @transform_1, window_bounds = array<i64: 8, 6>}, {transform_indices = @transform_2, window_bounds = array<i64: 1, 8, 256>}, {transform_indices = @transform_3, window_bounds = array<i64: 1, 8, 256>}, {transform_indices = @transform_4, window_bounds = array<i64: 1, 8, 256>}]} {
    %c0 = arith.constant 0 : index
    %c0_0 = arith.constant 0 : index
    %c0_1 = arith.constant 0 : index
    %0 = vector.load %arg2[%c0, %c0_0, %c0_1] : memref<1x8x256xf32, #tpu.memory_space<vmem>>, vector<1x8x256xf32>
    %1 = vector.shape_cast %0 : vector<1x8x256xf32> to vector<8x256xf32>
    %c0_2 = arith.constant 0 : index
    %c0_3 = arith.constant 0 : index
    %2 = vector.load %arg3[%c0_2, %c0_3] : memref<8x6xf32, #tpu.memory_space<vmem>>, vector<8x1xf32>
    %3 = vector.broadcast %2 : vector<8x1xf32> to vector<8x256xf32>
    %4 = arith.mulf %1, %3 : vector<8x256xf32>
    %c0_4 = arith.constant 0 : index
    %c1 = arith.constant 1 : index
    %5 = vector.load %arg3[%c0_4, %c1] : memref<8x6xf32, #tpu.memory_space<vmem>>, vector<8x1xf32>
    %6 = vector.broadcast %5 : vector<8x1xf32> to vector<8x256xf32>
    %7 = arith.addf %4, %6 : vector<8x256xf32>
    %cst = arith.constant 0.000000e+00 : f32
    %8 = vector.broadcast %cst : f32 to vector<8x256xf32>
    %9 = arith.maximumf %7, %8 : vector<8x256xf32>
    %c0_5 = arith.constant 0 : index
    %c0_6 = arith.constant 0 : index
    %c0_7 = arith.constant 0 : index
    %10 = vector.load %arg4[%c0_5, %c0_6, %c0_7] : memref<1x8x256xf32, #tpu.memory_space<vmem>>, vector<1x8x256xf32>
    %11 = vector.shape_cast %10 : vector<1x8x256xf32> to vector<8x256xf32>
    %12 = vector.shape_cast %9 : vector<8x256xf32> to vector<1x8x256xf32>
    tpu.vector_store %arg4[%c0_5, %c0_6, %c0_7], %12 {strides = array<i32>} : memref<1x8x256xf32, #tpu.memory_space<vmem>>, vector<1x8x256xf32>,
    %c0_8 = arith.constant 0 : index
    %c2 = arith.constant 2 : index
    %13 = vector.load %arg3[%c0_8, %c2] : memref<8x6xf32, #tpu.memory_space<vmem>>, vector<8x1xf32>
    %14 = vector.broadcast %13 : vector<8x1xf32> to vector<8x256xf32>
    %15 = arith.mulf %1, %14 : vector<8x256xf32>
    %c0_9 = arith.constant 0 : index
    %c3 = arith.constant 3 : index
    %16 = vector.load %arg3[%c0_9, %c3] : memref<8x6xf32, #tpu.memory_space<vmem>>, vector<8x1xf32>
    %17 = vector.broadcast %16 : vector<8x1xf32> to vector<8x256xf32>
    %18 = arith.addf %15, %17 : vector<8x256xf32>
    %cst_10 = arith.constant 0.000000e+00 : f32
    %19 = vector.broadcast %cst_10 : f32 to vector<8x256xf32>
    %20 = arith.maximumf %18, %19 : vector<8x256xf32>
    %c0_11 = arith.constant 0 : index
    %c0_12 = arith.constant 0 : index
    %c0_13 = arith.constant 0 : index
    %21 = vector.load %arg5[%c0_11, %c0_12, %c0_13] : memref<1x8x256xf32, #tpu.memory_space<vmem>>, vector<1x8x256xf32>
    %22 = vector.shape_cast %21 : vector<1x8x256xf32> to vector<8x256xf32>
    %23 = vector.shape_cast %20 : vector<8x256xf32> to vector<1x8x256xf32>
    tpu.vector_store %arg5[%c0_11, %c0_12, %c0_13], %23 {strides = array<i32>} : memref<1x8x256xf32, #tpu.memory_space<vmem>>, vector<1x8x256xf32>,
    %c0_14 = arith.constant 0 : index
    %c4 = arith.constant 4 : index
    %24 = vector.load %arg3[%c0_14, %c4] : memref<8x6xf32, #tpu.memory_space<vmem>>, vector<8x1xf32>
    %25 = vector.broadcast %24 : vector<8x1xf32> to vector<8x256xf32>
    %26 = arith.mulf %1, %25 : vector<8x256xf32>
    %c0_15 = arith.constant 0 : index
    %c5 = arith.constant 5 : index
    %27 = vector.load %arg3[%c0_15, %c5] : memref<8x6xf32, #tpu.memory_space<vmem>>, vector<8x1xf32>
    %28 = vector.broadcast %27 : vector<8x1xf32> to vector<8x256xf32>
    %29 = arith.addf %26, %28 : vector<8x256xf32>
    %cst_16 = arith.constant 0.000000e+00 : f32
    %30 = vector.broadcast %cst_16 : f32 to vector<8x256xf32>
    %31 = arith.maximumf %29, %30 : vector<8x256xf32>
    %c0_17 = arith.constant 0 : index
    %c0_18 = arith.constant 0 : index
    %c0_19 = arith.constant 0 : index
    %32 = vector.load %arg6[%c0_17, %c0_18, %c0_19] : memref<1x8x256xf32, #tpu.memory_space<vmem>>, vector<1x8x256xf32>
    %33 = vector.shape_cast %32 : vector<1x8x256xf32> to vector<8x256xf32>
    %34 = vector.shape_cast %31 : vector<8x256xf32> to vector<1x8x256xf32>
    tpu.vector_store %arg6[%c0_17, %c0_18, %c0_19], %34 {strides = array<i32>} : memref<1x8x256xf32, #tpu.memory_space<vmem>>, vector<1x8x256xf32>,
    return
  }
  func.func @transform_0(%arg0: i32, %arg1: i32) -> (i32, i32, i32) {
    %c0_i32 = arith.constant 0 : i32
    %c0_i32_0 = arith.constant 0 : i32
    return %arg0, %c0_i32, %arg1 : i32, i32, i32
  }
  func.func @transform_1(%arg0: i32, %arg1: i32) -> (i32, i32) {
    %c0_i32 = arith.constant 0 : i32
    %c0_i32_0 = arith.constant 0 : i32
    %c0_i32_1 = arith.constant 0 : i32
    return %c0_i32, %c0_i32_0 : i32, i32
  }
  func.func @transform_2(%arg0: i32, %arg1: i32) -> (i32, i32, i32) {
    %c0_i32 = arith.constant 0 : i32
    %c0_i32_0 = arith.constant 0 : i32
    return %arg0, %c0_i32, %arg1 : i32, i32, i32
  }
  func.func @transform_3(%arg0: i32, %arg1: i32) -> (i32, i32, i32) {
    %c0_i32 = arith.constant 0 : i32
    %c0_i32_0 = arith.constant 0 : i32
    return %arg0, %c0_i32, %arg1 : i32, i32, i32
  }
  func.func @transform_4(%arg0: i32, %arg1: i32) -> (i32, i32, i32) {
    %c0_i32 = arith.constant 0 : i32
    %c0_i32_0 = arith.constant 0 : i32
    return %arg0, %c0_i32, %arg1 : i32, i32, i32
  }
}

module attributes {stable_mosaic.version = 11 : i64} {
  func.func @kernel(%arg0: i32, %arg1: i32, %arg2: memref<1x16x256xf32, #tpu.memory_space<vmem>>, %arg3: memref<1x16x256xf32, #tpu.memory_space<vmem>>, %arg4: memref<1x16x256xf32, #tpu.memory_space<vmem>>, %arg5: memref<16x3xf32, #tpu.memory_space<vmem>>, %arg6: memref<1x16x256xf32, #tpu.memory_space<vmem>>, %arg7: memref<1x1x16x2xf32, #tpu.memory_space<vmem>>) attributes {dimension_semantics = [#tpu.dimension_semantics<parallel>, #tpu.dimension_semantics<parallel>], iteration_bounds = array<i64: 2, 2>, scalar_prefetch = 0 : i64, scratch_operands = 0 : i64, tpu.core_type = #tpu.core_type<tc>, window_params = [{transform_indices = @transform_0, window_bounds = array<i64: 1, 16, 256>}, {transform_indices = @transform_1, window_bounds = array<i64: 1, 16, 256>}, {transform_indices = @transform_2, window_bounds = array<i64: 1, 16, 256>}, {pipeline_mode = #tpu.pipeline_mode<synchronous>, transform_indices = @transform_3, window_bounds = array<i64: 16, 3>}, {transform_indices = @transform_4, window_bounds = array<i64: 1, 16, 256>}, {transform_indices = @transform_5, window_bounds = array<i64: 1, 1, 16, 2>}]} {
    %c0 = arith.constant 0 : index
    %c0_0 = arith.constant 0 : index
    %c0_1 = arith.constant 0 : index
    %0 = vector.load %arg2[%c0, %c0_0, %c0_1] : memref<1x16x256xf32, #tpu.memory_space<vmem>>, vector<1x16x256xf32>
    %1 = vector.shape_cast %0 : vector<1x16x256xf32> to vector<16x256xf32>
    %c0_2 = arith.constant 0 : index
    %c0_3 = arith.constant 0 : index
    %2 = vector.load %arg5[%c0_2, %c0_3] : memref<16x3xf32, #tpu.memory_space<vmem>>, vector<16x1xf32>
    %3 = vector.broadcast %2 : vector<16x1xf32> to vector<16x256xf32>
    %4 = arith.mulf %1, %3 : vector<16x256xf32>
    %c0_4 = arith.constant 0 : index
    %c0_5 = arith.constant 0 : index
    %c0_6 = arith.constant 0 : index
    %5 = vector.load %arg3[%c0_4, %c0_5, %c0_6] : memref<1x16x256xf32, #tpu.memory_space<vmem>>, vector<1x16x256xf32>
    %6 = vector.shape_cast %5 : vector<1x16x256xf32> to vector<16x256xf32>
    %c0_7 = arith.constant 0 : index
    %c1 = arith.constant 1 : index
    %7 = vector.load %arg5[%c0_7, %c1] : memref<16x3xf32, #tpu.memory_space<vmem>>, vector<16x1xf32>
    %8 = vector.broadcast %7 : vector<16x1xf32> to vector<16x256xf32>
    %9 = arith.mulf %6, %8 : vector<16x256xf32>
    %10 = arith.addf %4, %9 : vector<16x256xf32>
    %c0_8 = arith.constant 0 : index
    %c0_9 = arith.constant 0 : index
    %c0_10 = arith.constant 0 : index
    %11 = vector.load %arg4[%c0_8, %c0_9, %c0_10] : memref<1x16x256xf32, #tpu.memory_space<vmem>>, vector<1x16x256xf32>
    %12 = vector.shape_cast %11 : vector<1x16x256xf32> to vector<16x256xf32>
    %c0_11 = arith.constant 0 : index
    %c2 = arith.constant 2 : index
    %13 = vector.load %arg5[%c0_11, %c2] : memref<16x3xf32, #tpu.memory_space<vmem>>, vector<16x1xf32>
    %14 = vector.broadcast %13 : vector<16x1xf32> to vector<16x256xf32>
    %15 = arith.mulf %12, %14 : vector<16x256xf32>
    %16 = arith.addf %10, %15 : vector<16x256xf32>
    %c0_12 = arith.constant 0 : index
    %c0_13 = arith.constant 0 : index
    %c0_14 = arith.constant 0 : index
    %17 = vector.load %arg6[%c0_12, %c0_13, %c0_14] : memref<1x16x256xf32, #tpu.memory_space<vmem>>, vector<1x16x256xf32>
    %18 = vector.shape_cast %17 : vector<1x16x256xf32> to vector<16x256xf32>
    %19 = vector.shape_cast %16 : vector<16x256xf32> to vector<1x16x256xf32>
    tpu.vector_store %arg6[%c0_12, %c0_13, %c0_14], %19 {strides = array<i32>} : memref<1x16x256xf32, #tpu.memory_space<vmem>>, vector<1x16x256xf32>,
    %cst = arith.constant dense<0.000000e+00> : vector<16xf32>
    %20 = vector.multi_reduction <add>, %16, %cst [1] : vector<16x256xf32> to vector<16xf32>
    %21 = vector.shape_cast %20 : vector<16xf32> to vector<16x1xf32>
    %22 = arith.mulf %16, %16 : vector<16x256xf32>
    %cst_15 = arith.constant dense<0.000000e+00> : vector<16xf32>
    %23 = vector.multi_reduction <add>, %22, %cst_15 [1] : vector<16x256xf32> to vector<16xf32>
    %24 = vector.shape_cast %23 : vector<16xf32> to vector<16x1xf32>
    %25 = tpu.concatenate %21, %24 in 1 : vector<16x1xf32>, vector<16x1xf32> -> vector<16x2xf32>
    %c0_16 = arith.constant 0 : index
    %c0_17 = arith.constant 0 : index
    %c0_18 = arith.constant 0 : index
    %c0_19 = arith.constant 0 : index
    %26 = vector.load %arg7[%c0_16, %c0_17, %c0_18, %c0_19] : memref<1x1x16x2xf32, #tpu.memory_space<vmem>>, vector<1x1x16x2xf32>
    %27 = vector.shape_cast %26 : vector<1x1x16x2xf32> to vector<16x2xf32>
    %28 = vector.shape_cast %25 : vector<16x2xf32> to vector<1x1x16x2xf32>
    tpu.vector_store %arg7[%c0_16, %c0_17, %c0_18, %c0_19], %28 {strides = array<i32>} : memref<1x1x16x2xf32, #tpu.memory_space<vmem>>, vector<1x1x16x2xf32>,
    return
  }
  func.func @transform_0(%arg0: i32, %arg1: i32) -> (i32, i32, i32) {
    %c0_i32 = arith.constant 0 : i32
    %c0_i32_0 = arith.constant 0 : i32
    return %arg0, %c0_i32, %arg1 : i32, i32, i32
  }
  func.func @transform_1(%arg0: i32, %arg1: i32) -> (i32, i32, i32) {
    %c0_i32 = arith.constant 0 : i32
    %c0_i32_0 = arith.constant 0 : i32
    return %arg0, %c0_i32, %arg1 : i32, i32, i32
  }
  func.func @transform_2(%arg0: i32, %arg1: i32) -> (i32, i32, i32) {
    %c0_i32 = arith.constant 0 : i32
    %c0_i32_0 = arith.constant 0 : i32
    return %arg0, %c0_i32, %arg1 : i32, i32, i32
  }
  func.func @transform_3(%arg0: i32, %arg1: i32) -> (i32, i32) {
    %c0_i32 = arith.constant 0 : i32
    %c0_i32_0 = arith.constant 0 : i32
    %c0_i32_1 = arith.constant 0 : i32
    return %c0_i32, %c0_i32_0 : i32, i32
  }
  func.func @transform_4(%arg0: i32, %arg1: i32) -> (i32, i32, i32) {
    %c0_i32 = arith.constant 0 : i32
    %c0_i32_0 = arith.constant 0 : i32
    return %arg0, %c0_i32, %arg1 : i32, i32, i32
  }
  func.func @transform_5(%arg0: i32, %arg1: i32) -> (i32, i32, i32, i32) {
    %c0_i32 = arith.constant 0 : i32
    %c0_i32_0 = arith.constant 0 : i32
    %c0_i32_1 = arith.constant 0 : i32
    return %arg0, %arg1, %c0_i32, %c0_i32_0 : i32, i32, i32, i32
  }
}

module attributes {stable_mosaic.version = 11 : i64} {
  func.func @_bn_relu_kernel(%arg0: i32, %arg1: i32, %arg2: memref<1x16x256xf32, #tpu.memory_space<vmem>>, %arg3: memref<16x2xf32, #tpu.memory_space<vmem>>, %arg4: memref<1x16x256xf32, #tpu.memory_space<vmem>>) attributes {dimension_semantics = [#tpu.dimension_semantics<parallel>, #tpu.dimension_semantics<parallel>], iteration_bounds = array<i64: 2, 2>, scalar_prefetch = 0 : i64, scratch_operands = 0 : i64, tpu.core_type = #tpu.core_type<tc>, window_params = [{transform_indices = @transform_0, window_bounds = array<i64: 1, 16, 256>}, {pipeline_mode = #tpu.pipeline_mode<synchronous>, transform_indices = @transform_1, window_bounds = array<i64: 16, 2>}, {transform_indices = @transform_2, window_bounds = array<i64: 1, 16, 256>}]} {
    %c0 = arith.constant 0 : index
    %c0_0 = arith.constant 0 : index
    %c0_1 = arith.constant 0 : index
    %0 = vector.load %arg2[%c0, %c0_0, %c0_1] : memref<1x16x256xf32, #tpu.memory_space<vmem>>, vector<1x16x256xf32>
    %1 = vector.shape_cast %0 : vector<1x16x256xf32> to vector<16x256xf32>
    %c0_2 = arith.constant 0 : index
    %c0_3 = arith.constant 0 : index
    %2 = vector.load %arg3[%c0_2, %c0_3] : memref<16x2xf32, #tpu.memory_space<vmem>>, vector<16x1xf32>
    %3 = vector.broadcast %2 : vector<16x1xf32> to vector<16x256xf32>
    %4 = arith.mulf %1, %3 : vector<16x256xf32>
    %c0_4 = arith.constant 0 : index
    %c1 = arith.constant 1 : index
    %5 = vector.load %arg3[%c0_4, %c1] : memref<16x2xf32, #tpu.memory_space<vmem>>, vector<16x1xf32>
    %6 = vector.broadcast %5 : vector<16x1xf32> to vector<16x256xf32>
    %7 = arith.addf %4, %6 : vector<16x256xf32>
    %cst = arith.constant 0.000000e+00 : f32
    %8 = vector.broadcast %cst : f32 to vector<16x256xf32>
    %9 = arith.maximumf %7, %8 : vector<16x256xf32>
    %c0_5 = arith.constant 0 : index
    %c0_6 = arith.constant 0 : index
    %c0_7 = arith.constant 0 : index
    %10 = vector.load %arg4[%c0_5, %c0_6, %c0_7] : memref<1x16x256xf32, #tpu.memory_space<vmem>>, vector<1x16x256xf32>
    %11 = vector.shape_cast %10 : vector<1x16x256xf32> to vector<16x256xf32>
    %12 = vector.shape_cast %9 : vector<16x256xf32> to vector<1x16x256xf32>
    tpu.vector_store %arg4[%c0_5, %c0_6, %c0_7], %12 {strides = array<i32>} : memref<1x16x256xf32, #tpu.memory_space<vmem>>, vector<1x16x256xf32>,
    return
  }
  func.func @transform_0(%arg0: i32, %arg1: i32) -> (i32, i32, i32) {
    %c0_i32 = arith.constant 0 : i32
    %c0_i32_0 = arith.constant 0 : i32
    return %arg0, %c0_i32, %arg1 : i32, i32, i32
  }
  func.func @transform_1(%arg0: i32, %arg1: i32) -> (i32, i32) {
    %c0_i32 = arith.constant 0 : i32
    %c0_i32_0 = arith.constant 0 : i32
    %c0_i32_1 = arith.constant 0 : i32
    return %c0_i32, %c0_i32_0 : i32, i32
  }
  func.func @transform_2(%arg0: i32, %arg1: i32) -> (i32, i32, i32) {
    %c0_i32 = arith.constant 0 : i32
    %c0_i32_0 = arith.constant 0 : i32
    return %arg0, %c0_i32, %arg1 : i32, i32, i32
  }
}

</mosaic_0001>

<llo_original>
// kernel: dmf_unit_forward.6
$region0: #{dmf_unit_forward.6}
  #allocation0 [shape = 'u32[]', space=smem, size = 0x4, offset = 0x4, fixed_abs, tag = 'smem constant byte address 0x4 - core index']
  #allocation1 [shape = 'u32[72,128]{1,0:T(1,128)}', space=vmem, size = 0x9000, scoped, tag = 'internal scratch']
  %s0 = inlined_call_operand.vmem [shape: f32[2,2,512], index: 0, kind: input, shape index: {}]
  %s1 = inlined_call_operand.vmem [shape: f32[2,2], index: 1, kind: input, shape index: {}]
  %s2 = inlined_call_operand.vmem [shape: f32[8,2], index: 2, kind: input, shape index: {}]
  %s3 = inlined_call_operand.vmem [shape: f32[2,8,512], index: 3, kind: output, shape index: {0}]
  %s4 = inlined_call_operand.vmem [shape: f32[2,2,8,2], index: 4, kind: output, shape index: {1}]
  %5 = xla_tuple %s3, %s4
  %s6 = sld [smem:[#allocation0]]
  $region53: #{dmf_unit_forward.6} parent=0
    _
  %s8 = ssub.s32 1, %s6
  %s9 = scalar_select 0, %s8, %s6
  loop: start=0, step=1, limit=6
  $region2: #{dmf_unit_forward.6} parent=0 // loop_pre_header
    _
  $region3: #{dmf_unit_forward.6} parent=0 // loop_header
    %s11 = sphi 0, %s15
    %p12 = scmp.ge.s32.totalorder %s11, 6
    %s18 = sphi 0, %s30
    %s19 = sphi 0, %s26
    %s20 = sphi 0, %s18
    %s21 = sphi 0, %s19
    %s22 = sphi 0, %s20
    %s23 = sphi 0, %s21
    %s35 = sphi 0, %s37
    %s38 = sphi 0, %s35
    %s39 = sphi 0, %s38
    %s55 = sphi 0, %s39
    %s59 = sphi 0, %s59
    %s61 = sphi 0, %s59
    %s62 = sphi 0, %s61
    %s76 = sphi 0, %s62
    %s80 = sphi 0, %s80
    %s82 = sphi 0, %s80
    %s83 = sphi 0, %s82
    %s97 = sphi 0, %s83
    %s105 = sphi 0, %s107
    %s108 = sphi 0, %s105
    %s109 = sphi 0, %s108
    %s125 = sphi 0, %s109
    %s133 = sphi 0, %s135
    %s136 = sphi 0, %s133
    %s137 = sphi 0, %s136
    %s153 = sphi 0, %s137
  $region4: #{dmf_unit_forward.6} parent=0 // loop_header_branch
    %14 = sbr.rel (%p12) target = $region8
  $region5: #{dmf_unit_forward.6} parent=0 // loop_body
    %s16 = ssub.s32 %s11, 1
    %s17 = ssub.s32 %s11, 2
    %s24 = sadd.s32 1, %s19
    %p25 = scmp.ge.s32.totalorder %s24, 2
    %s26 = scalar_select %p25, 0, %s24
    %s27 = sadd.s32 1, %s18
    %s28 = scalar_select %p25, %s27, %s18
    %p29 = scmp.ge.s32.totalorder %s28, 2
    %s30 = scalar_select %p29, 0, %s28
    %s31 = ssub.s32 %s18, %s30
    %s32 = ssub.s32 %s19, %s26
    %s33 = sor.u32 %s31, %s32
    %p34 = scmp.eq.s32.totalorder %s33, 0
    %s36 = sadd.s32 %s35, 1
    %s37 = scalar_select %p34, %s35, %s36
    %p40 = pneg %p34
    %p41 = scmp.eq.s32.totalorder %s11, 3
    %p42 = por %p40, %p41
    %p43 = scmp.ne.s32.totalorder %s35, %s38
    %p44 = scmp.eq.s32.totalorder %s11, 0
    %p45 = por %p43, %p44
    %p46 = scmp.ne.s32.totalorder %s35, %s38
    %p47 = scmp.eq.s32.totalorder %s16, 3
    %p48 = por %p46, %p47
    %p49 = scmp.ne.s32.totalorder %s38, %s39
    %p50 = scmp.eq.s32.totalorder %s16, 0
    %p51 = por %p49, %p50
    %p52 = scmp.ne.s32.totalorder %s38, %s39
    %p53 = scmp.eq.s32.totalorder %s17, 3
    %p54 = por %p52, %p53
    %p56 = scmp.ne.s32.totalorder %s39, %s55
    %p57 = scmp.eq.s32.totalorder %s17, 0
    %p58 = por %p56, %p57
    %s60 = sadd.s32 %s59, 1
    %p63 = scmp.eq.s32.totalorder %s11, 3
    %p64 = scmp.ne.s32.totalorder %s59, %s61
    %p65 = scmp.eq.s32.totalorder %s11, 0
    %p66 = por %p64, %p65
    %p67 = scmp.ne.s32.totalorder %s59, %s61
    %p68 = scmp.eq.s32.totalorder %s16, 3
    %p69 = por %p67, %p68
    %p70 = scmp.ne.s32.totalorder %s61, %s62
    %p71 = scmp.eq.s32.totalorder %s16, 0
    %p72 = por %p70, %p71
    %p73 = scmp.ne.s32.totalorder %s61, %s62
    %p74 = scmp.eq.s32.totalorder %s17, 3
    %p75 = por %p73, %p74
    %p77 = scmp.ne.s32.totalorder %s62, %s76
    %p78 = scmp.eq.s32.totalorder %s17, 0
    %p79 = por %p77, %p78
    %s81 = sadd.s32 %s80, 1
    %p84 = scmp.eq.s32.totalorder %s11, 3
    %p85 = scmp.ne.s32.totalorder %s80, %s82
    %p86 = scmp.eq.s32.totalorder %s11, 0
    %p87 = por %p85, %p86
    %p88 = scmp.ne.s32.totalorder %s80, %s82
    %p89 = scmp.eq.s32.totalorder %s16, 3
    %p90 = por %p88, %p89
    %p91 = scmp.ne.s32.totalorder %s82, %s83
    %p92 = scmp.eq.s32.totalorder %s16, 0
    %p93 = por %p91, %p92
    %p94 = scmp.ne.s32.totalorder %s82, %s83
    %p95 = scmp.eq.s32.totalorder %s17, 3
    %p96 = por %p94, %p95
    %p98 = scmp.ne.s32.totalorder %s83, %s97
    %p99 = scmp.eq.s32.totalorder %s17, 0
    %p100 = por %p98, %p99
    %s101 = ssub.s32 %s18, %s30
    %s102 = ssub.s32 %s19, %s26
    %s103 = sor.u32 %s101, %s102
    %p104 = scmp.eq.s32.totalorder %s103, 0
    %s106 = sadd.s32 %s105, 1
    %s107 = scalar_select %p104, %s105, %s106
    %p110 = pneg %p104
    %p111 = scmp.eq.s32.totalorder %s11, 3
    %p112 = por %p110, %p111
    %p113 = scmp.ne.s32.totalorder %s105, %s108
    %p114 = scmp.eq.s32.totalorder %s11, 0
    %p115 = por %p113, %p114
    %p116 = scmp.ne.s32.totalorder %s105, %s108
    %p117 = scmp.eq.s32.totalorder %s16, 3
    %p118 = por %p116, %p117
    %p119 = scmp.ne.s32.totalorder %s108, %s109
    %p120 = scmp.eq.s32.totalorder %s16, 0
    %p121 = por %p119, %p120
    %p122 = scmp.ne.s32.totalorder %s108, %s109
    %p123 = scmp.eq.s32.totalorder %s17, 3
    %p124 = por %p122, %p123
    %p126 = scmp.ne.s32.totalorder %s109, %s125
    %p127 = scmp.eq.s32.totalorder %s17, 0
    %p128 = por %p126, %p127
    %s129 = ssub.s32 %s18, %s30
    %s130 = ssub.s32 %s19, %s26
    %s131 = sor.u32 %s129, %s130
    %p132 = scmp.eq.s32.totalorder %s131, 0
    %s134 = sadd.s32 %s133, 1
    %s135 = scalar_select %p132, %s133, %s134
    %p138 = pneg %p132
    %p139 = scmp.eq.s32.totalorder %s11, 3
    %p140 = por %p138, %p139
    %p141 = scmp.ne.s32.totalorder %s133, %s136
    %p142 = scmp.eq.s32.totalorder %s11, 0
    %p143 = por %p141, %p142
    %p144 = scmp.ne.s32.totalorder %s133, %s136
    %p145 = scmp.eq.s32.totalorder %s16, 3
    %p146 = por %p144, %p145
    %p147 = scmp.ne.s32.totalorder %s136, %s137
    %p148 = scmp.eq.s32.totalorder %s16, 0
    %p149 = por %p147, %p148
    %p150 = scmp.ne.s32.totalorder %s136, %s137
    %p151 = scmp.eq.s32.totalorder %s17, 3
    %p152 = por %p150, %p151
    %p154 = scmp.ne.s32.totalorder %s137, %s153
    %p155 = scmp.eq.s32.totalorder %s17, 0
    %p156 = por %p154, %p155
    %p157 = scmp.le.s32.totalorder 1, %s11
    %p158 = scmp.lt.s32.totalorder %s11, 5
    %p159 = pnand %p157, %p158
    %p160 = pneg %p159
    // Predicated region
    $region9: #{dmf_unit_forward.6} parent=5 // pred_check
      _
    $region10: #{dmf_unit_forward.6} parent=5 // pred_check_branch
      %162 = sbr.rel (%p159) target = $region12
    $region11: #{dmf_unit_forward.6} parent=5 // pred_region
      %s163 = ssub.s32 %s11, 1
      // Predicated region
      $region13: #{dmf_unit_forward.6} parent=11 // pred_check
        %p164 = pneg %p72
      $region14: #{dmf_unit_forward.6} parent=11 // pred_check_branch
        %166 = sbr.rel (%p164) target = $region16
      $region15: #{dmf_unit_forward.6} parent=11 // pred_region
        _
      $region16: #{dmf_unit_forward.6} parent=11 // pred_fallthru
        _
      // Predicated region
      $region17: #{dmf_unit_forward.6} parent=11 // pred_check
        %p167 = pneg %p93
      $region18: #{dmf_unit_forward.6} parent=11 // pred_check_branch
        %169 = sbr.rel (%p167) target = $region20
      $region19: #{dmf_unit_forward.6} parent=11 // pred_region
        _
      $region20: #{dmf_unit_forward.6} parent=11 // pred_fallthru
        _
    $region12: #{dmf_unit_forward.6} parent=5 // pred_fallthru
      _
    %p170 = scmp.lt.s32.totalorder %s11, 4
    // Predicated region
    $region21: #{dmf_unit_forward.6} parent=5 // pred_check
      %p171 = pneg %p170
    $region22: #{dmf_unit_forward.6} parent=5 // pred_check_branch
      %173 = sbr.rel (%p171) target = $region24
    $region23: #{dmf_unit_forward.6} parent=5 // pred_region
      // Predicated region
      $region25: #{dmf_unit_forward.6} parent=23 // pred_check
        %p174 = pneg %p45
      $region26: #{dmf_unit_forward.6} parent=23 // pred_check_branch
        %176 = sbr.rel (%p174) target = $region28
      $region27: #{dmf_unit_forward.6} parent=23 // pred_region
        %s177 = smul.u32 2, %s19
        %p178 = scmp.lt.s32.totalorder %s18, 1
        %s179 = scalar_select %p178, %s18, 1
        %p180 = scmp.lt.s32.totalorder %s177, 3
        %s181 = scalar_select %p180, %s177, 3
        %s182 = smul.addr %s179, 4
        %s183 = sadd.s32 %s181, %s182
        %s184 = smul.addr %s183, 2
        %s185 = scalar_lea.vmem %s0, %s184
        %s186 = smul.u32 2, %s19
      $region28: #{dmf_unit_forward.6} parent=23 // pred_fallthru
        _
    $region24: #{dmf_unit_forward.6} parent=5 // pred_fallthru
      _
    %p187 = scmp.le.s32.totalorder 1, %s11
    %p188 = scmp.lt.s32.totalorder %s11, 5
    %p189 = pnand %p187, %p188
    %p190 = pneg %p189
    // Predicated region
    $region29: #{dmf_unit_forward.6} parent=5 // pred_check
      _
    $region30: #{dmf_unit_forward.6} parent=5 // pred_check_branch
      %192 = sbr.rel (%p189) target = $region32
    $region31: #{dmf_unit_forward.6} parent=5 // pred_region
      %s193 = ssub.s32 %s11, 1
      %s194 = smul.u32 2, %s21
      %p195 = scmp.lt.s32.totalorder %s20, 1
      %s196 = scalar_select %p195, %s20, 1
      %p197 = scmp.lt.s32.totalorder %s194, 3
      %s198 = scalar_select %p197, %s194, 3
      %s199 = smul.addr %s196, 4
      %s200 = sadd.s32 %s198, %s199
      %s201 = smul.addr %s200, 2
      %s202 = scalar_lea.vmem %s0, %s201
      %p203 = pneg %p51
      %p204 = pneg %p48
      %p205 = pneg %p72
      %p206 = pneg %p69
      %p207 = pneg %p93
      %p208 = pneg %p90
      %p209 = pneg %p121
      %p210 = pneg %p118
      %s211 = smul.u32 2, %s21
      %p212 = scmp.lt.s32.totalorder %s20, 1
      %s213 = scalar_select %p212, %s20, 1
      %p214 = scmp.lt.s32.totalorder %s211, 3
      %s215 = scalar_select %p214, %s211, 3
      %s216 = smul.addr %s213, 4
      %s217 = sadd.s32 %s215, %s216
      %s218 = smul.addr %s217, 8
      %s219 = scalar_lea.vmem %s3, %s218
      %p220 = pneg %p149
      %p221 = pneg %p146
      %p222 = scmp.lt.s32.totalorder %s20, 1
      %s223 = scalar_select %p222, %s20, 1
      %p224 = scmp.lt.s32.totalorder %s21, 1
      %s225 = scalar_select %p224, %s21, 1
      %s226 = smul.addr %s223, 2
      %s227 = sadd.s32 %s225, %s226
      %s228 = smul.addr %s227, 8
      %s229 = scalar_lea.vmem %s4, %s228
      %s230 = smul.u32 2, %s21
      %p231 = scmp.lt.s32.totalorder %s20, 1
      %s232 = scalar_select %p231, %s20, 1
      %p233 = scmp.lt.s32.totalorder %s230, 3
      %s234 = scalar_select %p233, %s230, 3
      %s235 = smul.addr %s232, 4
      %s236 = sadd.s32 %s234, %s235
      %s237 = smul.addr %s236, 2
      %s238 = scalar_lea.vmem %s0, %s237
      %s239 = smul.u32 2, %s21
      %s240 = smul.u32 2, %s21
      %p241 = scmp.lt.s32.totalorder %s20, 1
      %s242 = scalar_select %p241, %s20, 1
      %p243 = scmp.lt.s32.totalorder %s240, 3
      %s244 = scalar_select %p243, %s240, 3
      %s245 = smul.addr %s242, 4
      %s246 = sadd.s32 %s244, %s245
      %s247 = smul.addr %s246, 8
      %s248 = scalar_lea.vmem %s3, %s247
      %s249 = smul.u32 2, %s21
      %p250 = scmp.lt.s32.totalorder %s20, 1
      %s251 = scalar_select %p250, %s20, 1
      %p252 = scmp.lt.s32.totalorder %s21, 1
      %s253 = scalar_select %p252, %s21, 1
      %s254 = smul.addr %s251, 2
      %s255 = sadd.s32 %s253, %s254
      %s256 = smul.addr %s255, 8
      %s257 = scalar_lea.vmem %s4, %s256
      %v258 = vld [vmem:[%s238] sm:$0xf]
      %v259 = vld [vmem:[%s1] sm:$0x3]
      %261 = vset.pattern.permute.xlu0 0
      %262 = vperm.xlu0 %261, %v259
      %v263 = vpop.permute.xlu0 %262
      %v265 = vunpack.c.l.s4 269488144
      %v266 = vunpack.c.0.s8 %v265
      %v267 = vperm.slane %v263, %v266
      %v269 = vmul.f32 %v258, %v267
      %270 = vset.pattern.permute.xlu0 1
      %271 = vperm.xlu0 %270, %v259
      %v272 = vpop.permute.xlu0 %271
      %v274 = vunpack.c.l.s4 269488144
      %v275 = vunpack.c.0.s8 %v274
      %v276 = vperm.slane %v272, %v275
      %v278 = vadd.f32 %v269, %v276
      %v279 = vmax.f32 %v278, 0.0
      %v280 = vld [vmem:[%s2] sm:$0xff]
      %282 = vst [vmem:[#allocation1] ss:$4 sm:$0xff] %v279
      %v283 = vld.sshfl [vmem:[#allocation1] sm:$0xff pattern:$0x73625140]
      %v284 = vld.sshfl [vmem:[#allocation1 + $0x8] sm:$0xff pattern:$0x73625140]
      %vm285 = vcmask 15360
      %v287 = vsel %vm285, %v280, 0
      %vm289 = vcmask 1041408
      %v290 = vsel %vm289, %v283, 0
      %v292 = vsel %vm289, %v284, 0
      %294 = vmatpush.msra.mxu0 0.0
      %295 = vmatpush.msra.mxu0 0.0
      %296 = vmatpush.msra.mxu0 0.0
      %297 = vmatpush.msra.mxu0 0.0
      %298 = vmatpush.msra.mxu0 0.0
      %299 = vmatpush.msra.mxu0 0.0
      %300 = vmatpush.msra.mxu0 0.0
      %301 = vmatpush.msra.mxu0 0.0
      %302 = vmatpush.msra.mxu0 0.0
      %303 = vmatpush.msra.mxu0 0.0
      %304 = vmatpush.msra.mxu0 0.0
      %305 = vmatpush.msra.mxu0 0.0
      %306 = vmatpush.msra.mxu0 0.0
      %307 = vmatpush.msra.mxu0 0.0
      %308 = vmatpush.msra.mxu0 0.0
      %v309 = vand.u32 %v290, 4294901760
      %310 = vmatpush.msra.mxu0 %v309
      %v311 = vand.u32 %v287, 4294901760
      %v312 = vsub.f32 %v287, %v311
      %v313 = vand.u32 %v312, 4294901760
      %v314 = vsub.f32 %v312, %v313
      %v315 = vand.u32 %v314, 4294901760
      %316 = vmatmul.f32.gmra.mxu0 %v315
      %v317 = vpop.f32.mrf.mxu0
      %v318 = vadd.f32 0.0, %v317
      %319 = vdwg.mxu0
      %320 = vmatpush.msra.mxu0 0.0
      %321 = vmatpush.msra.mxu0 0.0
      %322 = vmatpush.msra.mxu0 0.0
      %323 = vmatpush.msra.mxu0 0.0
      %324 = vmatpush.msra.mxu0 0.0
      %325 = vmatpush.msra.mxu0 0.0
      %326 = vmatpush.msra.mxu0 0.0
      %327 = vmatpush.msra.mxu0 0.0
      %328 = vmatpush.msra.mxu0 0.0
      %329 = vmatpush.msra.mxu0 0.0
      %330 = vmatpush.msra.mxu0 0.0
      %331 = vmatpush.msra.mxu0 0.0
      %332 = vmatpush.msra.mxu0 0.0
      %333 = vmatpush.msra.mxu0 0.0
      %334 = vmatpush.msra.mxu0 0.0
      %v335 = vand.u32 %v290, 4294901760
      %v336 = vsub.f32 %v290, %v335
      %v337 = vand.u32 %v336, 4294901760
      %v338 = vsub.f32 %v336, %v337
      %v339 = vand.u32 %v338, 4294901760
      %340 = vmatpush.msra.mxu0 %v339
      %v341 = vand.u32 %v287, 4294901760
      %342 = vmatmul.f32.gmra.mxu0 %v341
      %v343 = vpop.f32.mrf.mxu0
      %v344 = vadd.f32 %v318, %v343
      %345 = vdwg.mxu0
      %346 = vmatpush.msra.mxu0 0.0
      %347 = vmatpush.msra.mxu0 0.0
      %348 = vmatpush.msra.mxu0 0.0
      %349 = vmatpush.msra.mxu0 0.0
      %350 = vmatpush.msra.mxu0 0.0
      %351 = vmatpush.msra.mxu0 0.0
      %352 = vmatpush.msra.mxu0 0.0
      %353 = vmatpush.msra.mxu0 0.0
      %354 = vmatpush.msra.mxu0 0.0
      %355 = vmatpush.msra.mxu0 0.0
      %356 = vmatpush.msra.mxu0 0.0
      %357 = vmatpush.msra.mxu0 0.0
      %358 = vmatpush.msra.mxu0 0.0
      %359 = vmatpush.msra.mxu0 0.0
      %360 = vmatpush.msra.mxu0 0.0
      %v361 = vand.u32 %v290, 4294901760
      %v362 = vsub.f32 %v290, %v361
      %363 = vmatpush.msra.mxu0 %v362
      %v364 = vand.u32 %v287, 4294901760
      %v365 = vsub.f32 %v287, %v364
      %366 = vmatmul.f32.gmra.mxu0 %v365
      %v367 = vpop.f32.mrf.mxu0
      %v368 = vadd.f32 %v344, %v367
      %369 = vdwg.mxu0
      %370 = vmatpush.msra.mxu0 0.0
      %371 = vmatpush.msra.mxu0 0.0
      %372 = vmatpush.msra.mxu0 0.0
      %373 = vmatpush.msra.mxu0 0.0
      %374 = vmatpush.msra.mxu0 0.0
      %375 = vmatpush.msra.mxu0 0.0
      %376 = vmatpush.msra.mxu0 0.0
      %377 = vmatpush.msra.mxu0 0.0
      %378 = vmatpush.msra.mxu0 0.0
      %379 = vmatpush.msra.mxu0 0.0
      %380 = vmatpush.msra.mxu0 0.0
      %381 = vmatpush.msra.mxu0 0.0
      %382 = vmatpush.msra.mxu0 0.0
      %383 = vmatpush.msra.mxu0 0.0
      %384 = vmatpush.msra.mxu0 0.0
      %v385 = vand.u32 %v290, 4294901760
      %386 = vmatpush.msra.mxu0 %v385
      %v387 = vand.u32 %v287, 4294901760
      %v388 = vsub.f32 %v287, %v387
      %v389 = vand.u32 %v388, 4294901760
      %390 = vmatmul.f32.gmra.mxu0 %v389
      %v391 = vpop.f32.mrf.mxu0
      %v392 = vadd.f32 %v368, %v391
      %393 = vdwg.mxu0
      %394 = vmatpush.msra.mxu0 0.0
      %395 = vmatpush.msra.mxu0 0.0
      %396 = vmatpush.msra.mxu0 0.0
      %397 = vmatpush.msra.mxu0 0.0
      %398 = vmatpush.msra.mxu0 0.0
      %399 = vmatpush.msra.mxu0 0.0
      %400 = vmatpush.msra.mxu0 0.0
      %401 = vmatpush.msra.mxu0 0.0
      %402 = vmatpush.msra.mxu0 0.0
      %403 = vmatpush.msra.mxu0 0.0
      %404 = vmatpush.msra.mxu0 0.0
      %405 = vmatpush.msra.mxu0 0.0
      %406 = vmatpush.msra.mxu0 0.0
      %407 = vmatpush.msra.mxu0 0.0
      %408 = vmatpush.msra.mxu0 0.0
      %v409 = vand.u32 %v290, 4294901760
      %v410 = vsub.f32 %v290, %v409
      %v411 = vand.u32 %v410, 4294901760
      %412 = vmatpush.msra.mxu0 %v411
      %v413 = vand.u32 %v287, 4294901760
      %414 = vmatmul.f32.gmra.mxu0 %v413
      %v415 = vpop.f32.mrf.mxu0
      %v416 = vadd.f32 %v392, %v415
      %417 = vdwg.mxu0
      %418 = vmatpush.msra.mxu0 0.0
      %419 = vmatpush.msra.mxu0 0.0
      %420 = vmatpush.msra.mxu0 0.0
      %421 = vmatpush.msra.mxu0 0.0
      %422 = vmatpush.msra.mxu0 0.0
      %423 = vmatpush.msra.mxu0 0.0
      %424 = vmatpush.msra.mxu0 0.0
      %425 = vmatpush.msra.mxu0 0.0
      %426 = vmatpush.msra.mxu0 0.0
      %427 = vmatpush.msra.mxu0 0.0
      %428 = vmatpush.msra.mxu0 0.0
      %429 = vmatpush.msra.mxu0 0.0
      %430 = vmatpush.msra.mxu0 0.0
      %431 = vmatpush.msra.mxu0 0.0
      %432 = vmatpush.msra.mxu0 0.0
      %v433 = vand.u32 %v290, 4294901760
      %434 = vmatpush.msra.mxu0 %v433
      %v435 = vand.u32 %v287, 4294901760
      %436 = vmatmul.f32.gmra.mxu0 %v435
      %v437 = vpop.f32.mrf.mxu0
      %v438 = vadd.f32 %v416, %v437
      %439 = vdwg.mxu0
      %440 = vmatpush.msra.mxu0 0.0
      %441 = vmatpush.msra.mxu0 0.0
      %442 = vmatpush.msra.mxu0 0.0
      %443 = vmatpush.msra.mxu0 0.0
      %444 = vmatpush.msra.mxu0 0.0
      %445 = vmatpush.msra.mxu0 0.0
      %446 = vmatpush.msra.mxu0 0.0
      %447 = vmatpush.msra.mxu0 0.0
      %448 = vmatpush.msra.mxu0 0.0
      %449 = vmatpush.msra.mxu0 0.0
      %450 = vmatpush.msra.mxu0 0.0
      %451 = vmatpush.msra.mxu0 0.0
      %452 = vmatpush.msra.mxu0 0.0
      %453 = vmatpush.msra.mxu0 0.0
      %454 = vmatpush.msra.mxu0 0.0
      %v455 = vand.u32 %v292, 4294901760
      %456 = vmatpush.msra.mxu0 %v455
      %v457 = vand.u32 %v287, 4294901760
      %v458 = vsub.f32 %v287, %v457
      %v459 = vand.u32 %v458, 4294901760
      %v460 = vsub.f32 %v458, %v459
      %v461 = vand.u32 %v460, 4294901760
      %462 = vmatmul.f32.gmra.mxu0 %v461
      %v463 = vpop.f32.mrf.mxu0
      %v464 = vadd.f32 0.0, %v463
      %465 = vdwg.mxu0
      %466 = vmatpush.msra.mxu0 0.0
      %467 = vmatpush.msra.mxu0 0.0
      %468 = vmatpush.msra.mxu0 0.0
      %469 = vmatpush.msra.mxu0 0.0
      %470 = vmatpush.msra.mxu0 0.0
      %471 = vmatpush.msra.mxu0 0.0
      %472 = vmatpush.msra.mxu0 0.0
      %473 = vmatpush.msra.mxu0 0.0
      %474 = vmatpush.msra.mxu0 0.0
      %475 = vmatpush.msra.mxu0 0.0
      %476 = vmatpush.msra.mxu0 0.0
      %477 = vmatpush.msra.mxu0 0.0
      %478 = vmatpush.msra.mxu0 0.0
      %479 = vmatpush.msra.mxu0 0.0
      %480 = vmatpush.msra.mxu0 0.0
      %v481 = vand.u32 %v292, 4294901760
      %v482 = vsub.f32 %v292, %v481
      %v483 = vand.u32 %v482, 4294901760
      %v484 = vsub.f32 %v482, %v483
      %v485 = vand.u32 %v484, 4294901760
      %486 = vmatpush.msra.mxu0 %v485
      %v487 = vand.u32 %v287, 4294901760
      %488 = vmatmul.f32.gmra.mxu0 %v487
      %v489 = vpop.f32.mrf.mxu0
      %v490 = vadd.f32 %v464, %v489
      %491 = vdwg.mxu0
      %492 = vmatpush.msra.mxu0 0.0
      %493 = vmatpush.msra.mxu0 0.0
      %494 = vmatpush.msra.mxu0 0.0
      %495 = vmatpush.msra.mxu0 0.0
      %496 = vmatpush.msra.mxu0 0.0
      %497 = vmatpush.msra.mxu0 0.0
      %498 = vmatpush.msra.mxu0 0.0
      %499 = vmatpush.msra.mxu0 0.0
      %500 = vmatpush.msra.mxu0 0.0
      %501 = vmatpush.msra.mxu0 0.0
      %502 = vmatpush.msra.mxu0 0.0
      %503 = vmatpush.msra.mxu0 0.0
      %504 = vmatpush.msra.mxu0 0.0
      %505 = vmatpush.msra.mxu0 0.0
      %506 = vmatpush.msra.mxu0 0.0
      %v507 = vand.u32 %v292, 4294901760
      %v508 = vsub.f32 %v292, %v507
      %509 = vmatpush.msra.mxu0 %v508
      %v510 = vand.u32 %v287, 4294901760
      %v511 = vsub.f32 %v287, %v510
      %512 = vmatmul.f32.gmra.mxu0 %v511
      %v513 = vpop.f32.mrf.mxu0
      %v514 = vadd.f32 %v490, %v513
      %515 = vdwg.mxu0
      %516 = vmatpush.msra.mxu0 0.0
      %517 = vmatpush.msra.mxu0 0.0
      %518 = vmatpush.msra.mxu0 0.0
      %519 = vmatpush.msra.mxu0 0.0
      %520 = vmatpush.msra.mxu0 0.0
      %521 = vmatpush.msra.mxu0 0.0
      %522 = vmatpush.msra.mxu0 0.0
      %523 = vmatpush.msra.mxu0 0.0
      %524 = vmatpush.msra.mxu0 0.0
      %525 = vmatpush.msra.mxu0 0.0
      %526 = vmatpush.msra.mxu0 0.0
      %527 = vmatpush.msra.mxu0 0.0
      %528 = vmatpush.msra.mxu0 0.0
      %529 = vmatpush.msra.mxu0 0.0
      %530 = vmatpush.msra.mxu0 0.0
      %v531 = vand.u32 %v292, 4294901760
      %532 = vmatpush.msra.mxu0 %v531
      %v533 = vand.u32 %v287, 4294901760
      %v534 = vsub.f32 %v287, %v533
      %v535 = vand.u32 %v534, 4294901760
      %536 = vmatmul.f32.gmra.mxu0 %v535
      %v537 = vpop.f32.mrf.mxu0
      %v538 = vadd.f32 %v514, %v537
      %539 = vdwg.mxu0
      %540 = vmatpush.msra.mxu0 0.0
      %541 = vmatpush.msra.mxu0 0.0
      %542 = vmatpush.msra.mxu0 0.0
      %543 = vmatpush.msra.mxu0 0.0
      %544 = vmatpush.msra.mxu0 0.0
      %545 = vmatpush.msra.mxu0 0.0
      %546 = vmatpush.msra.mxu0 0.0
      %547 = vmatpush.msra.mxu0 0.0
      %548 = vmatpush.msra.mxu0 0.0
      %549 = vmatpush.msra.mxu0 0.0
      %550 = vmatpush.msra.mxu0 0.0
      %551 = vmatpush.msra.mxu0 0.0
      %552 = vmatpush.msra.mxu0 0.0
      %553 = vmatpush.msra.mxu0 0.0
      %554 = vmatpush.msra.mxu0 0.0
      %v555 = vand.u32 %v292, 4294901760
      %v556 = vsub.f32 %v292, %v555
      %v557 = vand.u32 %v556, 4294901760
      %558 = vmatpush.msra.mxu0 %v557
      %v559 = vand.u32 %v287, 4294901760
      %560 = vmatmul.f32.gmra.mxu0 %v559
      %v561 = vpop.f32.mrf.mxu0
      %v562 = vadd.f32 %v538, %v561
      %563 = vdwg.mxu0
      %564 = vmatpush.msra.mxu0 0.0
      %565 = vmatpush.msra.mxu0 0.0
      %566 = vmatpush.msra.mxu0 0.0
      %567 = vmatpush.msra.mxu0 0.0
      %568 = vmatpush.msra.mxu0 0.0
      %569 = vmatpush.msra.mxu0 0.0
      %570 = vmatpush.msra.mxu0 0.0
      %571 = vmatpush.msra.mxu0 0.0
      %572 = vmatpush.msra.mxu0 0.0
      %573 = vmatpush.msra.mxu0 0.0
      %574 = vmatpush.msra.mxu0 0.0
      %575 = vmatpush.msra.mxu0 0.0
      %576 = vmatpush.msra.mxu0 0.0
      %577 = vmatpush.msra.mxu0 0.0
      %578 = vmatpush.msra.mxu0 0.0
      %v579 = vand.u32 %v292, 4294901760
      %580 = vmatpush.msra.mxu0 %v579
      %v581 = vand.u32 %v287, 4294901760
      %582 = vmatmul.f32.gmra.mxu0 %v581
      %v583 = vpop.f32.mrf.mxu0
      %v584 = vadd.f32 %v562, %v583
      %585 = vdwg.mxu0
      %586 = vst [vmem:[%s248] sm:$0xff] %v438
      %587 = vst [vmem:[%s248 + $0x8] sm:$0xff] %v584
      %v588 = vadd.f32 %v438, %v584
      %589 = vadd.xlane.f32.xlu0 %v588
      %v590 = vpop.xlane.xlu0 %589
      %v591 = vmul.f32 %v438, %v438
      %v592 = vmul.f32 %v584, %v584
      %v593 = vadd.f32 %v591, %v592
      %594 = vadd.xlane.f32.xlu0 %v593
      %v595 = vpop.xlane.xlu0 %594
      %vm596 = vcmask 7168
      %v597 = vsel %vm596, %v590, %v595
      %598 = vst.msk [vmem:[%s257] sm:$0xff] %vm285, %v597
      %s599 = smul.u32 2, %s21
      %p600 = scmp.lt.s32.totalorder %s20, 1
      %s601 = scalar_select %p600, %s20, 1
      %p602 = scmp.lt.s32.totalorder %s599, 3
      %s603 = scalar_select %p602, %s599, 3
      %s604 = smul.addr %s601, 4
      %s605 = sadd.s32 %s603, %s604
      %s606 = smul.addr %s605, 8
      %s607 = scalar_lea.vmem %s3, %s606
      %p608 = scmp.lt.s32.totalorder %s20, 1
      %s609 = scalar_select %p608, %s20, 1
      %p610 = scmp.lt.s32.totalorder %s21, 1
      %s611 = scalar_select %p610, %s21, 1
      %s612 = smul.addr %s609, 2
      %s613 = sadd.s32 %s611, %s612
      %s614 = smul.addr %s613, 8
      %s615 = scalar_lea.vmem %s4, %s614
      // Predicated region
      $region33: #{dmf_unit_forward.6} parent=31 // pred_check
        %p616 = pneg %p118
      $region34: #{dmf_unit_forward.6} parent=31 // pred_check_branch
        %618 = sbr.rel (%p616) target = $region36
      $region35: #{dmf_unit_forward.6} parent=31 // pred_region
        %s619 = smul.u32 2, %s21
      $region36: #{dmf_unit_forward.6} parent=31 // pred_fallthru
        _
      // Predicated region
      $region37: #{dmf_unit_forward.6} parent=31 // pred_check
        %p620 = pneg %p146
      $region38: #{dmf_unit_forward.6} parent=31 // pred_check_branch
        %622 = sbr.rel (%p620) target = $region40
      $region39: #{dmf_unit_forward.6} parent=31 // pred_region
        _
      $region40: #{dmf_unit_forward.6} parent=31 // pred_fallthru
        _
    $region32: #{dmf_unit_forward.6} parent=5 // pred_fallthru
      _
    %p623 = scmp.le.s32.totalorder 2, %s11
    // Predicated region
    $region41: #{dmf_unit_forward.6} parent=5 // pred_check
      %p624 = pneg %p623
    $region42: #{dmf_unit_forward.6} parent=5 // pred_check_branch
      %626 = sbr.rel (%p624) target = $region44
    $region43: #{dmf_unit_forward.6} parent=5 // pred_region
      %s627 = ssub.s32 %s11, 2
      // Predicated region
      $region45: #{dmf_unit_forward.6} parent=43 // pred_check
        %p628 = pneg %p124
      $region46: #{dmf_unit_forward.6} parent=43 // pred_check_branch
        %630 = sbr.rel (%p628) target = $region48
      $region47: #{dmf_unit_forward.6} parent=43 // pred_region
        %s631 = smul.u32 2, %s23
        %p632 = scmp.lt.s32.totalorder %s22, 1
        %s633 = scalar_select %p632, %s22, 1
        %p634 = scmp.lt.s32.totalorder %s631, 3
        %s635 = scalar_select %p634, %s631, 3
        %s636 = smul.addr %s633, 4
        %s637 = sadd.s32 %s635, %s636
        %s638 = smul.addr %s637, 8
        %s639 = scalar_lea.vmem %s3, %s638
      $region48: #{dmf_unit_forward.6} parent=43 // pred_fallthru
        _
      // Predicated region
      $region49: #{dmf_unit_forward.6} parent=43 // pred_check
        %p640 = pneg %p152
      $region50: #{dmf_unit_forward.6} parent=43 // pred_check_branch
        %642 = sbr.rel (%p640) target = $region52
      $region51: #{dmf_unit_forward.6} parent=43 // pred_region
        %p643 = scmp.lt.s32.totalorder %s22, 1
        %s644 = scalar_select %p643, %s22, 1
        %p645 = scmp.lt.s32.totalorder %s23, 1
        %s646 = scalar_select %p645, %s23, 1
        %s647 = smul.addr %s644, 2
        %s648 = sadd.s32 %s646, %s647
        %s649 = smul.addr %s648, 8
        %s650 = scalar_lea.vmem %s4, %s649
      $region52: #{dmf_unit_forward.6} parent=43 // pred_fallthru
        _
    $region44: #{dmf_unit_forward.6} parent=5 // pred_fallthru
      _
  $region6: #{dmf_unit_forward.6} parent=0 // loop_footer
    %s15 = sadd.s32 1, %s11
  $region7: #{dmf_unit_forward.6} parent=0 // loop_footer_branch
    %10 = sbr.rel target = $region3
  $region8: #{dmf_unit_forward.6} parent=0 // loop_exit
    _

// kernel: dmf_unit_forward.5
$region0: #{dmf_unit_forward.5}
  #allocation0 [shape = 'u32[]', space=smem, size = 0x4, offset = 0x4, fixed_abs, tag = 'smem constant byte address 0x4 - core index']
  #allocation1 [shape = 'u32[72,128]{1,0:T(1,128)}', space=vmem, size = 0x9000, scoped, tag = 'internal scratch']
  %s0 = inlined_call_operand.vmem [shape: f32[2,8,512], index: 0, kind: input, shape index: {}]
  %s1 = inlined_call_operand.vmem [shape: f32[8,4], index: 1, kind: input, shape index: {}]
  %s2 = inlined_call_operand.vmem [shape: f32[2,8], index: 2, kind: input, shape index: {}]
  %s3 = inlined_call_operand.vmem [shape: f32[16,8], index: 3, kind: input, shape index: {}]
  %s4 = inlined_call_operand.vmem [shape: f32[2,2,512], index: 4, kind: output, shape index: {0}]
  %s5 = inlined_call_operand.vmem [shape: f32[2,16,512], index: 5, kind: output, shape index: {1}]
  %s6 = inlined_call_operand.vmem [shape: f32[2,2,2,2], index: 6, kind: output, shape index: {2}]
  %7 = xla_tuple %s4, %s5, %s6
  %s8 = sld [smem:[#allocation0]]
  $region84: #{dmf_unit_forward.5} parent=0
    _
  %s10 = ssub.s32 1, %s8
  %s11 = scalar_select 0, %s10, %s8
  $region1: #{dmf_unit_forward.5} parent=0
    #allocation2 [shape = 'u8[32768]{0}', space=vmem, size = 0x8000, scoped, tag = 'output window, operand 1']
    loop: start=0, step=1, limit=6
    $region2: #{dmf_unit_forward.5} parent=1 // loop_pre_header
      _
    $region3: #{dmf_unit_forward.5} parent=1 // loop_header
      %s13 = sphi 0, %s17
      %p14 = scmp.ge.s32.totalorder %s13, 6
      %s20 = sphi 0, %s32
      %s21 = sphi 0, %s28
      %s22 = sphi 0, %s20
      %s23 = sphi 0, %s21
      %s24 = sphi 0, %s22
      %s25 = sphi 0, %s23
      %s37 = sphi 0, %s39
      %s40 = sphi 0, %s37
      %s41 = sphi 0, %s40
      %s57 = sphi 0, %s41
      %s61 = sphi 0, %s61
      %s63 = sphi 0, %s61
      %s64 = sphi 0, %s63
      %s78 = sphi 0, %s64
      %s82 = sphi 0, %s82
      %s84 = sphi 0, %s82
      %s85 = sphi 0, %s84
      %s99 = sphi 0, %s85
      %s103 = sphi 0, %s103
      %s105 = sphi 0, %s103
      %s106 = sphi 0, %s105
      %s120 = sphi 0, %s106
      %s128 = sphi 0, %s130
      %s131 = sphi 0, %s128
      %s132 = sphi 0, %s131
      %s148 = sphi 0, %s132
      %s156 = sphi 0, %s158
      %s159 = sphi 0, %s156
      %s160 = sphi 0, %s159
      %s176 = sphi 0, %s160
      %s184 = sphi 0, %s186
      %s187 = sphi 0, %s184
      %s188 = sphi 0, %s187
      %s204 = sphi 0, %s188
    $region4: #{dmf_unit_forward.5} parent=1 // loop_header_branch
      %16 = sbr.rel (%p14) target = $region8
    $region5: #{dmf_unit_forward.5} parent=1 // loop_body
      %s18 = ssub.s32 %s13, 1
      %s19 = ssub.s32 %s13, 2
      %s26 = sadd.s32 1, %s21
      %p27 = scmp.ge.s32.totalorder %s26, 2
      %s28 = scalar_select %p27, 0, %s26
      %s29 = sadd.s32 1, %s20
      %s30 = scalar_select %p27, %s29, %s20
      %p31 = scmp.ge.s32.totalorder %s30, 2
      %s32 = scalar_select %p31, 0, %s30
      %s33 = ssub.s32 %s20, %s32
      %s34 = ssub.s32 %s21, %s28
      %s35 = sor.u32 %s33, %s34
      %p36 = scmp.eq.s32.totalorder %s35, 0
      %s38 = sadd.s32 %s37, 1
      %s39 = scalar_select %p36, %s37, %s38
      %p42 = pneg %p36
      %p43 = scmp.eq.s32.totalorder %s13, 3
      %p44 = por %p42, %p43
      %p45 = scmp.ne.s32.totalorder %s37, %s40
      %p46 = scmp.eq.s32.totalorder %s13, 0
      %p47 = por %p45, %p46
      %p48 = scmp.ne.s32.totalorder %s37, %s40
      %p49 = scmp.eq.s32.totalorder %s18, 3
      %p50 = por %p48, %p49
      %p51 = scmp.ne.s32.totalorder %s40, %s41
      %p52 = scmp.eq.s32.totalorder %s18, 0
      %p53 = por %p51, %p52
      %p54 = scmp.ne.s32.totalorder %s40, %s41
      %p55 = scmp.eq.s32.totalorder %s19, 3
      %p56 = por %p54, %p55
      %p58 = scmp.ne.s32.totalorder %s41, %s57
      %p59 = scmp.eq.s32.totalorder %s19, 0
      %p60 = por %p58, %p59
      %s62 = sadd.s32 %s61, 1
      %p65 = scmp.eq.s32.totalorder %s13, 3
      %p66 = scmp.ne.s32.totalorder %s61, %s63
      %p67 = scmp.eq.s32.totalorder %s13, 0
      %p68 = por %p66, %p67
      %p69 = scmp.ne.s32.totalorder %s61, %s63
      %p70 = scmp.eq.s32.totalorder %s18, 3
      %p71 = por %p69, %p70
      %p72 = scmp.ne.s32.totalorder %s63, %s64
      %p73 = scmp.eq.s32.totalorder %s18, 0
      %p74 = por %p72, %p73
      %p75 = scmp.ne.s32.totalorder %s63, %s64
      %p76 = scmp.eq.s32.totalorder %s19, 3
      %p77 = por %p75, %p76
      %p79 = scmp.ne.s32.totalorder %s64, %s78
      %p80 = scmp.eq.s32.totalorder %s19, 0
      %p81 = por %p79, %p80
      %s83 = sadd.s32 %s82, 1
      %p86 = scmp.eq.s32.totalorder %s13, 3
      %p87 = scmp.ne.s32.totalorder %s82, %s84
      %p88 = scmp.eq.s32.totalorder %s13, 0
      %p89 = por %p87, %p88
      %p90 = scmp.ne.s32.totalorder %s82, %s84
      %p91 = scmp.eq.s32.totalorder %s18, 3
      %p92 = por %p90, %p91
      %p93 = scmp.ne.s32.totalorder %s84, %s85
      %p94 = scmp.eq.s32.totalorder %s18, 0
      %p95 = por %p93, %p94
      %p96 = scmp.ne.s32.totalorder %s84, %s85
      %p97 = scmp.eq.s32.totalorder %s19, 3
      %p98 = por %p96, %p97
      %p100 = scmp.ne.s32.totalorder %s85, %s99
      %p101 = scmp.eq.s32.totalorder %s19, 0
      %p102 = por %p100, %p101
      %s104 = sadd.s32 %s103, 1
      %p107 = scmp.eq.s32.totalorder %s13, 3
      %p108 = scmp.ne.s32.totalorder %s103, %s105
      %p109 = scmp.eq.s32.totalorder %s13, 0
      %p110 = por %p108, %p109
      %p111 = scmp.ne.s32.totalorder %s103, %s105
      %p112 = scmp.eq.s32.totalorder %s18, 3
      %p113 = por %p111, %p112
      %p114 = scmp.ne.s32.totalorder %s105, %s106
      %p115 = scmp.eq.s32.totalorder %s18, 0
      %p116 = por %p114, %p115
      %p117 = scmp.ne.s32.totalorder %s105, %s106
      %p118 = scmp.eq.s32.totalorder %s19, 3
      %p119 = por %p117, %p118
      %p121 = scmp.ne.s32.totalorder %s106, %s120
      %p122 = scmp.eq.s32.totalorder %s19, 0
      %p123 = por %p121, %p122
      %s124 = ssub.s32 %s20, %s32
      %s125 = ssub.s32 %s21, %s28
      %s126 = sor.u32 %s124, %s125
      %p127 = scmp.eq.s32.totalorder %s126, 0
      %s129 = sadd.s32 %s128, 1
      %s130 = scalar_select %p127, %s128, %s129
      %p133 = pneg %p127
      %p134 = scmp.eq.s32.totalorder %s13, 3
      %p135 = por %p133, %p134
      %p136 = scmp.ne.s32.totalorder %s128, %s131
      %p137 = scmp.eq.s32.totalorder %s13, 0
      %p138 = por %p136, %p137
      %p139 = scmp.ne.s32.totalorder %s128, %s131
      %p140 = scmp.eq.s32.totalorder %s18, 3
      %p141 = por %p139, %p140
      %p142 = scmp.ne.s32.totalorder %s131, %s132
      %p143 = scmp.eq.s32.totalorder %s18, 0
      %p144 = por %p142, %p143
      %p145 = scmp.ne.s32.totalorder %s131, %s132
      %p146 = scmp.eq.s32.totalorder %s19, 3
      %p147 = por %p145, %p146
      %p149 = scmp.ne.s32.totalorder %s132, %s148
      %p150 = scmp.eq.s32.totalorder %s19, 0
      %p151 = por %p149, %p150
      %s152 = ssub.s32 %s20, %s32
      %s153 = ssub.s32 %s21, %s28
      %s154 = sor.u32 %s152, %s153
      %p155 = scmp.eq.s32.totalorder %s154, 0
      %s157 = sadd.s32 %s156, 1
      %s158 = scalar_select %p155, %s156, %s157
      %p161 = pneg %p155
      %p162 = scmp.eq.s32.totalorder %s13, 3
      %p163 = por %p161, %p162
      %p164 = scmp.ne.s32.totalorder %s156, %s159
      %p165 = scmp.eq.s32.totalorder %s13, 0
      %p166 = por %p164, %p165
      %p167 = scmp.ne.s32.totalorder %s156, %s159
      %p168 = scmp.eq.s32.totalorder %s18, 3
      %p169 = por %p167, %p168
      %p170 = scmp.ne.s32.totalorder %s159, %s160
      %p171 = scmp.eq.s32.totalorder %s18, 0
      %p172 = por %p170, %p171
      %p173 = scmp.ne.s32.totalorder %s159, %s160
      %p174 = scmp.eq.s32.totalorder %s19, 3
      %p175 = por %p173, %p174
      %p177 = scmp.ne.s32.totalorder %s160, %s176
      %p178 = scmp.eq.s32.totalorder %s19, 0
      %p179 = por %p177, %p178
      %s180 = ssub.s32 %s20, %s32
      %s181 = ssub.s32 %s21, %s28
      %s182 = sor.u32 %s180, %s181
      %p183 = scmp.eq.s32.totalorder %s182, 0
      %s185 = sadd.s32 %s184, 1
      %s186 = scalar_select %p183, %s184, %s185
      %p189 = pneg %p183
      %p190 = scmp.eq.s32.totalorder %s13, 3
      %p191 = por %p189, %p190
      %p192 = scmp.ne.s32.totalorder %s184, %s187
      %p193 = scmp.eq.s32.totalorder %s13, 0
      %p194 = por %p192, %p193
      %p195 = scmp.ne.s32.totalorder %s184, %s187
      %p196 = scmp.eq.s32.totalorder %s18, 3
      %p197 = por %p195, %p196
      %p198 = scmp.ne.s32.totalorder %s187, %s188
      %p199 = scmp.eq.s32.totalorder %s18, 0
      %p200 = por %p198, %p199
      %p201 = scmp.ne.s32.totalorder %s187, %s188
      %p202 = scmp.eq.s32.totalorder %s19, 3
      %p203 = por %p201, %p202
      %p205 = scmp.ne.s32.totalorder %s188, %s204
      %p206 = scmp.eq.s32.totalorder %s19, 0
      %p207 = por %p205, %p206
      %p208 = scmp.le.s32.totalorder 1, %s13
      %p209 = scmp.lt.s32.totalorder %s13, 5
      %p210 = pnand %p208, %p209
      %p211 = pneg %p210
      // Predicated region
      $region9: #{dmf_unit_forward.5} parent=5 // pred_check
        _
      $region10: #{dmf_unit_forward.5} parent=5 // pred_check_branch
        %213 = sbr.rel (%p210) target = $region12
      $region11: #{dmf_unit_forward.5} parent=5 // pred_region
        %s214 = ssub.s32 %s13, 1
        // Predicated region
        $region13: #{dmf_unit_forward.5} parent=11 // pred_check
          %p215 = pneg %p74
        $region14: #{dmf_unit_forward.5} parent=11 // pred_check_branch
          %217 = sbr.rel (%p215) target = $region16
        $region15: #{dmf_unit_forward.5} parent=11 // pred_region
          _
        $region16: #{dmf_unit_forward.5} parent=11 // pred_fallthru
          _
        // Predicated region
        $region17: #{dmf_unit_forward.5} parent=11 // pred_check
          %p218 = pneg %p95
        $region18: #{dmf_unit_forward.5} parent=11 // pred_check_branch
          %220 = sbr.rel (%p218) target = $region20
        $region19: #{dmf_unit_forward.5} parent=11 // pred_region
          _
        $region20: #{dmf_unit_forward.5} parent=11 // pred_fallthru
          _
        // Predicated region
        $region21: #{dmf_unit_forward.5} parent=11 // pred_check
          %p221 = pneg %p116
        $region22: #{dmf_unit_forward.5} parent=11 // pred_check_branch
          %223 = sbr.rel (%p221) target = $region24
        $region23: #{dmf_unit_forward.5} parent=11 // pred_region
          _
        $region24: #{dmf_unit_forward.5} parent=11 // pred_fallthru
          _
      $region12: #{dmf_unit_forward.5} parent=5 // pred_fallthru
        _
      %p224 = scmp.lt.s32.totalorder %s13, 4
      // Predicated region
      $region25: #{dmf_unit_forward.5} parent=5 // pred_check
        %p225 = pneg %p224
      $region26: #{dmf_unit_forward.5} parent=5 // pred_check_branch
        %227 = sbr.rel (%p225) target = $region28
      $region27: #{dmf_unit_forward.5} parent=5 // pred_region
        // Predicated region
        $region29: #{dmf_unit_forward.5} parent=27 // pred_check
          %p228 = pneg %p47
        $region30: #{dmf_unit_forward.5} parent=27 // pred_check_branch
          %230 = sbr.rel (%p228) target = $region32
        $region31: #{dmf_unit_forward.5} parent=27 // pred_region
          %s231 = smul.u32 2, %s21
          %p232 = scmp.lt.s32.totalorder %s20, 1
          %s233 = scalar_select %p232, %s20, 1
          %p234 = scmp.lt.s32.totalorder %s231, 3
          %s235 = scalar_select %p234, %s231, 3
          %s236 = smul.addr %s233, 4
          %s237 = sadd.s32 %s235, %s236
          %s238 = smul.addr %s237, 8
          %s239 = scalar_lea.vmem %s0, %s238
          %s240 = smul.u32 2, %s21
        $region32: #{dmf_unit_forward.5} parent=27 // pred_fallthru
          _
      $region28: #{dmf_unit_forward.5} parent=5 // pred_fallthru
        _
      %p241 = scmp.le.s32.totalorder 1, %s13
      %p242 = scmp.lt.s32.totalorder %s13, 5
      %p243 = pnand %p241, %p242
      %p244 = pneg %p243
      // Predicated region
      $region33: #{dmf_unit_forward.5} parent=5 // pred_check
        _
      $region34: #{dmf_unit_forward.5} parent=5 // pred_check_branch
        %246 = sbr.rel (%p243) target = $region36
      $region35: #{dmf_unit_forward.5} parent=5 // pred_region
        %s247 = ssub.s32 %s13, 1
        %s248 = smul.u32 2, %s23
        %p249 = scmp.lt.s32.totalorder %s22, 1
        %s250 = scalar_select %p249, %s22, 1
        %p251 = scmp.lt.s32.totalorder %s248, 3
        %s252 = scalar_select %p251, %s248, 3
        %s253 = smul.addr %s250, 4
        %s254 = sadd.s32 %s252, %s253
        %s255 = smul.addr %s254, 8
        %s256 = scalar_lea.vmem %s0, %s255
        %p257 = pneg %p53
        %p258 = pneg %p50
        %p259 = pneg %p74
        %p260 = pneg %p71
        %p261 = pneg %p95
        %p262 = pneg %p92
        %p263 = pneg %p116
        %p264 = pneg %p113
        %p265 = pneg %p144
        %p266 = pneg %p141
        %s267 = smul.u32 2, %s23
        %p268 = scmp.lt.s32.totalorder %s22, 1
        %s269 = scalar_select %p268, %s22, 1
        %p270 = scmp.lt.s32.totalorder %s267, 3
        %s271 = scalar_select %p270, %s267, 3
        %s272 = smul.addr %s269, 4
        %s273 = sadd.s32 %s271, %s272
        %s274 = smul.addr %s273, 2
        %s275 = scalar_lea.vmem %s4, %s274
        %p276 = pneg %p172
        %p277 = pneg %p169
        %s278 = sand.u32 %s159, 1
        %s279 = sand.u32 %s159, 1
        %s280 = smul.addr %s279, 32
        %s281 = scalar_lea.vmem [#allocation2], %s280
        %p282 = pneg %p200
        %p283 = pneg %p197
        %p284 = scmp.lt.s32.totalorder %s22, 1
        %s285 = scalar_select %p284, %s22, 1
        %p286 = scmp.lt.s32.totalorder %s23, 1
        %s287 = scalar_select %p286, %s23, 1
        %s288 = smul.addr %s285, 2
        %s289 = sadd.s32 %s287, %s288
        %s290 = smul.addr %s289, 2
        %s291 = scalar_lea.vmem %s6, %s290
        %s292 = smul.u32 2, %s23
        %p293 = scmp.lt.s32.totalorder %s22, 1
        %s294 = scalar_select %p293, %s22, 1
        %p295 = scmp.lt.s32.totalorder %s292, 3
        %s296 = scalar_select %p295, %s292, 3
        %s297 = smul.addr %s294, 4
        %s298 = sadd.s32 %s296, %s297
        %s299 = smul.addr %s298, 8
        %s300 = scalar_lea.vmem %s0, %s299
        %s301 = smul.u32 2, %s23
        %s302 = smul.u32 2, %s23
        %p303 = scmp.lt.s32.totalorder %s22, 1
        %s304 = scalar_select %p303, %s22, 1
        %p305 = scmp.lt.s32.totalorder %s302, 3
        %s306 = scalar_select %p305, %s302, 3
        %s307 = smul.addr %s304, 4
        %s308 = sadd.s32 %s306, %s307
        %s309 = smul.addr %s308, 2
        %s310 = scalar_lea.vmem %s4, %s309
        %s311 = smul.u32 2, %s23
        %s312 = smul.u32 2, %s23
        %p313 = scmp.lt.s32.totalorder %s22, 1
        %s314 = scalar_select %p313, %s22, 1
        %p315 = scmp.lt.s32.totalorder %s23, 1
        %s316 = scalar_select %p315, %s23, 1
        %s317 = smul.addr %s314, 2
        %s318 = sadd.s32 %s316, %s317
        %s319 = smul.addr %s318, 2
        %s320 = scalar_lea.vmem %s6, %s319
        %v321 = vld [vmem:[%s300] sm:$0xff]
        %v322 = vld [vmem:[%s300 + $0x8] sm:$0xff]
        %v323 = vld [vmem:[%s1] sm:$0xff]
        %325 = vset.pattern.permute.xlu0 0
        %326 = vperm.xlu0 %325, %v323
        %v327 = vpop.permute.xlu0 %326
        %v329 = vmul.f32 %v321, %v327
        %v330 = vmul.f32 %v322, %v327
        %331 = vset.pattern.permute.xlu0 1
        %332 = vperm.xlu0 %331, %v323
        %v333 = vpop.permute.xlu0 %332
        %v335 = vadd.f32 %v329, %v333
        %v336 = vadd.f32 %v330, %v333
        %v337 = vmax.f32 %v335, 0.0
        %v338 = vmax.f32 %v336, 0.0
        %339 = vset.pattern.permute.xlu0 2
        %340 = vperm.xlu0 %339, %v323
        %v341 = vpop.permute.xlu0 %340
        %v343 = vmul.f32 %v321, %v341
        %v344 = vmul.f32 %v322, %v341
        %345 = vset.pattern.permute.xlu0 3
        %346 = vperm.xlu0 %345, %v323
        %v347 = vpop.permute.xlu0 %346
        %v349 = vadd.f32 %v343, %v347
        %v350 = vadd.f32 %v344, %v347
        %v351 = vmax.f32 %v349, 0.0
        %v352 = vmax.f32 %v350, 0.0
        %v353 = vld [vmem:[%s2] sm:$0x3]
        %vm354 = vcmask 64512
        %v356 = vsel %vm354, %v353, 0
        %358 = vmatpush.msra.mxu0 0.0
        %359 = vmatpush.msra.mxu0 0.0
        %360 = vmatpush.msra.mxu0 0.0
        %361 = vmatpush.msra.mxu0 0.0
        %362 = vmatpush.msra.mxu0 0.0
        %363 = vmatpush.msra.mxu0 0.0
        %364 = vmatpush.msra.mxu0 0.0
        %365 = vmatpush.msra.mxu0 0.0
        %366 = vmatpush.msra.mxu0 0.0
        %367 = vmatpush.msra.mxu0 0.0
        %368 = vmatpush.msra.mxu0 0.0
        %369 = vmatpush.msra.mxu0 0.0
        %370 = vmatpush.msra.mxu0 0.0
        %371 = vmatpush.msra.mxu0 0.0
        %372 = vmatpush.msra.mxu0 0.0
        %v373 = vand.u32 %v337, 4294901760
        %374 = vmatpush.msra.mxu0 %v373
        %v375 = vand.u32 %v356, 4294901760
        %v376 = vsub.f32 %v356, %v375
        %v377 = vand.u32 %v376, 4294901760
        %v378 = vsub.f32 %v376, %v377
        %v379 = vand.u32 %v378, 4294901760
        %380 = vmatmul.f32.gmra.mxu0 %v379
        %v381 = vpop.f32.mrf.mxu0
        %v382 = vadd.f32 0.0, %v381
        %383 = vdwg.mxu0
        %384 = vmatpush.msra.mxu0 0.0
        %385 = vmatpush.msra.mxu0 0.0
        %386 = vmatpush.msra.mxu0 0.0
        %387 = vmatpush.msra.mxu0 0.0
        %388 = vmatpush.msra.mxu0 0.0
        %389 = vmatpush.msra.mxu0 0.0
        %390 = vmatpush.msra.mxu0 0.0
        %391 = vmatpush.msra.mxu0 0.0
        %392 = vmatpush.msra.mxu0 0.0
        %393 = vmatpush.msra.mxu0 0.0
        %394 = vmatpush.msra.mxu0 0.0
        %395 = vmatpush.msra.mxu0 0.0
        %396 = vmatpush.msra.mxu0 0.0
        %397 = vmatpush.msra.mxu0 0.0
        %398 = vmatpush.msra.mxu0 0.0
        %v399 = vand.u32 %v337, 4294901760
        %v400 = vsub.f32 %v337, %v399
        %v401 = vand.u32 %v400, 4294901760
        %v402 = vsub.f32 %v400, %v401
        %v403 = vand.u32 %v402, 4294901760
        %404 = vmatpush.msra.mxu0 %v403
        %v405 = vand.u32 %v356, 4294901760
        %406 = vmatmul.f32.gmra.mxu0 %v405
        %v407 = vpop.f32.mrf.mxu0
        %v408 = vadd.f32 %v382, %v407
        %409 = vdwg.mxu0
        %410 = vmatpush.msra.mxu0 0.0
        %411 = vmatpush.msra.mxu0 0.0
        %412 = vmatpush.msra.mxu0 0.0
        %413 = vmatpush.msra.mxu0 0.0
        %414 = vmatpush.msra.mxu0 0.0
        %415 = vmatpush.msra.mxu0 0.0
        %416 = vmatpush.msra.mxu0 0.0
        %417 = vmatpush.msra.mxu0 0.0
        %418 = vmatpush.msra.mxu0 0.0
        %419 = vmatpush.msra.mxu0 0.0
        %420 = vmatpush.msra.mxu0 0.0
        %421 = vmatpush.msra.mxu0 0.0
        %422 = vmatpush.msra.mxu0 0.0
        %423 = vmatpush.msra.mxu0 0.0
        %424 = vmatpush.msra.mxu0 0.0
        %v425 = vand.u32 %v337, 4294901760
        %v426 = vsub.f32 %v337, %v425
        %427 = vmatpush.msra.mxu0 %v426
        %v428 = vand.u32 %v356, 4294901760
        %v429 = vsub.f32 %v356, %v428
        %430 = vmatmul.f32.gmra.mxu0 %v429
        %v431 = vpop.f32.mrf.mxu0
        %v432 = vadd.f32 %v408, %v431
        %433 = vdwg.mxu0
        %434 = vmatpush.msra.mxu0 0.0
        %435 = vmatpush.msra.mxu0 0.0
        %436 = vmatpush.msra.mxu0 0.0
        %437 = vmatpush.msra.mxu0 0.0
        %438 = vmatpush.msra.mxu0 0.0
        %439 = vmatpush.msra.mxu0 0.0
        %440 = vmatpush.msra.mxu0 0.0
        %441 = vmatpush.msra.mxu0 0.0
        %442 = vmatpush.msra.mxu0 0.0
        %443 = vmatpush.msra.mxu0 0.0
        %444 = vmatpush.msra.mxu0 0.0
        %445 = vmatpush.msra.mxu0 0.0
        %446 = vmatpush.msra.mxu0 0.0
        %447 = vmatpush.msra.mxu0 0.0
        %448 = vmatpush.msra.mxu0 0.0
        %v449 = vand.u32 %v337, 4294901760
        %450 = vmatpush.msra.mxu0 %v449
        %v451 = vand.u32 %v356, 4294901760
        %v452 = vsub.f32 %v356, %v451
        %v453 = vand.u32 %v452, 4294901760
        %454 = vmatmul.f32.gmra.mxu0 %v453
        %v455 = vpop.f32.mrf.mxu0
        %v456 = vadd.f32 %v432, %v455
        %457 = vdwg.mxu0
        %458 = vmatpush.msra.mxu0 0.0
        %459 = vmatpush.msra.mxu0 0.0
        %460 = vmatpush.msra.mxu0 0.0
        %461 = vmatpush.msra.mxu0 0.0
        %462 = vmatpush.msra.mxu0 0.0
        %463 = vmatpush.msra.mxu0 0.0
        %464 = vmatpush.msra.mxu0 0.0
        %465 = vmatpush.msra.mxu0 0.0
        %466 = vmatpush.msra.mxu0 0.0
        %467 = vmatpush.msra.mxu0 0.0
        %468 = vmatpush.msra.mxu0 0.0
        %469 = vmatpush.msra.mxu0 0.0
        %470 = vmatpush.msra.mxu0 0.0
        %471 = vmatpush.msra.mxu0 0.0
        %472 = vmatpush.msra.mxu0 0.0
        %v473 = vand.u32 %v337, 4294901760
        %v474 = vsub.f32 %v337, %v473
        %v475 = vand.u32 %v474, 4294901760
        %476 = vmatpush.msra.mxu0 %v475
        %v477 = vand.u32 %v356, 4294901760
        %478 = vmatmul.f32.gmra.mxu0 %v477
        %v479 = vpop.f32.mrf.mxu0
        %v480 = vadd.f32 %v456, %v479
        %481 = vdwg.mxu0
        %482 = vmatpush.msra.mxu0 0.0
        %483 = vmatpush.msra.mxu0 0.0
        %484 = vmatpush.msra.mxu0 0.0
        %485 = vmatpush.msra.mxu0 0.0
        %486 = vmatpush.msra.mxu0 0.0
        %487 = vmatpush.msra.mxu0 0.0
        %488 = vmatpush.msra.mxu0 0.0
        %489 = vmatpush.msra.mxu0 0.0
        %490 = vmatpush.msra.mxu0 0.0
        %491 = vmatpush.msra.mxu0 0.0
        %492 = vmatpush.msra.mxu0 0.0
        %493 = vmatpush.msra.mxu0 0.0
        %494 = vmatpush.msra.mxu0 0.0
        %495 = vmatpush.msra.mxu0 0.0
        %496 = vmatpush.msra.mxu0 0.0
        %v497 = vand.u32 %v337, 4294901760
        %498 = vmatpush.msra.mxu0 %v497
        %v499 = vand.u32 %v356, 4294901760
        %500 = vmatmul.f32.gmra.mxu0 %v499
        %v501 = vpop.f32.mrf.mxu0
        %v502 = vadd.f32 %v480, %v501
        %503 = vdwg.mxu0
        %504 = vmatpush.msra.mxu0 0.0
        %505 = vmatpush.msra.mxu0 0.0
        %506 = vmatpush.msra.mxu0 0.0
        %507 = vmatpush.msra.mxu0 0.0
        %508 = vmatpush.msra.mxu0 0.0
        %509 = vmatpush.msra.mxu0 0.0
        %510 = vmatpush.msra.mxu0 0.0
        %511 = vmatpush.msra.mxu0 0.0
        %512 = vmatpush.msra.mxu0 0.0
        %513 = vmatpush.msra.mxu0 0.0
        %514 = vmatpush.msra.mxu0 0.0
        %515 = vmatpush.msra.mxu0 0.0
        %516 = vmatpush.msra.mxu0 0.0
        %517 = vmatpush.msra.mxu0 0.0
        %518 = vmatpush.msra.mxu0 0.0
        %v519 = vand.u32 %v338, 4294901760
        %520 = vmatpush.msra.mxu0 %v519
        %v521 = vand.u32 %v356, 4294901760
        %v522 = vsub.f32 %v356, %v521
        %v523 = vand.u32 %v522, 4294901760
        %v524 = vsub.f32 %v522, %v523
        %v525 = vand.u32 %v524, 4294901760
        %526 = vmatmul.f32.gmra.mxu0 %v525
        %v527 = vpop.f32.mrf.mxu0
        %v528 = vadd.f32 0.0, %v527
        %529 = vdwg.mxu0
        %530 = vmatpush.msra.mxu0 0.0
        %531 = vmatpush.msra.mxu0 0.0
        %532 = vmatpush.msra.mxu0 0.0
        %533 = vmatpush.msra.mxu0 0.0
        %534 = vmatpush.msra.mxu0 0.0
        %535 = vmatpush.msra.mxu0 0.0
        %536 = vmatpush.msra.mxu0 0.0
        %537 = vmatpush.msra.mxu0 0.0
        %538 = vmatpush.msra.mxu0 0.0
        %539 = vmatpush.msra.mxu0 0.0
        %540 = vmatpush.msra.mxu0 0.0
        %541 = vmatpush.msra.mxu0 0.0
        %542 = vmatpush.msra.mxu0 0.0
        %543 = vmatpush.msra.mxu0 0.0
        %544 = vmatpush.msra.mxu0 0.0
        %v545 = vand.u32 %v338, 4294901760
        %v546 = vsub.f32 %v338, %v545
        %v547 = vand.u32 %v546, 4294901760
        %v548 = vsub.f32 %v546, %v547
        %v549 = vand.u32 %v548, 4294901760
        %550 = vmatpush.msra.mxu0 %v549
        %v551 = vand.u32 %v356, 4294901760
        %552 = vmatmul.f32.gmra.mxu0 %v551
        %v553 = vpop.f32.mrf.mxu0
        %v554 = vadd.f32 %v528, %v553
        %555 = vdwg.mxu0
        %556 = vmatpush.msra.mxu0 0.0
        %557 = vmatpush.msra.mxu0 0.0
        %558 = vmatpush.msra.mxu0 0.0
        %559 = vmatpush.msra.mxu0 0.0
        %560 = vmatpush.msra.mxu0 0.0
        %561 = vmatpush.msra.mxu0 0.0
        %562 = vmatpush.msra.mxu0 0.0
        %563 = vmatpush.msra.mxu0 0.0
        %564 = vmatpush.msra.mxu0 0.0
        %565 = vmatpush.msra.mxu0 0.0
        %566 = vmatpush.msra.mxu0 0.0
        %567 = vmatpush.msra.mxu0 0.0
        %568 = vmatpush.msra.mxu0 0.0
        %569 = vmatpush.msra.mxu0 0.0
        %570 = vmatpush.msra.mxu0 0.0
        %v571 = vand.u32 %v338, 4294901760
        %v572 = vsub.f32 %v338, %v571
        %573 = vmatpush.msra.mxu0 %v572
        %v574 = vand.u32 %v356, 4294901760
        %v575 = vsub.f32 %v356, %v574
        %576 = vmatmul.f32.gmra.mxu0 %v575
        %v577 = vpop.f32.mrf.mxu0
        %v578 = vadd.f32 %v554, %v577
        %579 = vdwg.mxu0
        %580 = vmatpush.msra.mxu0 0.0
        %581 = vmatpush.msra.mxu0 0.0
        %582 = vmatpush.msra.mxu0 0.0
        %583 = vmatpush.msra.mxu0 0.0
        %584 = vmatpush.msra.mxu0 0.0
        %585 = vmatpush.msra.mxu0 0.0
        %586 = vmatpush.msra.mxu0 0.0
        %587 = vmatpush.msra.mxu0 0.0
        %588 = vmatpush.msra.mxu0 0.0
        %589 = vmatpush.msra.mxu0 0.0
        %590 = vmatpush.msra.mxu0 0.0
        %591 = vmatpush.msra.mxu0 0.0
        %592 = vmatpush.msra.mxu0 0.0
        %593 = vmatpush.msra.mxu0 0.0
        %594 = vmatpush.msra.mxu0 0.0
        %v595 = vand.u32 %v338, 4294901760
        %596 = vmatpush.msra.mxu0 %v595
        %v597 = vand.u32 %v356, 4294901760
        %v598 = vsub.f32 %v356, %v597
        %v599 = vand.u32 %v598, 4294901760
        %600 = vmatmul.f32.gmra.mxu0 %v599
        %v601 = vpop.f32.mrf.mxu0
        %v602 = vadd.f32 %v578, %v601
        %603 = vdwg.mxu0
        %604 = vmatpush.msra.mxu0 0.0
        %605 = vmatpush.msra.mxu0 0.0
        %606 = vmatpush.msra.mxu0 0.0
        %607 = vmatpush.msra.mxu0 0.0
        %608 = vmatpush.msra.mxu0 0.0
        %609 = vmatpush.msra.mxu0 0.0
        %610 = vmatpush.msra.mxu0 0.0
        %611 = vmatpush.msra.mxu0 0.0
        %612 = vmatpush.msra.mxu0 0.0
        %613 = vmatpush.msra.mxu0 0.0
        %614 = vmatpush.msra.mxu0 0.0
        %615 = vmatpush.msra.mxu0 0.0
        %616 = vmatpush.msra.mxu0 0.0
        %617 = vmatpush.msra.mxu0 0.0
        %618 = vmatpush.msra.mxu0 0.0
        %v619 = vand.u32 %v338, 4294901760
        %v620 = vsub.f32 %v338, %v619
        %v621 = vand.u32 %v620, 4294901760
        %622 = vmatpush.msra.mxu0 %v621
        %v623 = vand.u32 %v356, 4294901760
        %624 = vmatmul.f32.gmra.mxu0 %v623
        %v625 = vpop.f32.mrf.mxu0
        %v626 = vadd.f32 %v602, %v625
        %627 = vdwg.mxu0
        %628 = vmatpush.msra.mxu0 0.0
        %629 = vmatpush.msra.mxu0 0.0
        %630 = vmatpush.msra.mxu0 0.0
        %631 = vmatpush.msra.mxu0 0.0
        %632 = vmatpush.msra.mxu0 0.0
        %633 = vmatpush.msra.mxu0 0.0
        %634 = vmatpush.msra.mxu0 0.0
        %635 = vmatpush.msra.mxu0 0.0
        %636 = vmatpush.msra.mxu0 0.0
        %637 = vmatpush.msra.mxu0 0.0
        %638 = vmatpush.msra.mxu0 0.0
        %639 = vmatpush.msra.mxu0 0.0
        %640 = vmatpush.msra.mxu0 0.0
        %641 = vmatpush.msra.mxu0 0.0
        %642 = vmatpush.msra.mxu0 0.0
        %v643 = vand.u32 %v338, 4294901760
        %644 = vmatpush.msra.mxu0 %v643
        %v645 = vand.u32 %v356, 4294901760
        %646 = vmatmul.f32.gmra.mxu0 %v645
        %v647 = vpop.f32.mrf.mxu0
        %v648 = vadd.f32 %v626, %v647
        %649 = vdwg.mxu0
        %v650 = vld [vmem:[%s3] sm:$0xff]
        %v651 = vld [vmem:[%s3 + $0x8] sm:$0xff]
        %v653 = vsel %vm354, %v650, 0
        %v656 = vsel %vm354, %v651, 0
        %658 = vmatpush.msra.mxu0 0.0
        %659 = vmatpush.msra.mxu0 0.0
        %660 = vmatpush.msra.mxu0 0.0
        %661 = vmatpush.msra.mxu0 0.0
        %662 = vmatpush.msra.mxu0 0.0
        %663 = vmatpush.msra.mxu0 0.0
        %664 = vmatpush.msra.mxu0 0.0
        %665 = vmatpush.msra.mxu0 0.0
        %666 = vmatpush.msra.mxu0 0.0
        %667 = vmatpush.msra.mxu0 0.0
        %668 = vmatpush.msra.mxu0 0.0
        %669 = vmatpush.msra.mxu0 0.0
        %670 = vmatpush.msra.mxu0 0.0
        %671 = vmatpush.msra.mxu0 0.0
        %672 = vmatpush.msra.mxu0 0.0
        %v673 = vand.u32 %v351, 4294901760
        %674 = vmatpush.msra.mxu0 %v673
        %v675 = vand.u32 %v653, 4294901760
        %v676 = vsub.f32 %v653, %v675
        %v677 = vand.u32 %v676, 4294901760
        %v678 = vsub.f32 %v676, %v677
        %v679 = vand.u32 %v678, 4294901760
        %680 = vmatmul.f32.gmra.mxu0 %v679
        %v681 = vpop.f32.mrf.mxu0
        %v682 = vadd.f32 0.0, %v681
        %v683 = vand.u32 %v656, 4294901760
        %v684 = vsub.f32 %v656, %v683
        %v685 = vand.u32 %v684, 4294901760
        %v686 = vsub.f32 %v684, %v685
        %v687 = vand.u32 %v686, 4294901760
        %688 = vmatmul.f32.gmra.mxu0 %v687
        %v689 = vpop.f32.mrf.mxu0
        %v690 = vadd.f32 0.0, %v689
        %691 = vdwg.mxu0
        %692 = vmatpush.msra.mxu0 0.0
        %693 = vmatpush.msra.mxu0 0.0
        %694 = vmatpush.msra.mxu0 0.0
        %695 = vmatpush.msra.mxu0 0.0
        %696 = vmatpush.msra.mxu0 0.0
        %697 = vmatpush.msra.mxu0 0.0
        %698 = vmatpush.msra.mxu0 0.0
        %699 = vmatpush.msra.mxu0 0.0
        %700 = vmatpush.msra.mxu0 0.0
        %701 = vmatpush.msra.mxu0 0.0
        %702 = vmatpush.msra.mxu0 0.0
        %703 = vmatpush.msra.mxu0 0.0
        %704 = vmatpush.msra.mxu0 0.0
        %705 = vmatpush.msra.mxu0 0.0
        %706 = vmatpush.msra.mxu0 0.0
        %v707 = vand.u32 %v351, 4294901760
        %v708 = vsub.f32 %v351, %v707
        %v709 = vand.u32 %v708, 4294901760
        %v710 = vsub.f32 %v708, %v709
        %v711 = vand.u32 %v710, 4294901760
        %712 = vmatpush.msra.mxu0 %v711
        %v713 = vand.u32 %v653, 4294901760
        %714 = vmatmul.f32.gmra.mxu0 %v713
        %v715 = vpop.f32.mrf.mxu0
        %v716 = vadd.f32 %v682, %v715
        %v717 = vand.u32 %v656, 4294901760
        %718 = vmatmul.f32.gmra.mxu0 %v717
        %v719 = vpop.f32.mrf.mxu0
        %v720 = vadd.f32 %v690, %v719
        %721 = vdwg.mxu0
        %722 = vmatpush.msra.mxu0 0.0
        %723 = vmatpush.msra.mxu0 0.0
        %724 = vmatpush.msra.mxu0 0.0
        %725 = vmatpush.msra.mxu0 0.0
        %726 = vmatpush.msra.mxu0 0.0
        %727 = vmatpush.msra.mxu0 0.0
        %728 = vmatpush.msra.mxu0 0.0
        %729 = vmatpush.msra.mxu0 0.0
        %730 = vmatpush.msra.mxu0 0.0
        %731 = vmatpush.msra.mxu0 0.0
        %732 = vmatpush.msra.mxu0 0.0
        %733 = vmatpush.msra.mxu0 0.0
        %734 = vmatpush.msra.mxu0 0.0
        %735 = vmatpush.msra.mxu0 0.0
        %736 = vmatpush.msra.mxu0 0.0
        %v737 = vand.u32 %v351, 4294901760
        %v738 = vsub.f32 %v351, %v737
        %739 = vmatpush.msra.mxu0 %v738
        %v740 = vand.u32 %v653, 4294901760
        %v741 = vsub.f32 %v653, %v740
        %742 = vmatmul.f32.gmra.mxu0 %v741
        %v743 = vpop.f32.mrf.mxu0
        %v744 = vadd.f32 %v716, %v743
        %v745 = vand.u32 %v656, 4294901760
        %v746 = vsub.f32 %v656, %v745
        %747 = vmatmul.f32.gmra.mxu0 %v746
        %v748 = vpop.f32.mrf.mxu0
        %v749 = vadd.f32 %v720, %v748
        %750 = vdwg.mxu0
        %751 = vmatpush.msra.mxu0 0.0
        %752 = vmatpush.msra.mxu0 0.0
        %753 = vmatpush.msra.mxu0 0.0
        %754 = vmatpush.msra.mxu0 0.0
        %755 = vmatpush.msra.mxu0 0.0
        %756 = vmatpush.msra.mxu0 0.0
        %757 = vmatpush.msra.mxu0 0.0
        %758 = vmatpush.msra.mxu0 0.0
        %759 = vmatpush.msra.mxu0 0.0
        %760 = vmatpush.msra.mxu0 0.0
        %761 = vmatpush.msra.mxu0 0.0
        %762 = vmatpush.msra.mxu0 0.0
        %763 = vmatpush.msra.mxu0 0.0
        %764 = vmatpush.msra.mxu0 0.0
        %765 = vmatpush.msra.mxu0 0.0
        %v766 = vand.u32 %v351, 4294901760
        %767 = vmatpush.msra.mxu0 %v766
        %v768 = vand.u32 %v653, 4294901760
        %v769 = vsub.f32 %v653, %v768
        %v770 = vand.u32 %v769, 4294901760
        %771 = vmatmul.f32.gmra.mxu0 %v770
        %v772 = vpop.f32.mrf.mxu0
        %v773 = vadd.f32 %v744, %v772
        %v774 = vand.u32 %v656, 4294901760
        %v775 = vsub.f32 %v656, %v774
        %v776 = vand.u32 %v775, 4294901760
        %777 = vmatmul.f32.gmra.mxu0 %v776
        %v778 = vpop.f32.mrf.mxu0
        %v779 = vadd.f32 %v749, %v778
        %780 = vdwg.mxu0
        %781 = vmatpush.msra.mxu0 0.0
        %782 = vmatpush.msra.mxu0 0.0
        %783 = vmatpush.msra.mxu0 0.0
        %784 = vmatpush.msra.mxu0 0.0
        %785 = vmatpush.msra.mxu0 0.0
        %786 = vmatpush.msra.mxu0 0.0
        %787 = vmatpush.msra.mxu0 0.0
        %788 = vmatpush.msra.mxu0 0.0
        %789 = vmatpush.msra.mxu0 0.0
        %790 = vmatpush.msra.mxu0 0.0
        %791 = vmatpush.msra.mxu0 0.0
        %792 = vmatpush.msra.mxu0 0.0
        %793 = vmatpush.msra.mxu0 0.0
        %794 = vmatpush.msra.mxu0 0.0
        %795 = vmatpush.msra.mxu0 0.0
        %v796 = vand.u32 %v351, 4294901760
        %v797 = vsub.f32 %v351, %v796
        %v798 = vand.u32 %v797, 4294901760
        %799 = vmatpush.msra.mxu0 %v798
        %v800 = vand.u32 %v653, 4294901760
        %801 = vmatmul.f32.gmra.mxu0 %v800
        %v802 = vpop.f32.mrf.mxu0
        %v803 = vadd.f32 %v773, %v802
        %v804 = vand.u32 %v656, 4294901760
        %805 = vmatmul.f32.gmra.mxu0 %v804
        %v806 = vpop.f32.mrf.mxu0
        %v807 = vadd.f32 %v779, %v806
        %808 = vdwg.mxu0
        %809 = vmatpush.msra.mxu0 0.0
        %810 = vmatpush.msra.mxu0 0.0
        %811 = vmatpush.msra.mxu0 0.0
        %812 = vmatpush.msra.mxu0 0.0
        %813 = vmatpush.msra.mxu0 0.0
        %814 = vmatpush.msra.mxu0 0.0
        %815 = vmatpush.msra.mxu0 0.0
        %816 = vmatpush.msra.mxu0 0.0
        %817 = vmatpush.msra.mxu0 0.0
        %818 = vmatpush.msra.mxu0 0.0
        %819 = vmatpush.msra.mxu0 0.0
        %820 = vmatpush.msra.mxu0 0.0
        %821 = vmatpush.msra.mxu0 0.0
        %822 = vmatpush.msra.mxu0 0.0
        %823 = vmatpush.msra.mxu0 0.0
        %v824 = vand.u32 %v351, 4294901760
        %825 = vmatpush.msra.mxu0 %v824
        %v826 = vand.u32 %v653, 4294901760
        %827 = vmatmul.f32.gmra.mxu0 %v826
        %v828 = vpop.f32.mrf.mxu0
        %v829 = vadd.f32 %v803, %v828
        %v830 = vand.u32 %v656, 4294901760
        %831 = vmatmul.f32.gmra.mxu0 %v830
        %v832 = vpop.f32.mrf.mxu0
        %v833 = vadd.f32 %v807, %v832
        %834 = vdwg.mxu0
        %835 = vmatpush.msra.mxu0 0.0
        %836 = vmatpush.msra.mxu0 0.0
        %837 = vmatpush.msra.mxu0 0.0
        %838 = vmatpush.msra.mxu0 0.0
        %839 = vmatpush.msra.mxu0 0.0
        %840 = vmatpush.msra.mxu0 0.0
        %841 = vmatpush.msra.mxu0 0.0
        %842 = vmatpush.msra.mxu0 0.0
        %843 = vmatpush.msra.mxu0 0.0
        %844 = vmatpush.msra.mxu0 0.0
        %845 = vmatpush.msra.mxu0 0.0
        %846 = vmatpush.msra.mxu0 0.0
        %847 = vmatpush.msra.mxu0 0.0
        %848 = vmatpush.msra.mxu0 0.0
        %849 = vmatpush.msra.mxu0 0.0
        %v850 = vand.u32 %v352, 4294901760
        %851 = vmatpush.msra.mxu0 %v850
        %v852 = vand.u32 %v653, 4294901760
        %v853 = vsub.f32 %v653, %v852
        %v854 = vand.u32 %v853, 4294901760
        %v855 = vsub.f32 %v853, %v854
        %v856 = vand.u32 %v855, 4294901760
        %857 = vmatmul.f32.gmra.mxu0 %v856
        %v858 = vpop.f32.mrf.mxu0
        %v859 = vadd.f32 0.0, %v858
        %v860 = vand.u32 %v656, 4294901760
        %v861 = vsub.f32 %v656, %v860
        %v862 = vand.u32 %v861, 4294901760
        %v863 = vsub.f32 %v861, %v862
        %v864 = vand.u32 %v863, 4294901760
        %865 = vmatmul.f32.gmra.mxu0 %v864
        %v866 = vpop.f32.mrf.mxu0
        %v867 = vadd.f32 0.0, %v866
        %868 = vdwg.mxu0
        %869 = vmatpush.msra.mxu0 0.0
        %870 = vmatpush.msra.mxu0 0.0
        %871 = vmatpush.msra.mxu0 0.0
        %872 = vmatpush.msra.mxu0 0.0
        %873 = vmatpush.msra.mxu0 0.0
        %874 = vmatpush.msra.mxu0 0.0
        %875 = vmatpush.msra.mxu0 0.0
        %876 = vmatpush.msra.mxu0 0.0
        %877 = vmatpush.msra.mxu0 0.0
        %878 = vmatpush.msra.mxu0 0.0
        %879 = vmatpush.msra.mxu0 0.0
        %880 = vmatpush.msra.mxu0 0.0
        %881 = vmatpush.msra.mxu0 0.0
        %882 = vmatpush.msra.mxu0 0.0
        %883 = vmatpush.msra.mxu0 0.0
        %v884 = vand.u32 %v352, 4294901760
        %v885 = vsub.f32 %v352, %v884
        %v886 = vand.u32 %v885, 4294901760
        %v887 = vsub.f32 %v885, %v886
        %v888 = vand.u32 %v887, 4294901760
        %889 = vmatpush.msra.mxu0 %v888
        %v890 = vand.u32 %v653, 4294901760
        %891 = vmatmul.f32.gmra.mxu0 %v890
        %v892 = vpop.f32.mrf.mxu0
        %v893 = vadd.f32 %v859, %v892
        %v894 = vand.u32 %v656, 4294901760
        %895 = vmatmul.f32.gmra.mxu0 %v894
        %v896 = vpop.f32.mrf.mxu0
        %v897 = vadd.f32 %v867, %v896
        %898 = vdwg.mxu0
        %899 = vmatpush.msra.mxu0 0.0
        %900 = vmatpush.msra.mxu0 0.0
        %901 = vmatpush.msra.mxu0 0.0
        %902 = vmatpush.msra.mxu0 0.0
        %903 = vmatpush.msra.mxu0 0.0
        %904 = vmatpush.msra.mxu0 0.0
        %905 = vmatpush.msra.mxu0 0.0
        %906 = vmatpush.msra.mxu0 0.0
        %907 = vmatpush.msra.mxu0 0.0
        %908 = vmatpush.msra.mxu0 0.0
        %909 = vmatpush.msra.mxu0 0.0
        %910 = vmatpush.msra.mxu0 0.0
        %911 = vmatpush.msra.mxu0 0.0
        %912 = vmatpush.msra.mxu0 0.0
        %913 = vmatpush.msra.mxu0 0.0
        %v914 = vand.u32 %v352, 4294901760
        %v915 = vsub.f32 %v352, %v914
        %916 = vmatpush.msra.mxu0 %v915
        %v917 = vand.u32 %v653, 4294901760
        %v918 = vsub.f32 %v653, %v917
        %919 = vmatmul.f32.gmra.mxu0 %v918
        %v920 = vpop.f32.mrf.mxu0
        %v921 = vadd.f32 %v893, %v920
        %v922 = vand.u32 %v656, 4294901760
        %v923 = vsub.f32 %v656, %v922
        %924 = vmatmul.f32.gmra.mxu0 %v923
        %v925 = vpop.f32.mrf.mxu0
        %v926 = vadd.f32 %v897, %v925
        %927 = vdwg.mxu0
        %928 = vmatpush.msra.mxu0 0.0
        %929 = vmatpush.msra.mxu0 0.0
        %930 = vmatpush.msra.mxu0 0.0
        %931 = vmatpush.msra.mxu0 0.0
        %932 = vmatpush.msra.mxu0 0.0
        %933 = vmatpush.msra.mxu0 0.0
        %934 = vmatpush.msra.mxu0 0.0
        %935 = vmatpush.msra.mxu0 0.0
        %936 = vmatpush.msra.mxu0 0.0
        %937 = vmatpush.msra.mxu0 0.0
        %938 = vmatpush.msra.mxu0 0.0
        %939 = vmatpush.msra.mxu0 0.0
        %940 = vmatpush.msra.mxu0 0.0
        %941 = vmatpush.msra.mxu0 0.0
        %942 = vmatpush.msra.mxu0 0.0
        %v943 = vand.u32 %v352, 4294901760
        %944 = vmatpush.msra.mxu0 %v943
        %v945 = vand.u32 %v653, 4294901760
        %v946 = vsub.f32 %v653, %v945
        %v947 = vand.u32 %v946, 4294901760
        %948 = vmatmul.f32.gmra.mxu0 %v947
        %v949 = vpop.f32.mrf.mxu0
        %v950 = vadd.f32 %v921, %v949
        %v951 = vand.u32 %v656, 4294901760
        %v952 = vsub.f32 %v656, %v951
        %v953 = vand.u32 %v952, 4294901760
        %954 = vmatmul.f32.gmra.mxu0 %v953
        %v955 = vpop.f32.mrf.mxu0
        %v956 = vadd.f32 %v926, %v955
        %957 = vdwg.mxu0
        %958 = vmatpush.msra.mxu0 0.0
        %959 = vmatpush.msra.mxu0 0.0
        %960 = vmatpush.msra.mxu0 0.0
        %961 = vmatpush.msra.mxu0 0.0
        %962 = vmatpush.msra.mxu0 0.0
        %963 = vmatpush.msra.mxu0 0.0
        %964 = vmatpush.msra.mxu0 0.0
        %965 = vmatpush.msra.mxu0 0.0
        %966 = vmatpush.msra.mxu0 0.0
        %967 = vmatpush.msra.mxu0 0.0
        %968 = vmatpush.msra.mxu0 0.0
        %969 = vmatpush.msra.mxu0 0.0
        %970 = vmatpush.msra.mxu0 0.0
        %971 = vmatpush.msra.mxu0 0.0
        %972 = vmatpush.msra.mxu0 0.0
        %v973 = vand.u32 %v352, 4294901760
        %v974 = vsub.f32 %v352, %v973
        %v975 = vand.u32 %v974, 4294901760
        %976 = vmatpush.msra.mxu0 %v975
        %v977 = vand.u32 %v653, 4294901760
        %978 = vmatmul.f32.gmra.mxu0 %v977
        %v979 = vpop.f32.mrf.mxu0
        %v980 = vadd.f32 %v950, %v979
        %v981 = vand.u32 %v656, 4294901760
        %982 = vmatmul.f32.gmra.mxu0 %v981
        %v983 = vpop.f32.mrf.mxu0
        %v984 = vadd.f32 %v956, %v983
        %985 = vdwg.mxu0
        %986 = vmatpush.msra.mxu0 0.0
        %987 = vmatpush.msra.mxu0 0.0
        %988 = vmatpush.msra.mxu0 0.0
        %989 = vmatpush.msra.mxu0 0.0
        %990 = vmatpush.msra.mxu0 0.0
        %991 = vmatpush.msra.mxu0 0.0
        %992 = vmatpush.msra.mxu0 0.0
        %993 = vmatpush.msra.mxu0 0.0
        %994 = vmatpush.msra.mxu0 0.0
        %995 = vmatpush.msra.mxu0 0.0
        %996 = vmatpush.msra.mxu0 0.0
        %997 = vmatpush.msra.mxu0 0.0
        %998 = vmatpush.msra.mxu0 0.0
        %999 = vmatpush.msra.mxu0 0.0
        %1000 = vmatpush.msra.mxu0 0.0
        %v1001 = vand.u32 %v352, 4294901760
        %1002 = vmatpush.msra.mxu0 %v1001
        %v1003 = vand.u32 %v653, 4294901760
        %1004 = vmatmul.f32.gmra.mxu0 %v1003
        %v1005 = vpop.f32.mrf.mxu0
        %v1006 = vadd.f32 %v980, %v1005
        %v1007 = vand.u32 %v656, 4294901760
        %1008 = vmatmul.f32.gmra.mxu0 %v1007
        %v1009 = vpop.f32.mrf.mxu0
        %v1010 = vadd.f32 %v984, %v1009
        %1011 = vdwg.mxu0
        %v1014 = vrot.slane %v648, 6
        %vm1015 = vcmask 1041408
        %v1016 = vsel %vm1015, %v502, %v1014
        %1018 = vst [vmem:[%s310] sm:$0xf] %v1016
        %1019 = vst [vmem:[%s281] sm:$0xff] %v829
        %1020 = vst [vmem:[%s281 + $0x8] sm:$0xff] %v1006
        %1021 = vst [vmem:[%s281 + $0x10] sm:$0xff] %v833
        %1022 = vst [vmem:[%s281 + $0x18] sm:$0xff] %v1010
        %v1023 = vsel %vm1015, %v502, 0.0
        %v1024 = vsel %vm1015, %v648, 0.0
        %v1025 = vadd.f32 %v1023, %v1024
        %1026 = vadd.xlane.f32.xlu0 %v1025
        %v1027 = vpop.xlane.xlu0 %1026
        %v1028 = vmul.f32 %v502, %v502
        %v1029 = vmul.f32 %v648, %v648
        %v1030 = vsel %vm1015, %v1028, 0.0
        %v1031 = vsel %vm1015, %v1029, 0.0
        %v1032 = vadd.f32 %v1030, %v1031
        %1033 = vadd.xlane.f32.xlu0 %v1032
        %v1034 = vpop.xlane.xlu0 %1033
        %vm1035 = vcmask 7168
        %v1036 = vsel %vm1035, %v1027, %v1034
        %vm1037 = vcmask 9216
        %1038 = vst.msk [vmem:[%s320] sm:$0x3] %vm1037, %v1036
        %s1039 = smul.u32 2, %s23
        %p1040 = scmp.lt.s32.totalorder %s22, 1
        %s1041 = scalar_select %p1040, %s22, 1
        %p1042 = scmp.lt.s32.totalorder %s1039, 3
        %s1043 = scalar_select %p1042, %s1039, 3
        %s1044 = smul.addr %s1041, 4
        %s1045 = sadd.s32 %s1043, %s1044
        %s1046 = smul.addr %s1045, 2
        %s1047 = scalar_lea.vmem %s4, %s1046
        %s1048 = sand.u32 %s159, 1
        %s1049 = sand.u32 %s159, 1
        %s1050 = smul.addr %s1049, 32
        %s1051 = scalar_lea.vmem [#allocation2], %s1050
        %p1052 = scmp.lt.s32.totalorder %s22, 1
        %s1053 = scalar_select %p1052, %s22, 1
        %p1054 = scmp.lt.s32.totalorder %s23, 1
        %s1055 = scalar_select %p1054, %s23, 1
        %s1056 = smul.addr %s1053, 2
        %s1057 = sadd.s32 %s1055, %s1056
        %s1058 = smul.addr %s1057, 2
        %s1059 = scalar_lea.vmem %s6, %s1058
        // Predicated region
        $region37: #{dmf_unit_forward.5} parent=35 // pred_check
          %p1060 = pneg %p141
        $region38: #{dmf_unit_forward.5} parent=35 // pred_check_branch
          %1062 = sbr.rel (%p1060) target = $region40
        $region39: #{dmf_unit_forward.5} parent=35 // pred_region
          %s1063 = smul.u32 2, %s23
        $region40: #{dmf_unit_forward.5} parent=35 // pred_fallthru
          _
        // Predicated region
        $region41: #{dmf_unit_forward.5} parent=35 // pred_check
          %p1064 = pneg %p169
        $region42: #{dmf_unit_forward.5} parent=35 // pred_check_branch
          %1066 = sbr.rel (%p1064) target = $region44
        $region43: #{dmf_unit_forward.5} parent=35 // pred_region
          %s1067 = smul.u32 2, %s23
          %s1068 = smul.addr %s22, 8
          %s1069 = sadd.s32 %s1067, %s1068
          %s1070 = smul.addr %s1069, 8
          %s1071 = scalar_lea.vmem %s5, %s1070
          // Predicated region
          $region45: #{dmf_unit_forward.5} parent=43 // pred_check
            _
          $region46: #{dmf_unit_forward.5} parent=43 // pred_check_branch
            %1073 = sbr.rel (0) target = $region48
          $region47: #{dmf_unit_forward.5} parent=43 // pred_region
            // Predicated region
            $region49: #{dmf_unit_forward.5} parent=47 // pred_check
              _
            $region50: #{dmf_unit_forward.5} parent=47 // pred_check_branch
              %1075 = sbr.rel (0) target = $region52
            $region51: #{dmf_unit_forward.5} parent=47 // pred_region
              loop: start=0, step=1, limit=1
              $region53: #{dmf_unit_forward.5} parent=51 // loop_pre_header
                _
              $region54: #{dmf_unit_forward.5} parent=51 // loop_header
                %s1077 = sphi 0, %s1081
                %p1078 = scmp.ge.s32.totalorder %s1077, 1
                %s1082 = sphi %s1051, %s1051
                %s1083 = sphi %s1071, %s1071
              $region55: #{dmf_unit_forward.5} parent=51 // loop_header_branch
                %1080 = sbr.rel (%p1078) target = $region59
              $region56: #{dmf_unit_forward.5} parent=51 // loop_body
                %v1084 = vld [vmem:[%s1082] sm:$0xff]
                %1085 = vst [vmem:[%s1083] sm:$0xff] %v1084
                %v1086 = vld [vmem:[%s1082 + $0x8] sm:$0xff]
                %1087 = vst [vmem:[%s1083 + $0x8] sm:$0xff] %v1086
                %v1088 = vld [vmem:[%s1082 + $0x10] sm:$0xff]
                %1089 = vst [vmem:[%s1083 + $0x20] sm:$0xff] %v1088
                %v1090 = vld [vmem:[%s1082 + $0x18] sm:$0xff]
                %1091 = vst [vmem:[%s1083 + $0x28] sm:$0xff] %v1090
              $region57: #{dmf_unit_forward.5} parent=51 // loop_footer
                %s1081 = sadd.s32 1, %s1077
              $region58: #{dmf_unit_forward.5} parent=51 // loop_footer_branch
                %1076 = sbr.rel target = $region54
              $region59: #{dmf_unit_forward.5} parent=51 // loop_exit
                _
            $region52: #{dmf_unit_forward.5} parent=47 // pred_fallthru
              _
            // Predicated region
            $region60: #{dmf_unit_forward.5} parent=47 // pred_check
              _
            $region61: #{dmf_unit_forward.5} parent=47 // pred_check_branch
              %1093 = sbr.rel target = $region63
            $region62: #{dmf_unit_forward.5} parent=47 // pred_region
              _
            $region63: #{dmf_unit_forward.5} parent=47 // pred_fallthru
              _
          $region48: #{dmf_unit_forward.5} parent=43 // pred_fallthru
            _
          %1094 = vnop
        $region44: #{dmf_unit_forward.5} parent=35 // pred_fallthru
          _
        // Predicated region
        $region64: #{dmf_unit_forward.5} parent=35 // pred_check
          %p1095 = pneg %p197
        $region65: #{dmf_unit_forward.5} parent=35 // pred_check_branch
          %1097 = sbr.rel (%p1095) target = $region67
        $region66: #{dmf_unit_forward.5} parent=35 // pred_region
          _
        $region67: #{dmf_unit_forward.5} parent=35 // pred_fallthru
          _
      $region36: #{dmf_unit_forward.5} parent=5 // pred_fallthru
        _
      %p1098 = scmp.le.s32.totalorder 2, %s13
      // Predicated region
      $region68: #{dmf_unit_forward.5} parent=5 // pred_check
        %p1099 = pneg %p1098
      $region69: #{dmf_unit_forward.5} parent=5 // pred_check_branch
        %1101 = sbr.rel (%p1099) target = $region71
      $region70: #{dmf_unit_forward.5} parent=5 // pred_region
        %s1102 = ssub.s32 %s13, 2
        // Predicated region
        $region72: #{dmf_unit_forward.5} parent=70 // pred_check
          %p1103 = pneg %p147
        $region73: #{dmf_unit_forward.5} parent=70 // pred_check_branch
          %1105 = sbr.rel (%p1103) target = $region75
        $region74: #{dmf_unit_forward.5} parent=70 // pred_region
          %s1106 = smul.u32 2, %s25
          %p1107 = scmp.lt.s32.totalorder %s24, 1
          %s1108 = scalar_select %p1107, %s24, 1
          %p1109 = scmp.lt.s32.totalorder %s1106, 3
          %s1110 = scalar_select %p1109, %s1106, 3
          %s1111 = smul.addr %s1108, 4
          %s1112 = sadd.s32 %s1110, %s1111
          %s1113 = smul.addr %s1112, 2
          %s1114 = scalar_lea.vmem %s4, %s1113
        $region75: #{dmf_unit_forward.5} parent=70 // pred_fallthru
          _
        // Predicated region
        $region76: #{dmf_unit_forward.5} parent=70 // pred_check
          %p1115 = pneg %p175
        $region77: #{dmf_unit_forward.5} parent=70 // pred_check_branch
          %1117 = sbr.rel (%p1115) target = $region79
        $region78: #{dmf_unit_forward.5} parent=70 // pred_region
          %s1118 = sand.u32 %s160, 1
          %s1119 = sand.u32 %s160, 1
          %s1120 = smul.addr %s1119, 32
          %s1121 = scalar_lea.vmem [#allocation2], %s1120
        $region79: #{dmf_unit_forward.5} parent=70 // pred_fallthru
          _
        // Predicated region
        $region80: #{dmf_unit_forward.5} parent=70 // pred_check
          %p1122 = pneg %p203
        $region81: #{dmf_unit_forward.5} parent=70 // pred_check_branch
          %1124 = sbr.rel (%p1122) target = $region83
        $region82: #{dmf_unit_forward.5} parent=70 // pred_region
          %p1125 = scmp.lt.s32.totalorder %s24, 1
          %s1126 = scalar_select %p1125, %s24, 1
          %p1127 = scmp.lt.s32.totalorder %s25, 1
          %s1128 = scalar_select %p1127, %s25, 1
          %s1129 = smul.addr %s1126, 2
          %s1130 = sadd.s32 %s1128, %s1129
          %s1131 = smul.addr %s1130, 2
          %s1132 = scalar_lea.vmem %s6, %s1131
        $region83: #{dmf_unit_forward.5} parent=70 // pred_fallthru
          _
      $region71: #{dmf_unit_forward.5} parent=5 // pred_fallthru
        _
    $region6: #{dmf_unit_forward.5} parent=1 // loop_footer
      %s17 = sadd.s32 1, %s13
    $region7: #{dmf_unit_forward.5} parent=1 // loop_footer_branch
      %12 = sbr.rel target = $region3
    $region8: #{dmf_unit_forward.5} parent=1 // loop_exit
      _

// kernel: dmf_unit_forward.7
$region0: #{dmf_unit_forward.7}
  #allocation0 [shape = 'u32[]', space=smem, size = 0x4, offset = 0x4, fixed_abs, tag = 'smem constant byte address 0x4 - core index']
  #allocation1 [shape = 'u32[72,128]{1,0:T(1,128)}', space=vmem, size = 0x9000, scoped, tag = 'internal scratch']
  %s0 = inlined_call_operand.vmem [shape: f32[2,8,512], index: 0, kind: input, shape index: {}]
  %s1 = inlined_call_operand.vmem [shape: f32[8,6], index: 1, kind: input, shape index: {}]
  %s2 = inlined_call_operand.vmem [shape: f32[2,8,512], index: 2, kind: output, shape index: {0}]
  %s3 = inlined_call_operand.vmem [shape: f32[2,8,512], index: 3, kind: output, shape index: {1}]
  %s4 = inlined_call_operand.vmem [shape: f32[2,8,512], index: 4, kind: output, shape index: {2}]
  %5 = xla_tuple %s2, %s3, %s4
  %s6 = sld [smem:[#allocation0]]
  $region57: #{dmf_unit_forward.7} parent=0
    _
  %s8 = ssub.s32 1, %s6
  %s9 = scalar_select 0, %s8, %s6
  loop: start=0, step=1, limit=6
  $region2: #{dmf_unit_forward.7} parent=0 // loop_pre_header
    _
  $region3: #{dmf_unit_forward.7} parent=0 // loop_header
    %s11 = sphi 0, %s15
    %p12 = scmp.ge.s32.totalorder %s11, 6
    %s18 = sphi 0, %s30
    %s19 = sphi 0, %s26
    %s20 = sphi 0, %s18
    %s21 = sphi 0, %s19
    %s22 = sphi 0, %s20
    %s23 = sphi 0, %s21
    %s35 = sphi 0, %s37
    %s38 = sphi 0, %s35
    %s39 = sphi 0, %s38
    %s55 = sphi 0, %s39
    %s59 = sphi 0, %s59
    %s61 = sphi 0, %s59
    %s62 = sphi 0, %s61
    %s76 = sphi 0, %s62
    %s84 = sphi 0, %s86
    %s87 = sphi 0, %s84
    %s88 = sphi 0, %s87
    %s104 = sphi 0, %s88
    %s112 = sphi 0, %s114
    %s115 = sphi 0, %s112
    %s116 = sphi 0, %s115
    %s132 = sphi 0, %s116
    %s140 = sphi 0, %s142
    %s143 = sphi 0, %s140
    %s144 = sphi 0, %s143
    %s160 = sphi 0, %s144
  $region4: #{dmf_unit_forward.7} parent=0 // loop_header_branch
    %14 = sbr.rel (%p12) target = $region8
  $region5: #{dmf_unit_forward.7} parent=0 // loop_body
    %s16 = ssub.s32 %s11, 1
    %s17 = ssub.s32 %s11, 2
    %s24 = sadd.s32 1, %s19
    %p25 = scmp.ge.s32.totalorder %s24, 2
    %s26 = scalar_select %p25, 0, %s24
    %s27 = sadd.s32 1, %s18
    %s28 = scalar_select %p25, %s27, %s18
    %p29 = scmp.ge.s32.totalorder %s28, 2
    %s30 = scalar_select %p29, 0, %s28
    %s31 = ssub.s32 %s18, %s30
    %s32 = ssub.s32 %s19, %s26
    %s33 = sor.u32 %s31, %s32
    %p34 = scmp.eq.s32.totalorder %s33, 0
    %s36 = sadd.s32 %s35, 1
    %s37 = scalar_select %p34, %s35, %s36
    %p40 = pneg %p34
    %p41 = scmp.eq.s32.totalorder %s11, 3
    %p42 = por %p40, %p41
    %p43 = scmp.ne.s32.totalorder %s35, %s38
    %p44 = scmp.eq.s32.totalorder %s11, 0
    %p45 = por %p43, %p44
    %p46 = scmp.ne.s32.totalorder %s35, %s38
    %p47 = scmp.eq.s32.totalorder %s16, 3
    %p48 = por %p46, %p47
    %p49 = scmp.ne.s32.totalorder %s38, %s39
    %p50 = scmp.eq.s32.totalorder %s16, 0
    %p51 = por %p49, %p50
    %p52 = scmp.ne.s32.totalorder %s38, %s39
    %p53 = scmp.eq.s32.totalorder %s17, 3
    %p54 = por %p52, %p53
    %p56 = scmp.ne.s32.totalorder %s39, %s55
    %p57 = scmp.eq.s32.totalorder %s17, 0
    %p58 = por %p56, %p57
    %s60 = sadd.s32 %s59, 1
    %p63 = scmp.eq.s32.totalorder %s11, 3
    %p64 = scmp.ne.s32.totalorder %s59, %s61
    %p65 = scmp.eq.s32.totalorder %s11, 0
    %p66 = por %p64, %p65
    %p67 = scmp.ne.s32.totalorder %s59, %s61
    %p68 = scmp.eq.s32.totalorder %s16, 3
    %p69 = por %p67, %p68
    %p70 = scmp.ne.s32.totalorder %s61, %s62
    %p71 = scmp.eq.s32.totalorder %s16, 0
    %p72 = por %p70, %p71
    %p73 = scmp.ne.s32.totalorder %s61, %s62
    %p74 = scmp.eq.s32.totalorder %s17, 3
    %p75 = por %p73, %p74
    %p77 = scmp.ne.s32.totalorder %s62, %s76
    %p78 = scmp.eq.s32.totalorder %s17, 0
    %p79 = por %p77, %p78
    %s80 = ssub.s32 %s18, %s30
    %s81 = ssub.s32 %s19, %s26
    %s82 = sor.u32 %s80, %s81
    %p83 = scmp.eq.s32.totalorder %s82, 0
    %s85 = sadd.s32 %s84, 1
    %s86 = scalar_select %p83, %s84, %s85
    %p89 = pneg %p83
    %p90 = scmp.eq.s32.totalorder %s11, 3
    %p91 = por %p89, %p90
    %p92 = scmp.ne.s32.totalorder %s84, %s87
    %p93 = scmp.eq.s32.totalorder %s11, 0
    %p94 = por %p92, %p93
    %p95 = scmp.ne.s32.totalorder %s84, %s87
    %p96 = scmp.eq.s32.totalorder %s16, 3
    %p97 = por %p95, %p96
    %p98 = scmp.ne.s32.totalorder %s87, %s88
    %p99 = scmp.eq.s32.totalorder %s16, 0
    %p100 = por %p98, %p99
    %p101 = scmp.ne.s32.totalorder %s87, %s88
    %p102 = scmp.eq.s32.totalorder %s17, 3
    %p103 = por %p101, %p102
    %p105 = scmp.ne.s32.totalorder %s88, %s104
    %p106 = scmp.eq.s32.totalorder %s17, 0
    %p107 = por %p105, %p106
    %s108 = ssub.s32 %s18, %s30
    %s109 = ssub.s32 %s19, %s26
    %s110 = sor.u32 %s108, %s109
    %p111 = scmp.eq.s32.totalorder %s110, 0
    %s113 = sadd.s32 %s112, 1
    %s114 = scalar_select %p111, %s112, %s113
    %p117 = pneg %p111
    %p118 = scmp.eq.s32.totalorder %s11, 3
    %p119 = por %p117, %p118
    %p120 = scmp.ne.s32.totalorder %s112, %s115
    %p121 = scmp.eq.s32.totalorder %s11, 0
    %p122 = por %p120, %p121
    %p123 = scmp.ne.s32.totalorder %s112, %s115
    %p124 = scmp.eq.s32.totalorder %s16, 3
    %p125 = por %p123, %p124
    %p126 = scmp.ne.s32.totalorder %s115, %s116
    %p127 = scmp.eq.s32.totalorder %s16, 0
    %p128 = por %p126, %p127
    %p129 = scmp.ne.s32.totalorder %s115, %s116
    %p130 = scmp.eq.s32.totalorder %s17, 3
    %p131 = por %p129, %p130
    %p133 = scmp.ne.s32.totalorder %s116, %s132
    %p134 = scmp.eq.s32.totalorder %s17, 0
    %p135 = por %p133, %p134
    %s136 = ssub.s32 %s18, %s30
    %s137 = ssub.s32 %s19, %s26
    %s138 = sor.u32 %s136, %s137
    %p139 = scmp.eq.s32.totalorder %s138, 0
    %s141 = sadd.s32 %s140, 1
    %s142 = scalar_select %p139, %s140, %s141
    %p145 = pneg %p139
    %p146 = scmp.eq.s32.totalorder %s11, 3
    %p147 = por %p145, %p146
    %p148 = scmp.ne.s32.totalorder %s140, %s143
    %p149 = scmp.eq.s32.totalorder %s11, 0
    %p150 = por %p148, %p149
    %p151 = scmp.ne.s32.totalorder %s140, %s143
    %p152 = scmp.eq.s32.totalorder %s16, 3
    %p153 = por %p151, %p152
    %p154 = scmp.ne.s32.totalorder %s143, %s144
    %p155 = scmp.eq.s32.totalorder %s16, 0
    %p156 = por %p154, %p155
    %p157 = scmp.ne.s32.totalorder %s143, %s144
    %p158 = scmp.eq.s32.totalorder %s17, 3
    %p159 = por %p157, %p158
    %p161 = scmp.ne.s32.totalorder %s144, %s160
    %p162 = scmp.eq.s32.totalorder %s17, 0
    %p163 = por %p161, %p162
    %p164 = scmp.le.s32.totalorder 1, %s11
    %p165 = scmp.lt.s32.totalorder %s11, 5
    %p166 = pnand %p164, %p165
    %p167 = pneg %p166
    // Predicated region
    $region9: #{dmf_unit_forward.7} parent=5 // pred_check
      _
    $region10: #{dmf_unit_forward.7} parent=5 // pred_check_branch
      %169 = sbr.rel (%p166) target = $region12
    $region11: #{dmf_unit_forward.7} parent=5 // pred_region
      %s170 = ssub.s32 %s11, 1
      // Predicated region
      $region13: #{dmf_unit_forward.7} parent=11 // pred_check
        %p171 = pneg %p72
      $region14: #{dmf_unit_forward.7} parent=11 // pred_check_branch
        %173 = sbr.rel (%p171) target = $region16
      $region15: #{dmf_unit_forward.7} parent=11 // pred_region
        _
      $region16: #{dmf_unit_forward.7} parent=11 // pred_fallthru
        _
    $region12: #{dmf_unit_forward.7} parent=5 // pred_fallthru
      _
    %p174 = scmp.lt.s32.totalorder %s11, 4
    // Predicated region
    $region17: #{dmf_unit_forward.7} parent=5 // pred_check
      %p175 = pneg %p174
    $region18: #{dmf_unit_forward.7} parent=5 // pred_check_branch
      %177 = sbr.rel (%p175) target = $region20
    $region19: #{dmf_unit_forward.7} parent=5 // pred_region
      // Predicated region
      $region21: #{dmf_unit_forward.7} parent=19 // pred_check
        %p178 = pneg %p45
      $region22: #{dmf_unit_forward.7} parent=19 // pred_check_branch
        %180 = sbr.rel (%p178) target = $region24
      $region23: #{dmf_unit_forward.7} parent=19 // pred_region
        %s181 = smul.u32 2, %s19
        %p182 = scmp.lt.s32.totalorder %s18, 1
        %s183 = scalar_select %p182, %s18, 1
        %p184 = scmp.lt.s32.totalorder %s181, 3
        %s185 = scalar_select %p184, %s181, 3
        %s186 = smul.addr %s183, 4
        %s187 = sadd.s32 %s185, %s186
        %s188 = smul.addr %s187, 8
        %s189 = scalar_lea.vmem %s0, %s188
        %s190 = smul.u32 2, %s19
      $region24: #{dmf_unit_forward.7} parent=19 // pred_fallthru
        _
    $region20: #{dmf_unit_forward.7} parent=5 // pred_fallthru
      _
    %p191 = scmp.le.s32.totalorder 1, %s11
    %p192 = scmp.lt.s32.totalorder %s11, 5
    %p193 = pnand %p191, %p192
    %p194 = pneg %p193
    // Predicated region
    $region25: #{dmf_unit_forward.7} parent=5 // pred_check
      _
    $region26: #{dmf_unit_forward.7} parent=5 // pred_check_branch
      %196 = sbr.rel (%p193) target = $region28
    $region27: #{dmf_unit_forward.7} parent=5 // pred_region
      %s197 = ssub.s32 %s11, 1
      %s198 = smul.u32 2, %s21
      %p199 = scmp.lt.s32.totalorder %s20, 1
      %s200 = scalar_select %p199, %s20, 1
      %p201 = scmp.lt.s32.totalorder %s198, 3
      %s202 = scalar_select %p201, %s198, 3
      %s203 = smul.addr %s200, 4
      %s204 = sadd.s32 %s202, %s203
      %s205 = smul.addr %s204, 8
      %s206 = scalar_lea.vmem %s0, %s205
      %p207 = pneg %p51
      %p208 = pneg %p48
      %p209 = pneg %p72
      %p210 = pneg %p69
      %p211 = pneg %p100
      %p212 = pneg %p97
      %s213 = smul.u32 2, %s21
      %p214 = scmp.lt.s32.totalorder %s20, 1
      %s215 = scalar_select %p214, %s20, 1
      %p216 = scmp.lt.s32.totalorder %s213, 3
      %s217 = scalar_select %p216, %s213, 3
      %s218 = smul.addr %s215, 4
      %s219 = sadd.s32 %s217, %s218
      %s220 = smul.addr %s219, 8
      %s221 = scalar_lea.vmem %s2, %s220
      %p222 = pneg %p128
      %p223 = pneg %p125
      %s224 = smul.u32 2, %s21
      %p225 = scmp.lt.s32.totalorder %s20, 1
      %s226 = scalar_select %p225, %s20, 1
      %p227 = scmp.lt.s32.totalorder %s224, 3
      %s228 = scalar_select %p227, %s224, 3
      %s229 = smul.addr %s226, 4
      %s230 = sadd.s32 %s228, %s229
      %s231 = smul.addr %s230, 8
      %s232 = scalar_lea.vmem %s3, %s231
      %p233 = pneg %p156
      %p234 = pneg %p153
      %s235 = smul.u32 2, %s21
      %p236 = scmp.lt.s32.totalorder %s20, 1
      %s237 = scalar_select %p236, %s20, 1
      %p238 = scmp.lt.s32.totalorder %s235, 3
      %s239 = scalar_select %p238, %s235, 3
      %s240 = smul.addr %s237, 4
      %s241 = sadd.s32 %s239, %s240
      %s242 = smul.addr %s241, 8
      %s243 = scalar_lea.vmem %s4, %s242
      %s244 = smul.u32 2, %s21
      %p245 = scmp.lt.s32.totalorder %s20, 1
      %s246 = scalar_select %p245, %s20, 1
      %p247 = scmp.lt.s32.totalorder %s244, 3
      %s248 = scalar_select %p247, %s244, 3
      %s249 = smul.addr %s246, 4
      %s250 = sadd.s32 %s248, %s249
      %s251 = smul.addr %s250, 8
      %s252 = scalar_lea.vmem %s0, %s251
      %s253 = smul.u32 2, %s21
      %s254 = smul.u32 2, %s21
      %p255 = scmp.lt.s32.totalorder %s20, 1
      %s256 = scalar_select %p255, %s20, 1
      %p257 = scmp.lt.s32.totalorder %s254, 3
      %s258 = scalar_select %p257, %s254, 3
      %s259 = smul.addr %s256, 4
      %s260 = sadd.s32 %s258, %s259
      %s261 = smul.addr %s260, 8
      %s262 = scalar_lea.vmem %s2, %s261
      %s263 = smul.u32 2, %s21
      %s264 = smul.u32 2, %s21
      %p265 = scmp.lt.s32.totalorder %s20, 1
      %s266 = scalar_select %p265, %s20, 1
      %p267 = scmp.lt.s32.totalorder %s264, 3
      %s268 = scalar_select %p267, %s264, 3
      %s269 = smul.addr %s266, 4
      %s270 = sadd.s32 %s268, %s269
      %s271 = smul.addr %s270, 8
      %s272 = scalar_lea.vmem %s3, %s271
      %s273 = smul.u32 2, %s21
      %s274 = smul.u32 2, %s21
      %p275 = scmp.lt.s32.totalorder %s20, 1
      %s276 = scalar_select %p275, %s20, 1
      %p277 = scmp.lt.s32.totalorder %s274, 3
      %s278 = scalar_select %p277, %s274, 3
      %s279 = smul.addr %s276, 4
      %s280 = sadd.s32 %s278, %s279
      %s281 = smul.addr %s280, 8
      %s282 = scalar_lea.vmem %s4, %s281
      %s283 = smul.u32 2, %s21
      %v284 = vld [vmem:[%s252] sm:$0xff]
      %v285 = vld [vmem:[%s252 + $0x8] sm:$0xff]
      %v286 = vld [vmem:[%s1] sm:$0xff]
      %288 = vset.pattern.permute.xlu0 0
      %289 = vperm.xlu0 %288, %v286
      %v290 = vpop.permute.xlu0 %289
      %v292 = vmul.f32 %v284, %v290
      %v293 = vmul.f32 %v285, %v290
      %294 = vset.pattern.permute.xlu0 1
      %295 = vperm.xlu0 %294, %v286
      %v296 = vpop.permute.xlu0 %295
      %v298 = vadd.f32 %v292, %v296
      %v299 = vadd.f32 %v293, %v296
      %v300 = vmax.f32 %v298, 0.0
      %v301 = vmax.f32 %v299, 0.0
      %302 = vst [vmem:[%s262] sm:$0xff] %v300
      %303 = vst [vmem:[%s262 + $0x8] sm:$0xff] %v301
      %v304 = vld [vmem:[%s1] sm:$0xff]
      %306 = vset.pattern.permute.xlu0 2
      %307 = vperm.xlu0 %306, %v304
      %v308 = vpop.permute.xlu0 %307
      %v310 = vmul.f32 %v284, %v308
      %v311 = vmul.f32 %v285, %v308
      %312 = vset.pattern.permute.xlu0 3
      %313 = vperm.xlu0 %312, %v304
      %v314 = vpop.permute.xlu0 %313
      %v316 = vadd.f32 %v310, %v314
      %v317 = vadd.f32 %v311, %v314
      %v318 = vmax.f32 %v316, 0.0
      %v319 = vmax.f32 %v317, 0.0
      %320 = vst [vmem:[%s272] sm:$0xff] %v318
      %321 = vst [vmem:[%s272 + $0x8] sm:$0xff] %v319
      %v322 = vld [vmem:[%s1] sm:$0xff]
      %324 = vset.pattern.permute.xlu0 4
      %325 = vperm.xlu0 %324, %v322
      %v326 = vpop.permute.xlu0 %325
      %v328 = vmul.f32 %v284, %v326
      %v329 = vmul.f32 %v285, %v326
      %330 = vset.pattern.permute.xlu0 5
      %331 = vperm.xlu0 %330, %v322
      %v332 = vpop.permute.xlu0 %331
      %v334 = vadd.f32 %v328, %v332
      %v335 = vadd.f32 %v329, %v332
      %v336 = vmax.f32 %v334, 0.0
      %v337 = vmax.f32 %v335, 0.0
      %338 = vst [vmem:[%s282] sm:$0xff] %v336
      %339 = vst [vmem:[%s282 + $0x8] sm:$0xff] %v337
      %s340 = smul.u32 2, %s21
      %p341 = scmp.lt.s32.totalorder %s20, 1
      %s342 = scalar_select %p341, %s20, 1
      %p343 = scmp.lt.s32.totalorder %s340, 3
      %s344 = scalar_select %p343, %s340, 3
      %s345 = smul.addr %s342, 4
      %s346 = sadd.s32 %s344, %s345
      %s347 = smul.addr %s346, 8
      %s348 = scalar_lea.vmem %s2, %s347
      %s349 = smul.u32 2, %s21
      %p350 = scmp.lt.s32.totalorder %s20, 1
      %s351 = scalar_select %p350, %s20, 1
      %p352 = scmp.lt.s32.totalorder %s349, 3
      %s353 = scalar_select %p352, %s349, 3
      %s354 = smul.addr %s351, 4
      %s355 = sadd.s32 %s353, %s354
      %s356 = smul.addr %s355, 8
      %s357 = scalar_lea.vmem %s3, %s356
      %s358 = smul.u32 2, %s21
      %p359 = scmp.lt.s32.totalorder %s20, 1
      %s360 = scalar_select %p359, %s20, 1
      %p361 = scmp.lt.s32.totalorder %s358, 3
      %s362 = scalar_select %p361, %s358, 3
      %s363 = smul.addr %s360, 4
      %s364 = sadd.s32 %s362, %s363
      %s365 = smul.addr %s364, 8
      %s366 = scalar_lea.vmem %s4, %s365
      // Predicated region
      $region29: #{dmf_unit_forward.7} parent=27 // pred_check
        %p367 = pneg %p97
      $region30: #{dmf_unit_forward.7} parent=27 // pred_check_branch
        %369 = sbr.rel (%p367) target = $region32
      $region31: #{dmf_unit_forward.7} parent=27 // pred_region
        %s370 = smul.u32 2, %s21
      $region32: #{dmf_unit_forward.7} parent=27 // pred_fallthru
        _
      // Predicated region
      $region33: #{dmf_unit_forward.7} parent=27 // pred_check
        %p371 = pneg %p125
      $region34: #{dmf_unit_forward.7} parent=27 // pred_check_branch
        %373 = sbr.rel (%p371) target = $region36
      $region35: #{dmf_unit_forward.7} parent=27 // pred_region
        %s374 = smul.u32 2, %s21
      $region36: #{dmf_unit_forward.7} parent=27 // pred_fallthru
        _
      // Predicated region
      $region37: #{dmf_unit_forward.7} parent=27 // pred_check
        %p375 = pneg %p153
      $region38: #{dmf_unit_forward.7} parent=27 // pred_check_branch
        %377 = sbr.rel (%p375) target = $region40
      $region39: #{dmf_unit_forward.7} parent=27 // pred_region
        %s378 = smul.u32 2, %s21
      $region40: #{dmf_unit_forward.7} parent=27 // pred_fallthru
        _
    $region28: #{dmf_unit_forward.7} parent=5 // pred_fallthru
      _
    %p379 = scmp.le.s32.totalorder 2, %s11
    // Predicated region
    $region41: #{dmf_unit_forward.7} parent=5 // pred_check
      %p380 = pneg %p379
    $region42: #{dmf_unit_forward.7} parent=5 // pred_check_branch
      %382 = sbr.rel (%p380) target = $region44
    $region43: #{dmf_unit_forward.7} parent=5 // pred_region
      %s383 = ssub.s32 %s11, 2
      // Predicated region
      $region45: #{dmf_unit_forward.7} parent=43 // pred_check
        %p384 = pneg %p103
      $region46: #{dmf_unit_forward.7} parent=43 // pred_check_branch
        %386 = sbr.rel (%p384) target = $region48
      $region47: #{dmf_unit_forward.7} parent=43 // pred_region
        %s387 = smul.u32 2, %s23
        %p388 = scmp.lt.s32.totalorder %s22, 1
        %s389 = scalar_select %p388, %s22, 1
        %p390 = scmp.lt.s32.totalorder %s387, 3
        %s391 = scalar_select %p390, %s387, 3
        %s392 = smul.addr %s389, 4
        %s393 = sadd.s32 %s391, %s392
        %s394 = smul.addr %s393, 8
        %s395 = scalar_lea.vmem %s2, %s394
      $region48: #{dmf_unit_forward.7} parent=43 // pred_fallthru
        _
      // Predicated region
      $region49: #{dmf_unit_forward.7} parent=43 // pred_check
        %p396 = pneg %p131
      $region50: #{dmf_unit_forward.7} parent=43 // pred_check_branch
        %398 = sbr.rel (%p396) target = $region52
      $region51: #{dmf_unit_forward.7} parent=43 // pred_region
        %s399 = smul.u32 2, %s23
        %p400 = scmp.lt.s32.totalorder %s22, 1
        %s401 = scalar_select %p400, %s22, 1
        %p402 = scmp.lt.s32.totalorder %s399, 3
        %s403 = scalar_select %p402, %s399, 3
        %s404 = smul.addr %s401, 4
        %s405 = sadd.s32 %s403, %s404
        %s406 = smul.addr %s405, 8
        %s407 = scalar_lea.vmem %s3, %s406
      $region52: #{dmf_unit_forward.7} parent=43 // pred_fallthru
        _
      // Predicated region
      $region53: #{dmf_unit_forward.7} parent=43 // pred_check
        %p408 = pneg %p159
      $region54: #{dmf_unit_forward.7} parent=43 // pred_check_branch
        %410 = sbr.rel (%p408) target = $region56
      $region55: #{dmf_unit_forward.7} parent=43 // pred_region
        %s411 = smul.u32 2, %s23
        %p412 = scmp.lt.s32.totalorder %s22, 1
        %s413 = scalar_select %p412, %s22, 1
        %p414 = scmp.lt.s32.totalorder %s411, 3
        %s415 = scalar_select %p414, %s411, 3
        %s416 = smul.addr %s413, 4
        %s417 = sadd.s32 %s415, %s416
        %s418 = smul.addr %s417, 8
        %s419 = scalar_lea.vmem %s4, %s418
      $region56: #{dmf_unit_forward.7} parent=43 // pred_fallthru
        _
    $region44: #{dmf_unit_forward.7} parent=5 // pred_fallthru
      _
  $region6: #{dmf_unit_forward.7} parent=0 // loop_footer
    %s15 = sadd.s32 1, %s11
  $region7: #{dmf_unit_forward.7} parent=0 // loop_footer_branch
    %10 = sbr.rel target = $region3
  $region8: #{dmf_unit_forward.7} parent=0 // loop_exit
    _

// kernel: dmf_unit_forward.8
$region0: #{dmf_unit_forward.8}
  #allocation0 [shape = 'u32[]', space=smem, size = 0x4, offset = 0x4, fixed_abs, tag = 'smem constant byte address 0x4 - core index']
  #allocation1 [shape = 'u32[72,128]{1,0:T(1,128)}', space=vmem, size = 0x9000, scoped, tag = 'internal scratch']
  %s0 = inlined_call_operand.vmem [shape: f32[2,16,512], index: 0, kind: input, shape index: {}]
  %s1 = inlined_call_operand.vmem [shape: f32[2,16,512], index: 1, kind: input, shape index: {}]
  %s2 = inlined_call_operand.vmem [shape: f32[2,16,512], index: 2, kind: input, shape index: {}]
  %s3 = inlined_call_operand.vmem [shape: f32[16,3], index: 3, kind: input, shape index: {}]
  %s4 = inlined_call_operand.vmem [shape: f32[2,16,512], index: 4, kind: output, shape index: {0}]
  %s5 = inlined_call_operand.vmem [shape: f32[2,2,16,2], index: 5, kind: output, shape index: {1}]
  %6 = xla_tuple %s4, %s5
  %s7 = sld [smem:[#allocation0]]
  $region145: #{dmf_unit_forward.8} parent=0
    _
  %s9 = ssub.s32 1, %s7
  %s10 = scalar_select 0, %s9, %s7
  $region1: #{dmf_unit_forward.8} parent=0
    #allocation2 [shape = 'u8[32768]{0}', space=vmem, size = 0x8000, scoped, tag = 'input window, operand 0']
    #allocation3 [shape = 'u8[32768]{0}', space=vmem, size = 0x8000, scoped, tag = 'input window, operand 1']
    #allocation4 [shape = 'u8[32768]{0}', space=vmem, size = 0x8000, scoped, tag = 'input window, operand 2']
    #allocation5 [shape = 'u8[32768]{0}', space=vmem, size = 0x8000, scoped, tag = 'output window, operand 0']
    loop: start=0, step=1, limit=6
    $region2: #{dmf_unit_forward.8} parent=1 // loop_pre_header
      _
    $region3: #{dmf_unit_forward.8} parent=1 // loop_header
      %s12 = sphi 0, %s16
      %p13 = scmp.ge.s32.totalorder %s12, 6
      %s19 = sphi 0, %s31
      %s20 = sphi 0, %s27
      %s21 = sphi 0, %s19
      %s22 = sphi 0, %s20
      %s23 = sphi 0, %s21
      %s24 = sphi 0, %s22
      %s36 = sphi 0, %s38
      %s39 = sphi 0, %s36
      %s40 = sphi 0, %s39
      %s56 = sphi 0, %s40
      %s64 = sphi 0, %s66
      %s67 = sphi 0, %s64
      %s68 = sphi 0, %s67
      %s84 = sphi 0, %s68
      %s92 = sphi 0, %s94
      %s95 = sphi 0, %s92
      %s96 = sphi 0, %s95
      %s112 = sphi 0, %s96
      %s116 = sphi 0, %s116
      %s118 = sphi 0, %s116
      %s119 = sphi 0, %s118
      %s133 = sphi 0, %s119
      %s141 = sphi 0, %s143
      %s144 = sphi 0, %s141
      %s145 = sphi 0, %s144
      %s161 = sphi 0, %s145
      %s169 = sphi 0, %s171
      %s172 = sphi 0, %s169
      %s173 = sphi 0, %s172
      %s189 = sphi 0, %s173
    $region4: #{dmf_unit_forward.8} parent=1 // loop_header_branch
      %15 = sbr.rel (%p13) target = $region8
    $region5: #{dmf_unit_forward.8} parent=1 // loop_body
      %s17 = ssub.s32 %s12, 1
      %s18 = ssub.s32 %s12, 2
      %s25 = sadd.s32 1, %s20
      %p26 = scmp.ge.s32.totalorder %s25, 2
      %s27 = scalar_select %p26, 0, %s25
      %s28 = sadd.s32 1, %s19
      %s29 = scalar_select %p26, %s28, %s19
      %p30 = scmp.ge.s32.totalorder %s29, 2
      %s31 = scalar_select %p30, 0, %s29
      %s32 = ssub.s32 %s19, %s31
      %s33 = ssub.s32 %s20, %s27
      %s34 = sor.u32 %s32, %s33
      %p35 = scmp.eq.s32.totalorder %s34, 0
      %s37 = sadd.s32 %s36, 1
      %s38 = scalar_select %p35, %s36, %s37
      %p41 = pneg %p35
      %p42 = scmp.eq.s32.totalorder %s12, 3
      %p43 = por %p41, %p42
      %p44 = scmp.ne.s32.totalorder %s36, %s39
      %p45 = scmp.eq.s32.totalorder %s12, 0
      %p46 = por %p44, %p45
      %p47 = scmp.ne.s32.totalorder %s36, %s39
      %p48 = scmp.eq.s32.totalorder %s17, 3
      %p49 = por %p47, %p48
      %p50 = scmp.ne.s32.totalorder %s39, %s40
      %p51 = scmp.eq.s32.totalorder %s17, 0
      %p52 = por %p50, %p51
      %p53 = scmp.ne.s32.totalorder %s39, %s40
      %p54 = scmp.eq.s32.totalorder %s18, 3
      %p55 = por %p53, %p54
      %p57 = scmp.ne.s32.totalorder %s40, %s56
      %p58 = scmp.eq.s32.totalorder %s18, 0
      %p59 = por %p57, %p58
      %s60 = ssub.s32 %s19, %s31
      %s61 = ssub.s32 %s20, %s27
      %s62 = sor.u32 %s60, %s61
      %p63 = scmp.eq.s32.totalorder %s62, 0
      %s65 = sadd.s32 %s64, 1
      %s66 = scalar_select %p63, %s64, %s65
      %p69 = pneg %p63
      %p70 = scmp.eq.s32.totalorder %s12, 3
      %p71 = por %p69, %p70
      %p72 = scmp.ne.s32.totalorder %s64, %s67
      %p73 = scmp.eq.s32.totalorder %s12, 0
      %p74 = por %p72, %p73
      %p75 = scmp.ne.s32.totalorder %s64, %s67
      %p76 = scmp.eq.s32.totalorder %s17, 3
      %p77 = por %p75, %p76
      %p78 = scmp.ne.s32.totalorder %s67, %s68
      %p79 = scmp.eq.s32.totalorder %s17, 0
      %p80 = por %p78, %p79
      %p81 = scmp.ne.s32.totalorder %s67, %s68
      %p82 = scmp.eq.s32.totalorder %s18, 3
      %p83 = por %p81, %p82
      %p85 = scmp.ne.s32.totalorder %s68, %s84
      %p86 = scmp.eq.s32.totalorder %s18, 0
      %p87 = por %p85, %p86
      %s88 = ssub.s32 %s19, %s31
      %s89 = ssub.s32 %s20, %s27
      %s90 = sor.u32 %s88, %s89
      %p91 = scmp.eq.s32.totalorder %s90, 0
      %s93 = sadd.s32 %s92, 1
      %s94 = scalar_select %p91, %s92, %s93
      %p97 = pneg %p91
      %p98 = scmp.eq.s32.totalorder %s12, 3
      %p99 = por %p97, %p98
      %p100 = scmp.ne.s32.totalorder %s92, %s95
      %p101 = scmp.eq.s32.totalorder %s12, 0
      %p102 = por %p100, %p101
      %p103 = scmp.ne.s32.totalorder %s92, %s95
      %p104 = scmp.eq.s32.totalorder %s17, 3
      %p105 = por %p103, %p104
      %p106 = scmp.ne.s32.totalorder %s95, %s96
      %p107 = scmp.eq.s32.totalorder %s17, 0
      %p108 = por %p106, %p107
      %p109 = scmp.ne.s32.totalorder %s95, %s96
      %p110 = scmp.eq.s32.totalorder %s18, 3
      %p111 = por %p109, %p110
      %p113 = scmp.ne.s32.totalorder %s96, %s112
      %p114 = scmp.eq.s32.totalorder %s18, 0
      %p115 = por %p113, %p114
      %s117 = sadd.s32 %s116, 1
      %p120 = scmp.eq.s32.totalorder %s12, 3
      %p121 = scmp.ne.s32.totalorder %s116, %s118
      %p122 = scmp.eq.s32.totalorder %s12, 0
      %p123 = por %p121, %p122
      %p124 = scmp.ne.s32.totalorder %s116, %s118
      %p125 = scmp.eq.s32.totalorder %s17, 3
      %p126 = por %p124, %p125
      %p127 = scmp.ne.s32.totalorder %s118, %s119
      %p128 = scmp.eq.s32.totalorder %s17, 0
      %p129 = por %p127, %p128
      %p130 = scmp.ne.s32.totalorder %s118, %s119
      %p131 = scmp.eq.s32.totalorder %s18, 3
      %p132 = por %p130, %p131
      %p134 = scmp.ne.s32.totalorder %s119, %s133
      %p135 = scmp.eq.s32.totalorder %s18, 0
      %p136 = por %p134, %p135
      %s137 = ssub.s32 %s19, %s31
      %s138 = ssub.s32 %s20, %s27
      %s139 = sor.u32 %s137, %s138
      %p140 = scmp.eq.s32.totalorder %s139, 0
      %s142 = sadd.s32 %s141, 1
      %s143 = scalar_select %p140, %s141, %s142
      %p146 = pneg %p140
      %p147 = scmp.eq.s32.totalorder %s12, 3
      %p148 = por %p146, %p147
      %p149 = scmp.ne.s32.totalorder %s141, %s144
      %p150 = scmp.eq.s32.totalorder %s12, 0
      %p151 = por %p149, %p150
      %p152 = scmp.ne.s32.totalorder %s141, %s144
      %p153 = scmp.eq.s32.totalorder %s17, 3
      %p154 = por %p152, %p153
      %p155 = scmp.ne.s32.totalorder %s144, %s145
      %p156 = scmp.eq.s32.totalorder %s17, 0
      %p157 = por %p155, %p156
      %p158 = scmp.ne.s32.totalorder %s144, %s145
      %p159 = scmp.eq.s32.totalorder %s18, 3
      %p160 = por %p158, %p159
      %p162 = scmp.ne.s32.totalorder %s145, %s161
      %p163 = scmp.eq.s32.totalorder %s18, 0
      %p164 = por %p162, %p163
      %s165 = ssub.s32 %s19, %s31
      %s166 = ssub.s32 %s20, %s27
      %s167 = sor.u32 %s165, %s166
      %p168 = scmp.eq.s32.totalorder %s167, 0
      %s170 = sadd.s32 %s169, 1
      %s171 = scalar_select %p168, %s169, %s170
      %p174 = pneg %p168
      %p175 = scmp.eq.s32.totalorder %s12, 3
      %p176 = por %p174, %p175
      %p177 = scmp.ne.s32.totalorder %s169, %s172
      %p178 = scmp.eq.s32.totalorder %s12, 0
      %p179 = por %p177, %p178
      %p180 = scmp.ne.s32.totalorder %s169, %s172
      %p181 = scmp.eq.s32.totalorder %s17, 3
      %p182 = por %p180, %p181
      %p183 = scmp.ne.s32.totalorder %s172, %s173
      %p184 = scmp.eq.s32.totalorder %s17, 0
      %p185 = por %p183, %p184
      %p186 = scmp.ne.s32.totalorder %s172, %s173
      %p187 = scmp.eq.s32.totalorder %s18, 3
      %p188 = por %p186, %p187
      %p190 = scmp.ne.s32.totalorder %s173, %s189
      %p191 = scmp.eq.s32.totalorder %s18, 0
      %p192 = por %p190, %p191
      %p193 = scmp.le.s32.totalorder 1, %s12
      %p194 = scmp.lt.s32.totalorder %s12, 5
      %p195 = pnand %p193, %p194
      %p196 = pneg %p195
      // Predicated region
      $region9: #{dmf_unit_forward.8} parent=5 // pred_check
        _
      $region10: #{dmf_unit_forward.8} parent=5 // pred_check_branch
        %198 = sbr.rel (%p195) target = $region12
      $region11: #{dmf_unit_forward.8} parent=5 // pred_region
        %s199 = ssub.s32 %s12, 1
        // Predicated region
        $region13: #{dmf_unit_forward.8} parent=11 // pred_check
          %p200 = pneg %p129
        $region14: #{dmf_unit_forward.8} parent=11 // pred_check_branch
          %202 = sbr.rel (%p200) target = $region16
        $region15: #{dmf_unit_forward.8} parent=11 // pred_region
          _
        $region16: #{dmf_unit_forward.8} parent=11 // pred_fallthru
          _
      $region12: #{dmf_unit_forward.8} parent=5 // pred_fallthru
        _
      %p203 = scmp.lt.s32.totalorder %s12, 4
      // Predicated region
      $region17: #{dmf_unit_forward.8} parent=5 // pred_check
        %p204 = pneg %p203
      $region18: #{dmf_unit_forward.8} parent=5 // pred_check_branch
        %206 = sbr.rel (%p204) target = $region20
      $region19: #{dmf_unit_forward.8} parent=5 // pred_region
        // Predicated region
        $region21: #{dmf_unit_forward.8} parent=19 // pred_check
          %p207 = pneg %p46
        $region22: #{dmf_unit_forward.8} parent=19 // pred_check_branch
          %209 = sbr.rel (%p207) target = $region24
        $region23: #{dmf_unit_forward.8} parent=19 // pred_region
          %s210 = sand.u32 %s36, 1
          %s211 = sand.u32 %s36, 1
          %s212 = smul.addr %s211, 32
          %s213 = scalar_lea.vmem [#allocation2], %s212
          %s214 = smul.u32 2, %s20
          %s215 = smul.addr %s19, 8
          %s216 = sadd.s32 %s214, %s215
          %s217 = smul.addr %s216, 8
          %s218 = scalar_lea.vmem %s0, %s217
          // Predicated region
          $region25: #{dmf_unit_forward.8} parent=23 // pred_check
            _
          $region26: #{dmf_unit_forward.8} parent=23 // pred_check_branch
            %220 = sbr.rel (0) target = $region28
          $region27: #{dmf_unit_forward.8} parent=23 // pred_region
            // Predicated region
            $region29: #{dmf_unit_forward.8} parent=27 // pred_check
              _
            $region30: #{dmf_unit_forward.8} parent=27 // pred_check_branch
              %222 = sbr.rel (0) target = $region32
            $region31: #{dmf_unit_forward.8} parent=27 // pred_region
              loop: start=0, step=1, limit=1
              $region33: #{dmf_unit_forward.8} parent=31 // loop_pre_header
                _
              $region34: #{dmf_unit_forward.8} parent=31 // loop_header
                %s224 = sphi 0, %s228
                %p225 = scmp.ge.s32.totalorder %s224, 1
                %s229 = sphi %s218, %s218
                %s230 = sphi %s213, %s213
              $region35: #{dmf_unit_forward.8} parent=31 // loop_header_branch
                %227 = sbr.rel (%p225) target = $region39
              $region36: #{dmf_unit_forward.8} parent=31 // loop_body
                %v231 = vld [vmem:[%s229] sm:$0xff]
                %232 = vst [vmem:[%s230] sm:$0xff] %v231
                %v233 = vld [vmem:[%s229 + $0x8] sm:$0xff]
                %234 = vst [vmem:[%s230 + $0x8] sm:$0xff] %v233
                %v235 = vld [vmem:[%s229 + $0x20] sm:$0xff]
                %236 = vst [vmem:[%s230 + $0x10] sm:$0xff] %v235
                %v237 = vld [vmem:[%s229 + $0x28] sm:$0xff]
                %238 = vst [vmem:[%s230 + $0x18] sm:$0xff] %v237
              $region37: #{dmf_unit_forward.8} parent=31 // loop_footer
                %s228 = sadd.s32 1, %s224
              $region38: #{dmf_unit_forward.8} parent=31 // loop_footer_branch
                %223 = sbr.rel target = $region34
              $region39: #{dmf_unit_forward.8} parent=31 // loop_exit
                _
            $region32: #{dmf_unit_forward.8} parent=27 // pred_fallthru
              _
            // Predicated region
            $region40: #{dmf_unit_forward.8} parent=27 // pred_check
              _
            $region41: #{dmf_unit_forward.8} parent=27 // pred_check_branch
              %240 = sbr.rel target = $region43
            $region42: #{dmf_unit_forward.8} parent=27 // pred_region
              _
            $region43: #{dmf_unit_forward.8} parent=27 // pred_fallthru
              _
          $region28: #{dmf_unit_forward.8} parent=23 // pred_fallthru
            _
          %241 = vnop
        $region24: #{dmf_unit_forward.8} parent=19 // pred_fallthru
          _
        // Predicated region
        $region44: #{dmf_unit_forward.8} parent=19 // pred_check
          %p242 = pneg %p74
        $region45: #{dmf_unit_forward.8} parent=19 // pred_check_branch
          %244 = sbr.rel (%p242) target = $region47
        $region46: #{dmf_unit_forward.8} parent=19 // pred_region
          %s245 = sand.u32 %s64, 1
          %s246 = sand.u32 %s64, 1
          %s247 = smul.addr %s246, 32
          %s248 = scalar_lea.vmem [#allocation3], %s247
          %s249 = smul.u32 2, %s20
          %s250 = smul.addr %s19, 8
          %s251 = sadd.s32 %s249, %s250
          %s252 = smul.addr %s251, 8
          %s253 = scalar_lea.vmem %s1, %s252
          // Predicated region
          $region48: #{dmf_unit_forward.8} parent=46 // pred_check
            _
          $region49: #{dmf_unit_forward.8} parent=46 // pred_check_branch
            %255 = sbr.rel (0) target = $region51
          $region50: #{dmf_unit_forward.8} parent=46 // pred_region
            // Predicated region
            $region52: #{dmf_unit_forward.8} parent=50 // pred_check
              _
            $region53: #{dmf_unit_forward.8} parent=50 // pred_check_branch
              %257 = sbr.rel (0) target = $region55
            $region54: #{dmf_unit_forward.8} parent=50 // pred_region
              loop: start=0, step=1, limit=1
              $region56: #{dmf_unit_forward.8} parent=54 // loop_pre_header
                _
              $region57: #{dmf_unit_forward.8} parent=54 // loop_header
                %s259 = sphi 0, %s263
                %p260 = scmp.ge.s32.totalorder %s259, 1
                %s264 = sphi %s253, %s253
                %s265 = sphi %s248, %s248
              $region58: #{dmf_unit_forward.8} parent=54 // loop_header_branch
                %262 = sbr.rel (%p260) target = $region62
              $region59: #{dmf_unit_forward.8} parent=54 // loop_body
                %v266 = vld [vmem:[%s264] sm:$0xff]
                %267 = vst [vmem:[%s265] sm:$0xff] %v266
                %v268 = vld [vmem:[%s264 + $0x8] sm:$0xff]
                %269 = vst [vmem:[%s265 + $0x8] sm:$0xff] %v268
                %v270 = vld [vmem:[%s264 + $0x20] sm:$0xff]
                %271 = vst [vmem:[%s265 + $0x10] sm:$0xff] %v270
                %v272 = vld [vmem:[%s264 + $0x28] sm:$0xff]
                %273 = vst [vmem:[%s265 + $0x18] sm:$0xff] %v272
              $region60: #{dmf_unit_forward.8} parent=54 // loop_footer
                %s263 = sadd.s32 1, %s259
              $region61: #{dmf_unit_forward.8} parent=54 // loop_footer_branch
                %258 = sbr.rel target = $region57
              $region62: #{dmf_unit_forward.8} parent=54 // loop_exit
                _
            $region55: #{dmf_unit_forward.8} parent=50 // pred_fallthru
              _
            // Predicated region
            $region63: #{dmf_unit_forward.8} parent=50 // pred_check
              _
            $region64: #{dmf_unit_forward.8} parent=50 // pred_check_branch
              %275 = sbr.rel target = $region66
            $region65: #{dmf_unit_forward.8} parent=50 // pred_region
              _
            $region66: #{dmf_unit_forward.8} parent=50 // pred_fallthru
              _
          $region51: #{dmf_unit_forward.8} parent=46 // pred_fallthru
            _
          %276 = vnop
        $region47: #{dmf_unit_forward.8} parent=19 // pred_fallthru
          _
        // Predicated region
        $region67: #{dmf_unit_forward.8} parent=19 // pred_check
          %p277 = pneg %p102
        $region68: #{dmf_unit_forward.8} parent=19 // pred_check_branch
          %279 = sbr.rel (%p277) target = $region70
        $region69: #{dmf_unit_forward.8} parent=19 // pred_region
          %s280 = sand.u32 %s92, 1
          %s281 = sand.u32 %s92, 1
          %s282 = smul.addr %s281, 32
          %s283 = scalar_lea.vmem [#allocation4], %s282
          %s284 = smul.u32 2, %s20
          %s285 = smul.addr %s19, 8
          %s286 = sadd.s32 %s284, %s285
          %s287 = smul.addr %s286, 8
          %s288 = scalar_lea.vmem %s2, %s287
          // Predicated region
          $region71: #{dmf_unit_forward.8} parent=69 // pred_check
            _
          $region72: #{dmf_unit_forward.8} parent=69 // pred_check_branch
            %290 = sbr.rel (0) target = $region74
          $region73: #{dmf_unit_forward.8} parent=69 // pred_region
            // Predicated region
            $region75: #{dmf_unit_forward.8} parent=73 // pred_check
              _
            $region76: #{dmf_unit_forward.8} parent=73 // pred_check_branch
              %292 = sbr.rel (0) target = $region78
            $region77: #{dmf_unit_forward.8} parent=73 // pred_region
              loop: start=0, step=1, limit=1
              $region79: #{dmf_unit_forward.8} parent=77 // loop_pre_header
                _
              $region80: #{dmf_unit_forward.8} parent=77 // loop_header
                %s294 = sphi 0, %s298
                %p295 = scmp.ge.s32.totalorder %s294, 1
                %s299 = sphi %s288, %s288
                %s300 = sphi %s283, %s283
              $region81: #{dmf_unit_forward.8} parent=77 // loop_header_branch
                %297 = sbr.rel (%p295) target = $region85
              $region82: #{dmf_unit_forward.8} parent=77 // loop_body
                %v301 = vld [vmem:[%s299] sm:$0xff]
                %302 = vst [vmem:[%s300] sm:$0xff] %v301
                %v303 = vld [vmem:[%s299 + $0x8] sm:$0xff]
                %304 = vst [vmem:[%s300 + $0x8] sm:$0xff] %v303
                %v305 = vld [vmem:[%s299 + $0x20] sm:$0xff]
                %306 = vst [vmem:[%s300 + $0x10] sm:$0xff] %v305
                %v307 = vld [vmem:[%s299 + $0x28] sm:$0xff]
                %308 = vst [vmem:[%s300 + $0x18] sm:$0xff] %v307
              $region83: #{dmf_unit_forward.8} parent=77 // loop_footer
                %s298 = sadd.s32 1, %s294
              $region84: #{dmf_unit_forward.8} parent=77 // loop_footer_branch
                %293 = sbr.rel target = $region80
              $region85: #{dmf_unit_forward.8} parent=77 // loop_exit
                _
            $region78: #{dmf_unit_forward.8} parent=73 // pred_fallthru
              _
            // Predicated region
            $region86: #{dmf_unit_forward.8} parent=73 // pred_check
              _
            $region87: #{dmf_unit_forward.8} parent=73 // pred_check_branch
              %310 = sbr.rel target = $region89
            $region88: #{dmf_unit_forward.8} parent=73 // pred_region
              _
            $region89: #{dmf_unit_forward.8} parent=73 // pred_fallthru
              _
          $region74: #{dmf_unit_forward.8} parent=69 // pred_fallthru
            _
          %311 = vnop
        $region70: #{dmf_unit_forward.8} parent=19 // pred_fallthru
          _
      $region20: #{dmf_unit_forward.8} parent=5 // pred_fallthru
        _
      %p312 = scmp.le.s32.totalorder 1, %s12
      %p313 = scmp.lt.s32.totalorder %s12, 5
      %p314 = pnand %p312, %p313
      %p315 = pneg %p314
      // Predicated region
      $region90: #{dmf_unit_forward.8} parent=5 // pred_check
        _
      $region91: #{dmf_unit_forward.8} parent=5 // pred_check_branch
        %317 = sbr.rel (%p314) target = $region93
      $region92: #{dmf_unit_forward.8} parent=5 // pred_region
        %s318 = ssub.s32 %s12, 1
        %s319 = sand.u32 %s39, 1
        %s320 = sand.u32 %s39, 1
        %s321 = smul.addr %s320, 32
        %s322 = scalar_lea.vmem [#allocation2], %s321
        // Predicated region
        $region94: #{dmf_unit_forward.8} parent=92 // pred_check
          %p323 = pneg %p52
        $region95: #{dmf_unit_forward.8} parent=92 // pred_check_branch
          %325 = sbr.rel (%p323) target = $region97
        $region96: #{dmf_unit_forward.8} parent=92 // pred_region
          _
        $region97: #{dmf_unit_forward.8} parent=92 // pred_fallthru
          _
        %s326 = sand.u32 %s67, 1
        %s327 = sand.u32 %s67, 1
        %s328 = smul.addr %s327, 32
        %s329 = scalar_lea.vmem [#allocation3], %s328
        // Predicated region
        $region98: #{dmf_unit_forward.8} parent=92 // pred_check
          %p330 = pneg %p80
        $region99: #{dmf_unit_forward.8} parent=92 // pred_check_branch
          %332 = sbr.rel (%p330) target = $region101
        $region100: #{dmf_unit_forward.8} parent=92 // pred_region
          _
        $region101: #{dmf_unit_forward.8} parent=92 // pred_fallthru
          _
        %s333 = sand.u32 %s95, 1
        %s334 = sand.u32 %s95, 1
        %s335 = smul.addr %s334, 32
        %s336 = scalar_lea.vmem [#allocation4], %s335
        // Predicated region
        $region102: #{dmf_unit_forward.8} parent=92 // pred_check
          %p337 = pneg %p108
        $region103: #{dmf_unit_forward.8} parent=92 // pred_check_branch
          %339 = sbr.rel (%p337) target = $region105
        $region104: #{dmf_unit_forward.8} parent=92 // pred_region
          _
        $region105: #{dmf_unit_forward.8} parent=92 // pred_fallthru
          _
        %s340 = sand.u32 %s39, 1
        %s341 = sand.u32 %s39, 1
        %s342 = smul.addr %s341, 32
        %s343 = scalar_lea.vmem [#allocation2], %s342
        %p344 = pneg %p52
        %p345 = pneg %p49
        %s346 = sand.u32 %s67, 1
        %s347 = sand.u32 %s67, 1
        %s348 = smul.addr %s347, 32
        %s349 = scalar_lea.vmem [#allocation3], %s348
        %p350 = pneg %p80
        %p351 = pneg %p77
        %s352 = sand.u32 %s95, 1
        %s353 = sand.u32 %s95, 1
        %s354 = smul.addr %s353, 32
        %s355 = scalar_lea.vmem [#allocation4], %s354
        %p356 = pneg %p108
        %p357 = pneg %p105
        %p358 = pneg %p129
        %p359 = pneg %p126
        %p360 = pneg %p157
        %p361 = pneg %p154
        %s362 = sand.u32 %s144, 1
        %s363 = sand.u32 %s144, 1
        %s364 = smul.addr %s363, 32
        %s365 = scalar_lea.vmem [#allocation5], %s364
        %p366 = pneg %p185
        %p367 = pneg %p182
        %p368 = scmp.lt.s32.totalorder %s21, 1
        %s369 = scalar_select %p368, %s21, 1
        %p370 = scmp.lt.s32.totalorder %s22, 1
        %s371 = scalar_select %p370, %s22, 1
        %s372 = smul.addr %s371, 2
        %s373 = smul.addr %s369, 4
        %s374 = sadd.s32 %s372, %s373
        %s375 = smul.addr %s374, 8
        %s376 = scalar_lea.vmem %s5, %s375
        %s377 = smul.u32 2, %s22
        %s378 = smul.u32 2, %s22
        %s379 = smul.u32 2, %s22
        %s380 = smul.u32 2, %s22
        %p381 = scmp.lt.s32.totalorder %s21, 1
        %s382 = scalar_select %p381, %s21, 1
        %p383 = scmp.lt.s32.totalorder %s22, 1
        %s384 = scalar_select %p383, %s22, 1
        %s385 = smul.addr %s384, 2
        %s386 = smul.addr %s382, 4
        %s387 = sadd.s32 %s385, %s386
        %s388 = smul.addr %s387, 8
        %s389 = scalar_lea.vmem %s5, %s388
        %v390 = vld [vmem:[%s322] sm:$0xff]
        %v391 = vld [vmem:[%s322 + $0x8] sm:$0xff]
        %v392 = vld [vmem:[%s322 + $0x10] sm:$0xff]
        %v393 = vld [vmem:[%s322 + $0x18] sm:$0xff]
        %v394 = vld [vmem:[%s3] sm:$0xff]
        %v395 = vld [vmem:[%s3 + $0x8] sm:$0xff]
        %397 = vset.pattern.permute.xlu0 0
        %398 = vperm.xlu0 %397, %v394
        %v399 = vpop.permute.xlu0 %398
        %402 = vset.pattern.permute.xlu0 0
        %403 = vperm.xlu0 %402, %v395
        %v404 = vpop.permute.xlu0 %403
        %v406 = vmul.f32 %v390, %v399
        %v407 = vmul.f32 %v391, %v399
        %v408 = vmul.f32 %v392, %v404
        %v409 = vmul.f32 %v393, %v404
        %v410 = vld [vmem:[%s329] sm:$0xff]
        %v411 = vld [vmem:[%s329 + $0x8] sm:$0xff]
        %v412 = vld [vmem:[%s329 + $0x10] sm:$0xff]
        %v413 = vld [vmem:[%s329 + $0x18] sm:$0xff]
        %414 = vset.pattern.permute.xlu0 1
        %415 = vperm.xlu0 %414, %v394
        %v416 = vpop.permute.xlu0 %415
        %418 = vset.pattern.permute.xlu0 1
        %419 = vperm.xlu0 %418, %v395
        %v420 = vpop.permute.xlu0 %419
        %v422 = vmul.f32 %v410, %v416
        %v423 = vmul.f32 %v411, %v416
        %v424 = vmul.f32 %v412, %v420
        %v425 = vmul.f32 %v413, %v420
        %v426 = vadd.f32 %v406, %v422
        %v427 = vadd.f32 %v407, %v423
        %v428 = vadd.f32 %v408, %v424
        %v429 = vadd.f32 %v409, %v425
        %v430 = vld [vmem:[%s336] sm:$0xff]
        %v431 = vld [vmem:[%s336 + $0x8] sm:$0xff]
        %v432 = vld [vmem:[%s336 + $0x10] sm:$0xff]
        %v433 = vld [vmem:[%s336 + $0x18] sm:$0xff]
        %434 = vset.pattern.permute.xlu0 2
        %435 = vperm.xlu0 %434, %v394
        %v436 = vpop.permute.xlu0 %435
        %438 = vset.pattern.permute.xlu0 2
        %439 = vperm.xlu0 %438, %v395
        %v440 = vpop.permute.xlu0 %439
        %v442 = vmul.f32 %v430, %v436
        %v443 = vmul.f32 %v431, %v436
        %v444 = vmul.f32 %v432, %v440
        %v445 = vmul.f32 %v433, %v440
        %v446 = vadd.f32 %v426, %v442
        %v447 = vadd.f32 %v427, %v443
        %v448 = vadd.f32 %v428, %v444
        %v449 = vadd.f32 %v429, %v445
        %450 = vst [vmem:[%s365] sm:$0xff] %v446
        %451 = vst [vmem:[%s365 + $0x8] sm:$0xff] %v447
        %452 = vst [vmem:[%s365 + $0x10] sm:$0xff] %v448
        %453 = vst [vmem:[%s365 + $0x18] sm:$0xff] %v449
        %v454 = vadd.f32 %v446, %v447
        %455 = vadd.xlane.f32.xlu0 %v454
        %v456 = vpop.xlane.xlu0 %455
        %v457 = vadd.f32 %v448, %v449
        %458 = vadd.xlane.f32.xlu0 %v457
        %v459 = vpop.xlane.xlu0 %458
        %v460 = vmul.f32 %v446, %v446
        %v461 = vmul.f32 %v447, %v447
        %v462 = vmul.f32 %v448, %v448
        %v463 = vmul.f32 %v449, %v449
        %v464 = vadd.f32 %v460, %v461
        %465 = vadd.xlane.f32.xlu0 %v464
        %v466 = vpop.xlane.xlu0 %465
        %v467 = vadd.f32 %v462, %v463
        %468 = vadd.xlane.f32.xlu0 %v467
        %v469 = vpop.xlane.xlu0 %468
        %vm470 = vcmask 7168
        %v471 = vsel %vm470, %v456, %v466
        %v472 = vsel %vm470, %v459, %v469
        %vm473 = vcmask 15360
        %474 = vst.msk [vmem:[%s389] sm:$0xff] %vm473, %v471
        %475 = vst.msk [vmem:[%s389 + $0x8] sm:$0xff] %vm473, %v472
        %s476 = sand.u32 %s144, 1
        %s477 = sand.u32 %s144, 1
        %s478 = smul.addr %s477, 32
        %s479 = scalar_lea.vmem [#allocation5], %s478
        %p480 = scmp.lt.s32.totalorder %s21, 1
        %s481 = scalar_select %p480, %s21, 1
        %p482 = scmp.lt.s32.totalorder %s22, 1
        %s483 = scalar_select %p482, %s22, 1
        %s484 = smul.addr %s483, 2
        %s485 = smul.addr %s481, 4
        %s486 = sadd.s32 %s484, %s485
        %s487 = smul.addr %s486, 8
        %s488 = scalar_lea.vmem %s5, %s487
        // Predicated region
        $region106: #{dmf_unit_forward.8} parent=92 // pred_check
          %p489 = pneg %p154
        $region107: #{dmf_unit_forward.8} parent=92 // pred_check_branch
          %491 = sbr.rel (%p489) target = $region109
        $region108: #{dmf_unit_forward.8} parent=92 // pred_region
          %s492 = smul.u32 2, %s22
          %s493 = smul.addr %s21, 8
          %s494 = sadd.s32 %s492, %s493
          %s495 = smul.addr %s494, 8
          %s496 = scalar_lea.vmem %s4, %s495
          // Predicated region
          $region110: #{dmf_unit_forward.8} parent=108 // pred_check
            _
          $region111: #{dmf_unit_forward.8} parent=108 // pred_check_branch
            %498 = sbr.rel (0) target = $region113
          $region112: #{dmf_unit_forward.8} parent=108 // pred_region
            // Predicated region
            $region114: #{dmf_unit_forward.8} parent=112 // pred_check
              _
            $region115: #{dmf_unit_forward.8} parent=112 // pred_check_branch
              %500 = sbr.rel (0) target = $region117
            $region116: #{dmf_unit_forward.8} parent=112 // pred_region
              loop: start=0, step=1, limit=1
              $region118: #{dmf_unit_forward.8} parent=116 // loop_pre_header
                _
              $region119: #{dmf_unit_forward.8} parent=116 // loop_header
                %s502 = sphi 0, %s506
                %p503 = scmp.ge.s32.totalorder %s502, 1
                %s507 = sphi %s479, %s479
                %s508 = sphi %s496, %s496
              $region120: #{dmf_unit_forward.8} parent=116 // loop_header_branch
                %505 = sbr.rel (%p503) target = $region124
              $region121: #{dmf_unit_forward.8} parent=116 // loop_body
                %v509 = vld [vmem:[%s507] sm:$0xff]
                %510 = vst [vmem:[%s508] sm:$0xff] %v509
                %v511 = vld [vmem:[%s507 + $0x8] sm:$0xff]
                %512 = vst [vmem:[%s508 + $0x8] sm:$0xff] %v511
                %v513 = vld [vmem:[%s507 + $0x10] sm:$0xff]
                %514 = vst [vmem:[%s508 + $0x20] sm:$0xff] %v513
                %v515 = vld [vmem:[%s507 + $0x18] sm:$0xff]
                %516 = vst [vmem:[%s508 + $0x28] sm:$0xff] %v515
              $region122: #{dmf_unit_forward.8} parent=116 // loop_footer
                %s506 = sadd.s32 1, %s502
              $region123: #{dmf_unit_forward.8} parent=116 // loop_footer_branch
                %501 = sbr.rel target = $region119
              $region124: #{dmf_unit_forward.8} parent=116 // loop_exit
                _
            $region117: #{dmf_unit_forward.8} parent=112 // pred_fallthru
              _
            // Predicated region
            $region125: #{dmf_unit_forward.8} parent=112 // pred_check
              _
            $region126: #{dmf_unit_forward.8} parent=112 // pred_check_branch
              %518 = sbr.rel target = $region128
            $region127: #{dmf_unit_forward.8} parent=112 // pred_region
              _
            $region128: #{dmf_unit_forward.8} parent=112 // pred_fallthru
              _
          $region113: #{dmf_unit_forward.8} parent=108 // pred_fallthru
            _
          %519 = vnop
        $region109: #{dmf_unit_forward.8} parent=92 // pred_fallthru
          _
        // Predicated region
        $region129: #{dmf_unit_forward.8} parent=92 // pred_check
          %p520 = pneg %p182
        $region130: #{dmf_unit_forward.8} parent=92 // pred_check_branch
          %522 = sbr.rel (%p520) target = $region132
        $region131: #{dmf_unit_forward.8} parent=92 // pred_region
          _
        $region132: #{dmf_unit_forward.8} parent=92 // pred_fallthru
          _
      $region93: #{dmf_unit_forward.8} parent=5 // pred_fallthru
        _
      %p523 = scmp.le.s32.totalorder 2, %s12
      // Predicated region
      $region133: #{dmf_unit_forward.8} parent=5 // pred_check
        %p524 = pneg %p523
      $region134: #{dmf_unit_forward.8} parent=5 // pred_check_branch
        %526 = sbr.rel (%p524) target = $region136
      $region135: #{dmf_unit_forward.8} parent=5 // pred_region
        %s527 = ssub.s32 %s12, 2
        // Predicated region
        $region137: #{dmf_unit_forward.8} parent=135 // pred_check
          %p528 = pneg %p160
        $region138: #{dmf_unit_forward.8} parent=135 // pred_check_branch
          %530 = sbr.rel (%p528) target = $region140
        $region139: #{dmf_unit_forward.8} parent=135 // pred_region
          %s531 = sand.u32 %s145, 1
          %s532 = sand.u32 %s145, 1
          %s533 = smul.addr %s532, 32
          %s534 = scalar_lea.vmem [#allocation5], %s533
        $region140: #{dmf_unit_forward.8} parent=135 // pred_fallthru
          _
        // Predicated region
        $region141: #{dmf_unit_forward.8} parent=135 // pred_check
          %p535 = pneg %p188
        $region142: #{dmf_unit_forward.8} parent=135 // pred_check_branch
          %537 = sbr.rel (%p535) target = $region144
        $region143: #{dmf_unit_forward.8} parent=135 // pred_region
          %p538 = scmp.lt.s32.totalorder %s23, 1
          %s539 = scalar_select %p538, %s23, 1
          %p540 = scmp.lt.s32.totalorder %s24, 1
          %s541 = scalar_select %p540, %s24, 1
          %s542 = smul.addr %s541, 2
          %s543 = smul.addr %s539, 4
          %s544 = sadd.s32 %s542, %s543
          %s545 = smul.addr %s544, 8
          %s546 = scalar_lea.vmem %s5, %s545
        $region144: #{dmf_unit_forward.8} parent=135 // pred_fallthru
          _
      $region136: #{dmf_unit_forward.8} parent=5 // pred_fallthru
        _
    $region6: #{dmf_unit_forward.8} parent=1 // loop_footer
      %s16 = sadd.s32 1, %s12
    $region7: #{dmf_unit_forward.8} parent=1 // loop_footer_branch
      %11 = sbr.rel target = $region3
    $region8: #{dmf_unit_forward.8} parent=1 // loop_exit
      _

// kernel: dmf_unit_forward.9
$region0: #{dmf_unit_forward.9}
  #allocation0 [shape = 'u32[]', space=smem, size = 0x4, offset = 0x4, fixed_abs, tag = 'smem constant byte address 0x4 - core index']
  #allocation1 [shape = 'u32[72,128]{1,0:T(1,128)}', space=vmem, size = 0x9000, scoped, tag = 'internal scratch']
  %s0 = inlined_call_operand.vmem [shape: f32[2,16,512], index: 0, kind: input, shape index: {}]
  %s1 = inlined_call_operand.vmem [shape: f32[16,2], index: 1, kind: input, shape index: {}]
  %s2 = inlined_call_operand.vmem [shape: f32[2,16,512], index: 2, kind: output, shape index: {}]
  %s3 = sld [smem:[#allocation0]]
  $region83: #{dmf_unit_forward.9} parent=0
    _
  %s5 = ssub.s32 1, %s3
  %s6 = scalar_select 0, %s5, %s3
  $region1: #{dmf_unit_forward.9} parent=0
    #allocation2 [shape = 'u8[32768]{0}', space=vmem, size = 0x8000, scoped, tag = 'input window, operand 0']
    #allocation3 [shape = 'u8[32768]{0}', space=vmem, size = 0x8000, scoped, tag = 'output window, operand 0']
    loop: start=0, step=1, limit=6
    $region2: #{dmf_unit_forward.9} parent=1 // loop_pre_header
      _
    $region3: #{dmf_unit_forward.9} parent=1 // loop_header
      %s8 = sphi 0, %s12
      %p9 = scmp.ge.s32.totalorder %s8, 6
      %s15 = sphi 0, %s27
      %s16 = sphi 0, %s23
      %s17 = sphi 0, %s15
      %s18 = sphi 0, %s16
      %s19 = sphi 0, %s17
      %s20 = sphi 0, %s18
      %s32 = sphi 0, %s34
      %s35 = sphi 0, %s32
      %s36 = sphi 0, %s35
      %s52 = sphi 0, %s36
      %s56 = sphi 0, %s56
      %s58 = sphi 0, %s56
      %s59 = sphi 0, %s58
      %s73 = sphi 0, %s59
      %s81 = sphi 0, %s83
      %s84 = sphi 0, %s81
      %s85 = sphi 0, %s84
      %s101 = sphi 0, %s85
    $region4: #{dmf_unit_forward.9} parent=1 // loop_header_branch
      %11 = sbr.rel (%p9) target = $region8
    $region5: #{dmf_unit_forward.9} parent=1 // loop_body
      %s13 = ssub.s32 %s8, 1
      %s14 = ssub.s32 %s8, 2
      %s21 = sadd.s32 1, %s16
      %p22 = scmp.ge.s32.totalorder %s21, 2
      %s23 = scalar_select %p22, 0, %s21
      %s24 = sadd.s32 1, %s15
      %s25 = scalar_select %p22, %s24, %s15
      %p26 = scmp.ge.s32.totalorder %s25, 2
      %s27 = scalar_select %p26, 0, %s25
      %s28 = ssub.s32 %s15, %s27
      %s29 = ssub.s32 %s16, %s23
      %s30 = sor.u32 %s28, %s29
      %p31 = scmp.eq.s32.totalorder %s30, 0
      %s33 = sadd.s32 %s32, 1
      %s34 = scalar_select %p31, %s32, %s33
      %p37 = pneg %p31
      %p38 = scmp.eq.s32.totalorder %s8, 3
      %p39 = por %p37, %p38
      %p40 = scmp.ne.s32.totalorder %s32, %s35
      %p41 = scmp.eq.s32.totalorder %s8, 0
      %p42 = por %p40, %p41
      %p43 = scmp.ne.s32.totalorder %s32, %s35
      %p44 = scmp.eq.s32.totalorder %s13, 3
      %p45 = por %p43, %p44
      %p46 = scmp.ne.s32.totalorder %s35, %s36
      %p47 = scmp.eq.s32.totalorder %s13, 0
      %p48 = por %p46, %p47
      %p49 = scmp.ne.s32.totalorder %s35, %s36
      %p50 = scmp.eq.s32.totalorder %s14, 3
      %p51 = por %p49, %p50
      %p53 = scmp.ne.s32.totalorder %s36, %s52
      %p54 = scmp.eq.s32.totalorder %s14, 0
      %p55 = por %p53, %p54
      %s57 = sadd.s32 %s56, 1
      %p60 = scmp.eq.s32.totalorder %s8, 3
      %p61 = scmp.ne.s32.totalorder %s56, %s58
      %p62 = scmp.eq.s32.totalorder %s8, 0
      %p63 = por %p61, %p62
      %p64 = scmp.ne.s32.totalorder %s56, %s58
      %p65 = scmp.eq.s32.totalorder %s13, 3
      %p66 = por %p64, %p65
      %p67 = scmp.ne.s32.totalorder %s58, %s59
      %p68 = scmp.eq.s32.totalorder %s13, 0
      %p69 = por %p67, %p68
      %p70 = scmp.ne.s32.totalorder %s58, %s59
      %p71 = scmp.eq.s32.totalorder %s14, 3
      %p72 = por %p70, %p71
      %p74 = scmp.ne.s32.totalorder %s59, %s73
      %p75 = scmp.eq.s32.totalorder %s14, 0
      %p76 = por %p74, %p75
      %s77 = ssub.s32 %s15, %s27
      %s78 = ssub.s32 %s16, %s23
      %s79 = sor.u32 %s77, %s78
      %p80 = scmp.eq.s32.totalorder %s79, 0
      %s82 = sadd.s32 %s81, 1
      %s83 = scalar_select %p80, %s81, %s82
      %p86 = pneg %p80
      %p87 = scmp.eq.s32.totalorder %s8, 3
      %p88 = por %p86, %p87
      %p89 = scmp.ne.s32.totalorder %s81, %s84
      %p90 = scmp.eq.s32.totalorder %s8, 0
      %p91 = por %p89, %p90
      %p92 = scmp.ne.s32.totalorder %s81, %s84
      %p93 = scmp.eq.s32.totalorder %s13, 3
      %p94 = por %p92, %p93
      %p95 = scmp.ne.s32.totalorder %s84, %s85
      %p96 = scmp.eq.s32.totalorder %s13, 0
      %p97 = por %p95, %p96
      %p98 = scmp.ne.s32.totalorder %s84, %s85
      %p99 = scmp.eq.s32.totalorder %s14, 3
      %p100 = por %p98, %p99
      %p102 = scmp.ne.s32.totalorder %s85, %s101
      %p103 = scmp.eq.s32.totalorder %s14, 0
      %p104 = por %p102, %p103
      %p105 = scmp.le.s32.totalorder 1, %s8
      %p106 = scmp.lt.s32.totalorder %s8, 5
      %p107 = pnand %p105, %p106
      %p108 = pneg %p107
      // Predicated region
      $region9: #{dmf_unit_forward.9} parent=5 // pred_check
        _
      $region10: #{dmf_unit_forward.9} parent=5 // pred_check_branch
        %110 = sbr.rel (%p107) target = $region12
      $region11: #{dmf_unit_forward.9} parent=5 // pred_region
        %s111 = ssub.s32 %s8, 1
        // Predicated region
        $region13: #{dmf_unit_forward.9} parent=11 // pred_check
          %p112 = pneg %p69
        $region14: #{dmf_unit_forward.9} parent=11 // pred_check_branch
          %114 = sbr.rel (%p112) target = $region16
        $region15: #{dmf_unit_forward.9} parent=11 // pred_region
          _
        $region16: #{dmf_unit_forward.9} parent=11 // pred_fallthru
          _
      $region12: #{dmf_unit_forward.9} parent=5 // pred_fallthru
        _
      %p115 = scmp.lt.s32.totalorder %s8, 4
      // Predicated region
      $region17: #{dmf_unit_forward.9} parent=5 // pred_check
        %p116 = pneg %p115
      $region18: #{dmf_unit_forward.9} parent=5 // pred_check_branch
        %118 = sbr.rel (%p116) target = $region20
      $region19: #{dmf_unit_forward.9} parent=5 // pred_region
        // Predicated region
        $region21: #{dmf_unit_forward.9} parent=19 // pred_check
          %p119 = pneg %p42
        $region22: #{dmf_unit_forward.9} parent=19 // pred_check_branch
          %121 = sbr.rel (%p119) target = $region24
        $region23: #{dmf_unit_forward.9} parent=19 // pred_region
          %s122 = sand.u32 %s32, 1
          %s123 = sand.u32 %s32, 1
          %s124 = smul.addr %s123, 32
          %s125 = scalar_lea.vmem [#allocation2], %s124
          %s126 = smul.u32 2, %s16
          %s127 = smul.addr %s15, 8
          %s128 = sadd.s32 %s126, %s127
          %s129 = smul.addr %s128, 8
          %s130 = scalar_lea.vmem %s0, %s129
          // Predicated region
          $region25: #{dmf_unit_forward.9} parent=23 // pred_check
            _
          $region26: #{dmf_unit_forward.9} parent=23 // pred_check_branch
            %132 = sbr.rel (0) target = $region28
          $region27: #{dmf_unit_forward.9} parent=23 // pred_region
            // Predicated region
            $region29: #{dmf_unit_forward.9} parent=27 // pred_check
              _
            $region30: #{dmf_unit_forward.9} parent=27 // pred_check_branch
              %134 = sbr.rel (0) target = $region32
            $region31: #{dmf_unit_forward.9} parent=27 // pred_region
              loop: start=0, step=1, limit=1
              $region33: #{dmf_unit_forward.9} parent=31 // loop_pre_header
                _
              $region34: #{dmf_unit_forward.9} parent=31 // loop_header
                %s136 = sphi 0, %s140
                %p137 = scmp.ge.s32.totalorder %s136, 1
                %s141 = sphi %s130, %s130
                %s142 = sphi %s125, %s125
              $region35: #{dmf_unit_forward.9} parent=31 // loop_header_branch
                %139 = sbr.rel (%p137) target = $region39
              $region36: #{dmf_unit_forward.9} parent=31 // loop_body
                %v143 = vld [vmem:[%s141] sm:$0xff]
                %144 = vst [vmem:[%s142] sm:$0xff] %v143
                %v145 = vld [vmem:[%s141 + $0x8] sm:$0xff]
                %146 = vst [vmem:[%s142 + $0x8] sm:$0xff] %v145
                %v147 = vld [vmem:[%s141 + $0x20] sm:$0xff]
                %148 = vst [vmem:[%s142 + $0x10] sm:$0xff] %v147
                %v149 = vld [vmem:[%s141 + $0x28] sm:$0xff]
                %150 = vst [vmem:[%s142 + $0x18] sm:$0xff] %v149
              $region37: #{dmf_unit_forward.9} parent=31 // loop_footer
                %s140 = sadd.s32 1, %s136
              $region38: #{dmf_unit_forward.9} parent=31 // loop_footer_branch
                %135 = sbr.rel target = $region34
              $region39: #{dmf_unit_forward.9} parent=31 // loop_exit
                _
            $region32: #{dmf_unit_forward.9} parent=27 // pred_fallthru
              _
            // Predicated region
            $region40: #{dmf_unit_forward.9} parent=27 // pred_check
              _
            $region41: #{dmf_unit_forward.9} parent=27 // pred_check_branch
              %152 = sbr.rel target = $region43
            $region42: #{dmf_unit_forward.9} parent=27 // pred_region
              _
            $region43: #{dmf_unit_forward.9} parent=27 // pred_fallthru
              _
          $region28: #{dmf_unit_forward.9} parent=23 // pred_fallthru
            _
          %153 = vnop
        $region24: #{dmf_unit_forward.9} parent=19 // pred_fallthru
          _
      $region20: #{dmf_unit_forward.9} parent=5 // pred_fallthru
        _
      %p154 = scmp.le.s32.totalorder 1, %s8
      %p155 = scmp.lt.s32.totalorder %s8, 5
      %p156 = pnand %p154, %p155
      %p157 = pneg %p156
      // Predicated region
      $region44: #{dmf_unit_forward.9} parent=5 // pred_check
        _
      $region45: #{dmf_unit_forward.9} parent=5 // pred_check_branch
        %159 = sbr.rel (%p156) target = $region47
      $region46: #{dmf_unit_forward.9} parent=5 // pred_region
        %s160 = ssub.s32 %s8, 1
        %s161 = sand.u32 %s35, 1
        %s162 = sand.u32 %s35, 1
        %s163 = smul.addr %s162, 32
        %s164 = scalar_lea.vmem [#allocation2], %s163
        // Predicated region
        $region48: #{dmf_unit_forward.9} parent=46 // pred_check
          %p165 = pneg %p48
        $region49: #{dmf_unit_forward.9} parent=46 // pred_check_branch
          %167 = sbr.rel (%p165) target = $region51
        $region50: #{dmf_unit_forward.9} parent=46 // pred_region
          _
        $region51: #{dmf_unit_forward.9} parent=46 // pred_fallthru
          _
        %s168 = sand.u32 %s35, 1
        %s169 = sand.u32 %s35, 1
        %s170 = smul.addr %s169, 32
        %s171 = scalar_lea.vmem [#allocation2], %s170
        %p172 = pneg %p48
        %p173 = pneg %p45
        %p174 = pneg %p69
        %p175 = pneg %p66
        %p176 = pneg %p97
        %p177 = pneg %p94
        %s178 = sand.u32 %s84, 1
        %s179 = sand.u32 %s84, 1
        %s180 = smul.addr %s179, 32
        %s181 = scalar_lea.vmem [#allocation3], %s180
        %s182 = smul.u32 2, %s18
        %s183 = smul.u32 2, %s18
        %v184 = vld [vmem:[%s164] sm:$0xff]
        %v185 = vld [vmem:[%s164 + $0x8] sm:$0xff]
        %v186 = vld [vmem:[%s164 + $0x10] sm:$0xff]
        %v187 = vld [vmem:[%s164 + $0x18] sm:$0xff]
        %v188 = vld [vmem:[%s1] sm:$0xff]
        %v189 = vld [vmem:[%s1 + $0x8] sm:$0xff]
        %191 = vset.pattern.permute.xlu0 0
        %192 = vperm.xlu0 %191, %v188
        %v193 = vpop.permute.xlu0 %192
        %196 = vset.pattern.permute.xlu0 0
        %197 = vperm.xlu0 %196, %v189
        %v198 = vpop.permute.xlu0 %197
        %v200 = vmul.f32 %v184, %v193
        %v201 = vmul.f32 %v185, %v193
        %v202 = vmul.f32 %v186, %v198
        %v203 = vmul.f32 %v187, %v198
        %204 = vset.pattern.permute.xlu0 1
        %205 = vperm.xlu0 %204, %v188
        %v206 = vpop.permute.xlu0 %205
        %208 = vset.pattern.permute.xlu0 1
        %209 = vperm.xlu0 %208, %v189
        %v210 = vpop.permute.xlu0 %209
        %v212 = vadd.f32 %v200, %v206
        %v213 = vadd.f32 %v201, %v206
        %v214 = vadd.f32 %v202, %v210
        %v215 = vadd.f32 %v203, %v210
        %v216 = vmax.f32 %v212, 0.0
        %v217 = vmax.f32 %v213, 0.0
        %v218 = vmax.f32 %v214, 0.0
        %v219 = vmax.f32 %v215, 0.0
        %220 = vst [vmem:[%s181] sm:$0xff] %v216
        %221 = vst [vmem:[%s181 + $0x8] sm:$0xff] %v217
        %222 = vst [vmem:[%s181 + $0x10] sm:$0xff] %v218
        %223 = vst [vmem:[%s181 + $0x18] sm:$0xff] %v219
        %s224 = sand.u32 %s84, 1
        %s225 = sand.u32 %s84, 1
        %s226 = smul.addr %s225, 32
        %s227 = scalar_lea.vmem [#allocation3], %s226
        // Predicated region
        $region52: #{dmf_unit_forward.9} parent=46 // pred_check
          %p228 = pneg %p94
        $region53: #{dmf_unit_forward.9} parent=46 // pred_check_branch
          %230 = sbr.rel (%p228) target = $region55
        $region54: #{dmf_unit_forward.9} parent=46 // pred_region
          %s231 = smul.u32 2, %s18
          %s232 = smul.addr %s17, 8
          %s233 = sadd.s32 %s231, %s232
          %s234 = smul.addr %s233, 8
          %s235 = scalar_lea.vmem %s2, %s234
          // Predicated region
          $region56: #{dmf_unit_forward.9} parent=54 // pred_check
            _
          $region57: #{dmf_unit_forward.9} parent=54 // pred_check_branch
            %237 = sbr.rel (0) target = $region59
          $region58: #{dmf_unit_forward.9} parent=54 // pred_region
            // Predicated region
            $region60: #{dmf_unit_forward.9} parent=58 // pred_check
              _
            $region61: #{dmf_unit_forward.9} parent=58 // pred_check_branch
              %239 = sbr.rel (0) target = $region63
            $region62: #{dmf_unit_forward.9} parent=58 // pred_region
              loop: start=0, step=1, limit=1
              $region64: #{dmf_unit_forward.9} parent=62 // loop_pre_header
                _
              $region65: #{dmf_unit_forward.9} parent=62 // loop_header
                %s241 = sphi 0, %s245
                %p242 = scmp.ge.s32.totalorder %s241, 1
                %s246 = sphi %s227, %s227
                %s247 = sphi %s235, %s235
              $region66: #{dmf_unit_forward.9} parent=62 // loop_header_branch
                %244 = sbr.rel (%p242) target = $region70
              $region67: #{dmf_unit_forward.9} parent=62 // loop_body
                %v248 = vld [vmem:[%s246] sm:$0xff]
                %249 = vst [vmem:[%s247] sm:$0xff] %v248
                %v250 = vld [vmem:[%s246 + $0x8] sm:$0xff]
                %251 = vst [vmem:[%s247 + $0x8] sm:$0xff] %v250
                %v252 = vld [vmem:[%s246 + $0x10] sm:$0xff]
                %253 = vst [vmem:[%s247 + $0x20] sm:$0xff] %v252
                %v254 = vld [vmem:[%s246 + $0x18] sm:$0xff]
                %255 = vst [vmem:[%s247 + $0x28] sm:$0xff] %v254
              $region68: #{dmf_unit_forward.9} parent=62 // loop_footer
                %s245 = sadd.s32 1, %s241
              $region69: #{dmf_unit_forward.9} parent=62 // loop_footer_branch
                %240 = sbr.rel target = $region65
              $region70: #{dmf_unit_forward.9} parent=62 // loop_exit
                _
            $region63: #{dmf_unit_forward.9} parent=58 // pred_fallthru
              _
            // Predicated region
            $region71: #{dmf_unit_forward.9} parent=58 // pred_check
              _
            $region72: #{dmf_unit_forward.9} parent=58 // pred_check_branch
              %257 = sbr.rel target = $region74
            $region73: #{dmf_unit_forward.9} parent=58 // pred_region
              _
            $region74: #{dmf_unit_forward.9} parent=58 // pred_fallthru
              _
          $region59: #{dmf_unit_forward.9} parent=54 // pred_fallthru
            _
          %258 = vnop
        $region55: #{dmf_unit_forward.9} parent=46 // pred_fallthru
          _
      $region47: #{dmf_unit_forward.9} parent=5 // pred_fallthru
        _
      %p259 = scmp.le.s32.totalorder 2, %s8
      // Predicated region
      $region75: #{dmf_unit_forward.9} parent=5 // pred_check
        %p260 = pneg %p259
      $region76: #{dmf_unit_forward.9} parent=5 // pred_check_branch
        %262 = sbr.rel (%p260) target = $region78
      $region77: #{dmf_unit_forward.9} parent=5 // pred_region
        %s263 = ssub.s32 %s8, 2
        // Predicated region
        $region79: #{dmf_unit_forward.9} parent=77 // pred_check
          %p264 = pneg %p100
        $region80: #{dmf_unit_forward.9} parent=77 // pred_check_branch
          %266 = sbr.rel (%p264) target = $region82
        $region81: #{dmf_unit_forward.9} parent=77 // pred_region
          %s267 = sand.u32 %s85, 1
          %s268 = sand.u32 %s85, 1
          %s269 = smul.addr %s268, 32
          %s270 = scalar_lea.vmem [#allocation3], %s269
        $region82: #{dmf_unit_forward.9} parent=77 // pred_fallthru
          _
      $region78: #{dmf_unit_forward.9} parent=5 // pred_fallthru
        _
    $region6: #{dmf_unit_forward.9} parent=1 // loop_footer
      %s12 = sadd.s32 1, %s8
    $region7: #{dmf_unit_forward.9} parent=1 // loop_footer_branch
      %7 = sbr.rel target = $region3
    $region8: #{dmf_unit_forward.9} parent=1 // loop_exit
      _

</llo_original>
